<compile_context>
chip_gen: v6e
topology: v6e:2x2x1
jax: 0.10.0
libtpu: 0.0.40
codegen_flags: <defaults>
</compile_context>

<pallas_src>
import numpy as np

import jax
import jax.numpy as jnp
from jax.experimental import pallas as pl
from jax.experimental.pallas import tpu as pltpu

# ----------------------------- model config ---------------------------------
BATCH = 2
SEQ_LEN = 24          # module requires 24 <= seq_len <= 31
INPUT_SIZE = 16
OUTPUT_SIZE = 8
EMBED_DIM = 128       # module assumes 128 (ldim = fbase*4*3*16)
FBASE = 8             # small synthetic fbase (module default is 25)
LDIM = FBASE * 4 * 3 * 16
BN_EPS = 1e-5


def _conv_out(n):
    # Conv2d(kernel=4, stride=2, pad=1) output size.
    return (n + 2 - 4) // 2 + 1


# ----------------------------- fused Pallas kernel ---------------------------
def _encoder_kernel(
    xT_ref, ew_ref, eb_ref,
    s0_ref, g0_ref, m0_ref, mt0_ref, gm0_ref, bt0_ref,
    s1_ref, g1_ref, m1_ref, mt1_ref, gm1_ref, bt1_ref,
    s2_ref, g2_ref, m2_ref, mt2_ref, gm2_ref, bt2_ref,
    v3_ref, dm_ref, rf_ref, bf_ref, lb_ref,
    o_ref,
):
    f32 = jnp.float32

    def conv_bn_relu(x, s_ref, g_ref, m_ref, mt_ref, gm_ref, bt_ref):
        """x: (B*Win, Hin*Cin) slab with rows=(b, w), lanes=(h, c).
        Returns the batch-stat BN + ReLU output as a (B*Wout, Hout*Cout) slab."""
        rows_out = s_ref.shape[1]            # B * Wout
        lout = g_ref.shape[2]                # Hout * Cout
        cout = m_ref.shape[1]
        hout = lout // cout
        # conv: stride-2 width taps via tiny 0/1 row-select matmuls, then
        # height taps + channel contraction with the raw conv weights (height
        # zero-padding is folded into the G matrices on the host).
        acc = jnp.zeros((rows_out, lout), f32)
        for kw in range(4):
            rsel = jnp.dot(s_ref[kw].astype(f32), x, preferred_element_type=f32)
            acc = acc + jnp.dot(rsel, g_ref[kw], preferred_element_type=f32)
        # one-pass batch statistics per channel: reduce over rows, then fold
        # the (h, c) lane interleave down to channels with a 0/1 mask matmul.
        inv_n = 1.0 / float(rows_out * hout)          # 1 / (B*Wout*Hout)
        mfold = m_ref[...].astype(f32)
        ch_sum = jnp.dot(jnp.sum(acc, axis=0, keepdims=True), mfold,
                         preferred_element_type=f32)
        ch_sq = jnp.dot(jnp.sum(acc * acc, axis=0, keepdims=True), mfold,
                        preferred_element_type=f32)
        mean = ch_sum * inv_n
        var = jnp.maximum(ch_sq * inv_n - mean * mean, 0.0)   # biased, clamped
        scale = gm_ref[...] * jax.lax.rsqrt(var + BN_EPS)
        shift = bt_ref[...] - mean * scale
        # broadcast per-channel scale/shift back to the (h, c) lane layout.
        mt = mt_ref[...].astype(f32)
        scale_row = jnp.dot(scale, mt, preferred_element_type=f32)
        shift_row = jnp.dot(shift, mt, preferred_element_type=f32)
        # normalize + affine + ReLU in one elementwise sweep.
        return jnp.maximum(acc * scale_row + shift_row, 0.0)

    # embedding Linear, produced directly in the transposed rows=(b, w) /
    # lanes=(h) layout: block-diag-over-batch weight @ (b, d)-rows input.
    x0 = jnp.dot(ew_ref[...], xT_ref[...], preferred_element_type=f32) + eb_ref[...]
    x1 = conv_bn_relu(x0, s0_ref, g0_ref, m0_ref, mt0_ref, gm0_ref, bt0_ref)
    x2 = conv_bn_relu(x1, s1_ref, g1_ref, m1_ref, mt1_ref, gm1_ref, bt1_ref)
    x3 = conv_bn_relu(x2, s2_ref, g2_ref, m2_ref, mt2_ref, gm2_ref, bt2_ref)

    # final Linear: PyTorch's NCHW flatten is folded into V3 on the host; the
    # per-row width index is matched to V3's width blocks with a 0/1 diagonal
    # mask and two tiny folds (no P row-selection matmuls, no large operands).
    q = jnp.dot(x3, v3_ref[...], preferred_element_type=f32) * dm_ref[...].astype(f32)
    out = jnp.dot(bf_ref[...].astype(f32), q, preferred_element_type=f32)
    out = jnp.dot(out, rf_ref[...].astype(f32), preferred_element_type=f32)
    o_ref[...] = (out + lb_ref[...]).astype(o_ref.dtype)


_VMEM = pl.BlockSpec(memory_space=pltpu.MemorySpace.VMEM)

_ARG_ORDER = (
    "xT", "emb_w_bd", "emb_b_col",
    "S0", "G0", "M0", "MT0", "gamma0", "beta0",
    "S1", "G1", "M1", "MT1", "gamma1", "beta1",
    "S2", "G2", "M2", "MT2", "gamma2", "beta2",
    "V3", "Dmask", "Rfold", "Bfold", "lin_b",
)


@jax.jit
def forward_pallas(x, prep):
    B, S, D = x.shape
    args = dict(prep)
    # layout plumbing only (tiny XLA transpose outside the kernel):
    # rows=(b, d), lanes=h for the embedding matmul.
    args["xT"] = jnp.transpose(x, (0, 2, 1)).reshape(B * D, S)
    inputs = [args[k] for k in _ARG_ORDER]
    return pl.pallas_call(
        _encoder_kernel,
        out_shape=jax.ShapeDtypeStruct((B, OUTPUT_SIZE), jnp.float32),
        in_specs=[_VMEM] * len(inputs),
        out_specs=_VMEM,
        compiler_params=pltpu.CompilerParams(vmem_limit_bytes=16 * 1024 * 1024),
    )(*inputs)


# --------------------- host-side one-time weight preprocessing ---------------
def _kw_select_mats(B, Win, Wout):
    """S[kw, b*Wout+wo, b*Win+w] = 1 where w = 2*wo + kw - 1 (stride-2, pad-1)."""
    S = np.zeros((4, B * Wout, B * Win), np.float32)
    for kw in range(4):
        for b in range(B):
            for wo in range(Wout):
                w = 2 * wo + kw - 1
                if 0 <= w < Win:
                    S[kw, b * Wout + wo, b * Win + w] = 1.0
    return S


def _kh_gmats(w_oihw, Hin, Hout):
    """G[kw, h*Cin+ci, ho*Cout+co] = w[co, ci, kh, kw] with kh = h - 2*ho + 1
    (height taps + channel contraction; height zero-padding folded in)."""
    cout, cin = w_oihw.shape[0], w_oihw.shape[1]
    G = np.zeros((4, Hin * cin, Hout * cout), np.float32)
    for kw in range(4):
        for ho in range(Hout):
            for kh in range(4):
                h = 2 * ho + kh - 1
                if 0 <= h < Hin:
                    G[kw, h * cin:(h + 1) * cin, ho * cout:(ho + 1) * cout] = (
                        w_oihw[:, :, kh, kw].T)
    return G


def _channel_fold(Hout, cout):
    """M[ho*cout+co, co] = 1 — folds the (h, c) lane interleave to channels."""
    M = np.zeros((Hout * cout, cout), np.float32)
    for ho in range(Hout):
        for co in range(cout):
            M[ho * cout + co, co] = 1.0
    return M


def _final_mats(lin_w, B, Hf, Wf, Cf):
    """V3[h*Cf+c, w*O+o] = lin_w[o, c*Hf*Wf + h*Wf + w]  (NCHW flatten folded).
    Dmask matches slab row (b, w') to V3's width block w; Rfold folds the
    (w, o) lane groups to o; Bfold folds rows back to the batch index."""
    O = lin_w.shape[0]
    V3 = np.zeros((Hf * Cf, Wf * O), np.float32)
    for h in range(Hf):
        for c in range(Cf):
            for w in range(Wf):
                V3[h * Cf + c, w * O:(w + 1) * O] = lin_w[:, c * Hf * Wf + h * Wf + w]
    D = np.zeros((B * Wf, Wf * O), np.float32)
    for b in range(B):
        for w in range(Wf):
            D[b * Wf + w, w * O:(w + 1) * O] = 1.0
    R = np.zeros((Wf * O, O), np.float32)
    for w in range(Wf):
        for o in range(O):
            R[w * O + o, o] = 1.0
    Bf = np.zeros((B, B * Wf), np.float32)
    for b in range(B):
        Bf[b, b * Wf:(b + 1) * Wf] = 1.0
    return V3, D, R, Bf


def prepare_params(params):
    """One-time host-side preprocessing (outside the jitted forward).  0/1
    structural matrices are stored in bf16 (exact); real weights stay f32."""
    p = {k: np.asarray(jax.device_get(v)) for k, v in params.items()}
    bf16 = jnp.bfloat16

    # embedding weights, block-diagonal over batch so one matmul yields the
    # (B*W0, H0) slab with rows=(b, w) and lanes=h.
    ew_bd = np.zeros((BATCH * EMBED_DIM, BATCH * INPUT_SIZE), np.float32)
    eb_col = np.zeros((BATCH * EMBED_DIM, 1), np.float32)
    for b in range(BATCH):
        ew_bd[b * EMBED_DIM:(b + 1) * EMBED_DIM,
              b * INPUT_SIZE:(b + 1) * INPUT_SIZE] = p["emb_w"]
        eb_col[b * EMBED_DIM:(b + 1) * EMBED_DIM, 0] = p["emb_b"]
    prep = {"emb_w_bd": jnp.asarray(ew_bd), "emb_b_col": jnp.asarray(eb_col)}

    H, W = SEQ_LEN, EMBED_DIM
    for i in range(3):
        w = p[f"conv{i}_w"]                       # (Cout, Cin, 4, 4)
        cout = w.shape[0]
        Ho, Wo = _conv_out(H), _conv_out(W)
        prep[f"S{i}"] = jnp.asarray(_kw_select_mats(BATCH, W, Wo), dtype=bf16)
        prep[f"G{i}"] = jnp.asarray(_kh_gmats(w, H, Ho))
        M = _channel_fold(Ho, cout)
        prep[f"M{i}"] = jnp.asarray(M, dtype=bf16)
        prep[f"MT{i}"] = jnp.asarray(np.ascontiguousarray(M.T), dtype=bf16)
        prep[f"gamma{i}"] = jnp.asarray(p[f"bn{i}_g"].reshape(1, cout))
        prep[f"beta{i}"] = jnp.asarray(p[f"bn{i}_b"].reshape(1, cout))
        # conv{i}_b is intentionally unused: bias followed by batch-stat
        # BatchNorm cancels exactly in the mean subtraction.
        H, W = Ho, Wo
    V3, D, R, Bf = _final_mats(p["lin_w"], BATCH, H, W, 4 * FBASE)
    prep["V3"] = jnp.asarray(V3)
    prep["Dmask"] = jnp.asarray(D, dtype=bf16)
    prep["Rfold"] = jnp.asarray(R, dtype=bf16)
    prep["Bfold"] = jnp.asarray(Bf, dtype=bf16)
    prep["lin_b"] = jnp.asarray(p["lin_b"].reshape(1, -1))
    return prep


# ----------------------------- pure-JAX reference -----------------------------
def forward_reference(x, params):
    h = x @ params["emb_w"].T + params["emb_b"]           # (B, S, E)
    h = h[:, None, :, :]                                  # NCHW (B, 1, S, E)
    for i in range(3):
        w = params[f"conv{i}_w"]
        h = jax.lax.conv_general_dilated(
            h, w, window_strides=(2, 2), padding=((1, 1), (1, 1)),
            dimension_numbers=("NCHW", "OIHW", "NCHW"),
        )
        h = h + params[f"conv{i}_b"][None, :, None, None]
        mean = jnp.mean(h, axis=(0, 2, 3), keepdims=True)
        var = jnp.mean((h - mean) ** 2, axis=(0, 2, 3), keepdims=True)
        h = (h - mean) * jax.lax.rsqrt(var + BN_EPS)
        h = h * params[f"bn{i}_g"][None, :, None, None] + params[f"bn{i}_b"][None, :, None, None]
        h = jnp.maximum(h, 0.0)
    h = h.reshape(x.shape[0], -1)
    return h @ params["lin_w"].T + params["lin_b"]


# ----------------------------- params / main ----------------------------------
def make_params(key):
    ks = jax.random.split(key, 16)
    n = lambda k, s, sc=0.05: (jax.random.normal(k, s, jnp.float32) * sc)
    c1, c2, c3 = FBASE, FBASE * 2, FBASE * 4
    return {
        "emb_w": n(ks[0], (EMBED_DIM, INPUT_SIZE)),
        "emb_b": n(ks[1], (EMBED_DIM,)),
        "conv0_w": n(ks[2], (c1, 1, 4, 4)),
        "conv0_b": n(ks[3], (c1,)),
        "conv1_w": n(ks[4], (c2, c1, 4, 4)),
        "conv1_b": n(ks[5], (c2,)),
        "conv2_w": n(ks[6], (c3, c2, 4, 4)),
        "conv2_b": n(ks[7], (c3,)),
        "bn0_g": 1.0 + n(ks[8], (c1,)),
        "bn0_b": n(ks[9], (c1,)),
        "bn1_g": 1.0 + n(ks[10], (c2,)),
        "bn1_b": n(ks[11], (c2,)),
        "bn2_g": 1.0 + n(ks[12], (c3,)),
        "bn2_b": n(ks[13], (c3,)),
        "lin_w": n(ks[14], (OUTPUT_SIZE, LDIM)),
        "lin_b": n(ks[15], (OUTPUT_SIZE,)),
    }


if __name__ == "__main__":
    root = jax.random.PRNGKey(0)
    k_params, k_x = jax.random.split(root)
    params = make_params(k_params)
    prep = prepare_params(params)          # one-time, outside the jitted forward
    x = jax.random.normal(k_x, (BATCH, SEQ_LEN, INPUT_SIZE), jnp.float32)

    out = forward_pallas(x, prep)
    out = jax.block_until_ready(out)

    ref = jax.block_until_ready(forward_reference(x, params))
    assert out.shape == (BATCH, OUTPUT_SIZE), out.shape
    assert jnp.allclose(out, ref, atol=2e-3, rtol=2e-3), (
        float(jnp.max(jnp.abs(out - ref)))
    )
    print("KERNEL_OK")
</pallas_src>

<mosaic_0001>
module attributes {stable_mosaic.version = 11 : i64} {
  func.func @_encoder_kernel(%arg0: memref<32x24xf32, #tpu.memory_space<vmem>>, %arg1: memref<256x32xf32, #tpu.memory_space<vmem>>, %arg2: memref<256x1xf32, #tpu.memory_space<vmem>>, %arg3: memref<4x128x256xbf16, #tpu.memory_space<vmem>>, %arg4: memref<4x24x96xf32, #tpu.memory_space<vmem>>, %arg5: memref<96x8xbf16, #tpu.memory_space<vmem>>, %arg6: memref<8x96xbf16, #tpu.memory_space<vmem>>, %arg7: memref<1x8xf32, #tpu.memory_space<vmem>>, %arg8: memref<1x8xf32, #tpu.memory_space<vmem>>, %arg9: memref<4x64x128xbf16, #tpu.memory_space<vmem>>, %arg10: memref<4x96x96xf32, #tpu.memory_space<vmem>>, %arg11: memref<96x16xbf16, #tpu.memory_space<vmem>>, %arg12: memref<16x96xbf16, #tpu.memory_space<vmem>>, %arg13: memref<1x16xf32, #tpu.memory_space<vmem>>, %arg14: memref<1x16xf32, #tpu.memory_space<vmem>>, %arg15: memref<4x32x64xbf16, #tpu.memory_space<vmem>>, %arg16: memref<4x96x96xf32, #tpu.memory_space<vmem>>, %arg17: memref<96x32xbf16, #tpu.memory_space<vmem>>, %arg18: memref<32x96xbf16, #tpu.memory_space<vmem>>, %arg19: memref<1x32xf32, #tpu.memory_space<vmem>>, %arg20: memref<1x32xf32, #tpu.memory_space<vmem>>, %arg21: memref<96x128xf32, #tpu.memory_space<vmem>>, %arg22: memref<32x128xbf16, #tpu.memory_space<vmem>>, %arg23: memref<128x8xbf16, #tpu.memory_space<vmem>>, %arg24: memref<2x32xbf16, #tpu.memory_space<vmem>>, %arg25: memref<1x8xf32, #tpu.memory_space<vmem>>, %arg26: memref<2x8xf32, #tpu.memory_space<vmem>>) attributes {dimension_semantics = [], scalar_prefetch = 0 : i64, scratch_operands = 0 : i64, tpu.core_type = #tpu.core_type<tc>} {
    %c0 = arith.constant 0 : index
    %c0_0 = arith.constant 0 : index
    %0 = vector.load %arg1[%c0, %c0_0] : memref<256x32xf32, #tpu.memory_space<vmem>>, vector<256x32xf32>
    %c0_1 = arith.constant 0 : index
    %c0_2 = arith.constant 0 : index
    %1 = vector.load %arg0[%c0_1, %c0_2] : memref<32x24xf32, #tpu.memory_space<vmem>>, vector<32x24xf32>
    %cst = arith.constant dense<0.000000e+00> : vector<256x24xf32>
    %2 = tpu.matmul %0, %1, %cst {dimension_numbers = #tpu.dot_dimension_numbers<[1], [0], [0], [1], [0, 0, 1, 1], [], []>} : vector<256x32xf32>, vector<32x24xf32>, vector<256x24xf32> -> vector<256x24xf32>
    %c0_3 = arith.constant 0 : index
    %c0_4 = arith.constant 0 : index
    %3 = vector.load %arg2[%c0_3, %c0_4] : memref<256x1xf32, #tpu.memory_space<vmem>>, vector<256x1xf32>
    %4 = vector.broadcast %3 : vector<256x1xf32> to vector<256x24xf32>
    %5 = arith.addf %2, %4 : vector<256x24xf32>
    %cst_5 = arith.constant 0.000000e+00 : f32
    %6 = vector.broadcast %cst_5 : f32 to vector<128x96xf32>
    %c0_6 = arith.constant 0 : index
    %c0_7 = arith.constant 0 : index
    %c0_8 = arith.constant 0 : index
    %7 = vector.load %arg3[%c0_6, %c0_7, %c0_8] : memref<4x128x256xbf16, #tpu.memory_space<vmem>>, vector<1x128x256xbf16>
    %8 = vector.shape_cast %7 : vector<1x128x256xbf16> to vector<128x256xbf16>
    %9 = arith.extf %8 : vector<128x256xbf16> to vector<128x256xf32>
    %cst_9 = arith.constant dense<0.000000e+00> : vector<128x24xf32>
    %10 = tpu.matmul %9, %5, %cst_9 {dimension_numbers = #tpu.dot_dimension_numbers<[1], [0], [0], [1], [0, 0, 1, 1], [], []>} : vector<128x256xf32>, vector<256x24xf32>, vector<128x24xf32> -> vector<128x24xf32>
    %c0_10 = arith.constant 0 : index
    %c0_11 = arith.constant 0 : index
    %c0_12 = arith.constant 0 : index
    %11 = vector.load %arg4[%c0_10, %c0_11, %c0_12] : memref<4x24x96xf32, #tpu.memory_space<vmem>>, vector<1x24x96xf32>
    %12 = vector.shape_cast %11 : vector<1x24x96xf32> to vector<24x96xf32>
    %cst_13 = arith.constant dense<0.000000e+00> : vector<128x96xf32>
    %13 = tpu.matmul %10, %12, %cst_13 {dimension_numbers = #tpu.dot_dimension_numbers<[1], [0], [0], [1], [0, 0, 1, 1], [], []>} : vector<128x24xf32>, vector<24x96xf32>, vector<128x96xf32> -> vector<128x96xf32>
    %14 = arith.addf %6, %13 : vector<128x96xf32>
    %c1 = arith.constant 1 : index
    %c0_14 = arith.constant 0 : index
    %c0_15 = arith.constant 0 : index
    %15 = vector.load %arg3[%c1, %c0_14, %c0_15] : memref<4x128x256xbf16, #tpu.memory_space<vmem>>, vector<1x128x256xbf16>
    %16 = vector.shape_cast %15 : vector<1x128x256xbf16> to vector<128x256xbf16>
    %17 = arith.extf %16 : vector<128x256xbf16> to vector<128x256xf32>
    %cst_16 = arith.constant dense<0.000000e+00> : vector<128x24xf32>
    %18 = tpu.matmul %17, %5, %cst_16 {dimension_numbers = #tpu.dot_dimension_numbers<[1], [0], [0], [1], [0, 0, 1, 1], [], []>} : vector<128x256xf32>, vector<256x24xf32>, vector<128x24xf32> -> vector<128x24xf32>
    %c1_17 = arith.constant 1 : index
    %c0_18 = arith.constant 0 : index
    %c0_19 = arith.constant 0 : index
    %19 = vector.load %arg4[%c1_17, %c0_18, %c0_19] : memref<4x24x96xf32, #tpu.memory_space<vmem>>, vector<1x24x96xf32>
    %20 = vector.shape_cast %19 : vector<1x24x96xf32> to vector<24x96xf32>
    %cst_20 = arith.constant dense<0.000000e+00> : vector<128x96xf32>
    %21 = tpu.matmul %18, %20, %cst_20 {dimension_numbers = #tpu.dot_dimension_numbers<[1], [0], [0], [1], [0, 0, 1, 1], [], []>} : vector<128x24xf32>, vector<24x96xf32>, vector<128x96xf32> -> vector<128x96xf32>
    %22 = arith.addf %14, %21 : vector<128x96xf32>
    %c2 = arith.constant 2 : index
    %c0_21 = arith.constant 0 : index
    %c0_22 = arith.constant 0 : index
    %23 = vector.load %arg3[%c2, %c0_21, %c0_22] : memref<4x128x256xbf16, #tpu.memory_space<vmem>>, vector<1x128x256xbf16>
    %24 = vector.shape_cast %23 : vector<1x128x256xbf16> to vector<128x256xbf16>
    %25 = arith.extf %24 : vector<128x256xbf16> to vector<128x256xf32>
    %cst_23 = arith.constant dense<0.000000e+00> : vector<128x24xf32>
    %26 = tpu.matmul %25, %5, %cst_23 {dimension_numbers = #tpu.dot_dimension_numbers<[1], [0], [0], [1], [0, 0, 1, 1], [], []>} : vector<128x256xf32>, vector<256x24xf32>, vector<128x24xf32> -> vector<128x24xf32>
    %c2_24 = arith.constant 2 : index
    %c0_25 = arith.constant 0 : index
    %c0_26 = arith.constant 0 : index
    %27 = vector.load %arg4[%c2_24, %c0_25, %c0_26] : memref<4x24x96xf32, #tpu.memory_space<vmem>>, vector<1x24x96xf32>
    %28 = vector.shape_cast %27 : vector<1x24x96xf32> to vector<24x96xf32>
    %cst_27 = arith.constant dense<0.000000e+00> : vector<128x96xf32>
    %29 = tpu.matmul %26, %28, %cst_27 {dimension_numbers = #tpu.dot_dimension_numbers<[1], [0], [0], [1], [0, 0, 1, 1], [], []>} : vector<128x24xf32>, vector<24x96xf32>, vector<128x96xf32> -> vector<128x96xf32>
    %30 = arith.addf %22, %29 : vector<128x96xf32>
    %c3 = arith.constant 3 : index
    %c0_28 = arith.constant 0 : index
    %c0_29 = arith.constant 0 : index
    %31 = vector.load %arg3[%c3, %c0_28, %c0_29] : memref<4x128x256xbf16, #tpu.memory_space<vmem>>, vector<1x128x256xbf16>
    %32 = vector.shape_cast %31 : vector<1x128x256xbf16> to vector<128x256xbf16>
    %33 = arith.extf %32 : vector<128x256xbf16> to vector<128x256xf32>
    %cst_30 = arith.constant dense<0.000000e+00> : vector<128x24xf32>
    %34 = tpu.matmul %33, %5, %cst_30 {dimension_numbers = #tpu.dot_dimension_numbers<[1], [0], [0], [1], [0, 0, 1, 1], [], []>} : vector<128x256xf32>, vector<256x24xf32>, vector<128x24xf32> -> vector<128x24xf32>
    %c3_31 = arith.constant 3 : index
    %c0_32 = arith.constant 0 : index
    %c0_33 = arith.constant 0 : index
    %35 = vector.load %arg4[%c3_31, %c0_32, %c0_33] : memref<4x24x96xf32, #tpu.memory_space<vmem>>, vector<1x24x96xf32>
    %36 = vector.shape_cast %35 : vector<1x24x96xf32> to vector<24x96xf32>
    %cst_34 = arith.constant dense<0.000000e+00> : vector<128x96xf32>
    %37 = tpu.matmul %34, %36, %cst_34 {dimension_numbers = #tpu.dot_dimension_numbers<[1], [0], [0], [1], [0, 0, 1, 1], [], []>} : vector<128x24xf32>, vector<24x96xf32>, vector<128x96xf32> -> vector<128x96xf32>
    %38 = arith.addf %30, %37 : vector<128x96xf32>
    %c0_35 = arith.constant 0 : index
    %c0_36 = arith.constant 0 : index
    %39 = vector.load %arg5[%c0_35, %c0_36] : memref<96x8xbf16, #tpu.memory_space<vmem>>, vector<96x8xbf16>
    %40 = arith.extf %39 : vector<96x8xbf16> to vector<96x8xf32>
    %cst_37 = arith.constant dense<0.000000e+00> : vector<96xf32>
    %41 = vector.multi_reduction <add>, %38, %cst_37 [0] : vector<128x96xf32> to vector<96xf32>
    %42 = vector.shape_cast %41 : vector<96xf32> to vector<1x96xf32>
    %cst_38 = arith.constant dense<0.000000e+00> : vector<1x8xf32>
    %43 = tpu.matmul %42, %40, %cst_38 {dimension_numbers = #tpu.dot_dimension_numbers<[1], [0], [0], [1], [0, 0, 1, 1], [], []>} : vector<1x96xf32>, vector<96x8xf32>, vector<1x8xf32> -> vector<1x8xf32>
    %44 = arith.mulf %38, %38 : vector<128x96xf32>
    %cst_39 = arith.constant dense<0.000000e+00> : vector<96xf32>
    %45 = vector.multi_reduction <add>, %44, %cst_39 [0] : vector<128x96xf32> to vector<96xf32>
    %46 = vector.shape_cast %45 : vector<96xf32> to vector<1x96xf32>
    %cst_40 = arith.constant dense<0.000000e+00> : vector<1x8xf32>
    %47 = tpu.matmul %46, %40, %cst_40 {dimension_numbers = #tpu.dot_dimension_numbers<[1], [0], [0], [1], [0, 0, 1, 1], [], []>} : vector<1x96xf32>, vector<96x8xf32>, vector<1x8xf32> -> vector<1x8xf32>
    %cst_41 = arith.constant 6.51041686E-4 : f32
    %48 = vector.broadcast %cst_41 : f32 to vector<1x8xf32>
    %49 = arith.mulf %43, %48 : vector<1x8xf32>
    %cst_42 = arith.constant 6.51041686E-4 : f32
    %50 = vector.broadcast %cst_42 : f32 to vector<1x8xf32>
    %51 = arith.mulf %47, %50 : vector<1x8xf32>
    %52 = arith.mulf %49, %49 : vector<1x8xf32>
    %53 = arith.subf %51, %52 : vector<1x8xf32>
    %cst_43 = arith.constant 0.000000e+00 : f32
    %54 = vector.broadcast %cst_43 : f32 to vector<1x8xf32>
    %55 = arith.maximumf %53, %54 : vector<1x8xf32>
    %c0_44 = arith.constant 0 : index
    %c0_45 = arith.constant 0 : index
    %56 = vector.load %arg7[%c0_44, %c0_45] : memref<1x8xf32, #tpu.memory_space<vmem>>, vector<1x8xf32>
    %cst_46 = arith.constant 9.99999974E-6 : f32
    %57 = vector.broadcast %cst_46 : f32 to vector<1x8xf32>
    %58 = arith.addf %55, %57 : vector<1x8xf32>
    %59 = math.rsqrt %58 : vector<1x8xf32>
    %60 = arith.mulf %56, %59 : vector<1x8xf32>
    %c0_47 = arith.constant 0 : index
    %c0_48 = arith.constant 0 : index
    %61 = vector.load %arg8[%c0_47, %c0_48] : memref<1x8xf32, #tpu.memory_space<vmem>>, vector<1x8xf32>
    %62 = arith.mulf %49, %60 : vector<1x8xf32>
    %63 = arith.subf %61, %62 : vector<1x8xf32>
    %c0_49 = arith.constant 0 : index
    %c0_50 = arith.constant 0 : index
    %64 = vector.load %arg6[%c0_49, %c0_50] : memref<8x96xbf16, #tpu.memory_space<vmem>>, vector<8x96xbf16>
    %65 = arith.extf %64 : vector<8x96xbf16> to vector<8x96xf32>
    %cst_51 = arith.constant dense<0.000000e+00> : vector<1x96xf32>
    %66 = tpu.matmul %60, %65, %cst_51 {dimension_numbers = #tpu.dot_dimension_numbers<[1], [0], [0], [1], [0, 0, 1, 1], [], []>} : vector<1x8xf32>, vector<8x96xf32>, vector<1x96xf32> -> vector<1x96xf32>
    %cst_52 = arith.constant dense<0.000000e+00> : vector<1x96xf32>
    %67 = tpu.matmul %63, %65, %cst_52 {dimension_numbers = #tpu.dot_dimension_numbers<[1], [0], [0], [1], [0, 0, 1, 1], [], []>} : vector<1x8xf32>, vector<8x96xf32>, vector<1x96xf32> -> vector<1x96xf32>
    %68 = vector.broadcast %66 : vector<1x96xf32> to vector<128x96xf32>
    %69 = arith.mulf %38, %68 : vector<128x96xf32>
    %70 = vector.broadcast %67 : vector<1x96xf32> to vector<128x96xf32>
    %71 = arith.addf %69, %70 : vector<128x96xf32>
    %cst_53 = arith.constant 0.000000e+00 : f32
    %72 = vector.broadcast %cst_53 : f32 to vector<128x96xf32>
    %73 = arith.maximumf %71, %72 : vector<128x96xf32>
    %cst_54 = arith.constant 0.000000e+00 : f32
    %74 = vector.broadcast %cst_54 : f32 to vector<64x96xf32>
    %c0_55 = arith.constant 0 : index
    %c0_56 = arith.constant 0 : index
    %c0_57 = arith.constant 0 : index
    %75 = vector.load %arg9[%c0_55, %c0_56, %c0_57] : memref<4x64x128xbf16, #tpu.memory_space<vmem>>, vector<1x64x128xbf16>
    %76 = vector.shape_cast %75 : vector<1x64x128xbf16> to vector<64x128xbf16>
    %77 = arith.extf %76 : vector<64x128xbf16> to vector<64x128xf32>
    %cst_58 = arith.constant dense<0.000000e+00> : vector<64x96xf32>
    %78 = tpu.matmul %77, %73, %cst_58 {dimension_numbers = #tpu.dot_dimension_numbers<[1], [0], [0], [1], [0, 0, 1, 1], [], []>} : vector<64x128xf32>, vector<128x96xf32>, vector<64x96xf32> -> vector<64x96xf32>
    %c0_59 = arith.constant 0 : index
    %c0_60 = arith.constant 0 : index
    %c0_61 = arith.constant 0 : index
    %79 = vector.load %arg10[%c0_59, %c0_60, %c0_61] : memref<4x96x96xf32, #tpu.memory_space<vmem>>, vector<1x96x96xf32>
    %80 = vector.shape_cast %79 : vector<1x96x96xf32> to vector<96x96xf32>
    %cst_62 = arith.constant dense<0.000000e+00> : vector<64x96xf32>
    %81 = tpu.matmul %78, %80, %cst_62 {dimension_numbers = #tpu.dot_dimension_numbers<[1], [0], [0], [1], [0, 0, 1, 1], [], []>} : vector<64x96xf32>, vector<96x96xf32>, vector<64x96xf32> -> vector<64x96xf32>
    %82 = arith.addf %74, %81 : vector<64x96xf32>
    %c1_63 = arith.constant 1 : index
    %c0_64 = arith.constant 0 : index
    %c0_65 = arith.constant 0 : index
    %83 = vector.load %arg9[%c1_63, %c0_64, %c0_65] : memref<4x64x128xbf16, #tpu.memory_space<vmem>>, vector<1x64x128xbf16>
    %84 = vector.shape_cast %83 : vector<1x64x128xbf16> to vector<64x128xbf16>
    %85 = arith.extf %84 : vector<64x128xbf16> to vector<64x128xf32>
    %cst_66 = arith.constant dense<0.000000e+00> : vector<64x96xf32>
    %86 = tpu.matmul %85, %73, %cst_66 {dimension_numbers = #tpu.dot_dimension_numbers<[1], [0], [0], [1], [0, 0, 1, 1], [], []>} : vector<64x128xf32>, vector<128x96xf32>, vector<64x96xf32> -> vector<64x96xf32>
    %c1_67 = arith.constant 1 : index
    %c0_68 = arith.constant 0 : index
    %c0_69 = arith.constant 0 : index
    %87 = vector.load %arg10[%c1_67, %c0_68, %c0_69] : memref<4x96x96xf32, #tpu.memory_space<vmem>>, vector<1x96x96xf32>
    %88 = vector.shape_cast %87 : vector<1x96x96xf32> to vector<96x96xf32>
    %cst_70 = arith.constant dense<0.000000e+00> : vector<64x96xf32>
    %89 = tpu.matmul %86, %88, %cst_70 {dimension_numbers = #tpu.dot_dimension_numbers<[1], [0], [0], [1], [0, 0, 1, 1], [], []>} : vector<64x96xf32>, vector<96x96xf32>, vector<64x96xf32> -> vector<64x96xf32>
    %90 = arith.addf %82, %89 : vector<64x96xf32>
    %c2_71 = arith.constant 2 : index
    %c0_72 = arith.constant 0 : index
    %c0_73 = arith.constant 0 : index
    %91 = vector.load %arg9[%c2_71, %c0_72, %c0_73] : memref<4x64x128xbf16, #tpu.memory_space<vmem>>, vector<1x64x128xbf16>
    %92 = vector.shape_cast %91 : vector<1x64x128xbf16> to vector<64x128xbf16>
    %93 = arith.extf %92 : vector<64x128xbf16> to vector<64x128xf32>
    %cst_74 = arith.constant dense<0.000000e+00> : vector<64x96xf32>
    %94 = tpu.matmul %93, %73, %cst_74 {dimension_numbers = #tpu.dot_dimension_numbers<[1], [0], [0], [1], [0, 0, 1, 1], [], []>} : vector<64x128xf32>, vector<128x96xf32>, vector<64x96xf32> -> vector<64x96xf32>
    %c2_75 = arith.constant 2 : index
    %c0_76 = arith.constant 0 : index
    %c0_77 = arith.constant 0 : index
    %95 = vector.load %arg10[%c2_75, %c0_76, %c0_77] : memref<4x96x96xf32, #tpu.memory_space<vmem>>, vector<1x96x96xf32>
    %96 = vector.shape_cast %95 : vector<1x96x96xf32> to vector<96x96xf32>
    %cst_78 = arith.constant dense<0.000000e+00> : vector<64x96xf32>
    %97 = tpu.matmul %94, %96, %cst_78 {dimension_numbers = #tpu.dot_dimension_numbers<[1], [0], [0], [1], [0, 0, 1, 1], [], []>} : vector<64x96xf32>, vector<96x96xf32>, vector<64x96xf32> -> vector<64x96xf32>
    %98 = arith.addf %90, %97 : vector<64x96xf32>
    %c3_79 = arith.constant 3 : index
    %c0_80 = arith.constant 0 : index
    %c0_81 = arith.constant 0 : index
    %99 = vector.load %arg9[%c3_79, %c0_80, %c0_81] : memref<4x64x128xbf16, #tpu.memory_space<vmem>>, vector<1x64x128xbf16>
    %100 = vector.shape_cast %99 : vector<1x64x128xbf16> to vector<64x128xbf16>
    %101 = arith.extf %100 : vector<64x128xbf16> to vector<64x128xf32>
    %cst_82 = arith.constant dense<0.000000e+00> : vector<64x96xf32>
    %102 = tpu.matmul %101, %73, %cst_82 {dimension_numbers = #tpu.dot_dimension_numbers<[1], [0], [0], [1], [0, 0, 1, 1], [], []>} : vector<64x128xf32>, vector<128x96xf32>, vector<64x96xf32> -> vector<64x96xf32>
    %c3_83 = arith.constant 3 : index
    %c0_84 = arith.constant 0 : index
    %c0_85 = arith.constant 0 : index
    %103 = vector.load %arg10[%c3_83, %c0_84, %c0_85] : memref<4x96x96xf32, #tpu.memory_space<vmem>>, vector<1x96x96xf32>
    %104 = vector.shape_cast %103 : vector<1x96x96xf32> to vector<96x96xf32>
    %cst_86 = arith.constant dense<0.000000e+00> : vector<64x96xf32>
    %105 = tpu.matmul %102, %104, %cst_86 {dimension_numbers = #tpu.dot_dimension_numbers<[1], [0], [0], [1], [0, 0, 1, 1], [], []>} : vector<64x96xf32>, vector<96x96xf32>, vector<64x96xf32> -> vector<64x96xf32>
    %106 = arith.addf %98, %105 : vector<64x96xf32>
    %c0_87 = arith.constant 0 : index
    %c0_88 = arith.constant 0 : index
    %107 = vector.load %arg11[%c0_87, %c0_88] : memref<96x16xbf16, #tpu.memory_space<vmem>>, vector<96x16xbf16>
    %108 = arith.extf %107 : vector<96x16xbf16> to vector<96x16xf32>
    %cst_89 = arith.constant dense<0.000000e+00> : vector<96xf32>
    %109 = vector.multi_reduction <add>, %106, %cst_89 [0] : vector<64x96xf32> to vector<96xf32>
    %110 = vector.shape_cast %109 : vector<96xf32> to vector<1x96xf32>
    %cst_90 = arith.constant dense<0.000000e+00> : vector<1x16xf32>
    %111 = tpu.matmul %110, %108, %cst_90 {dimension_numbers = #tpu.dot_dimension_numbers<[1], [0], [0], [1], [0, 0, 1, 1], [], []>} : vector<1x96xf32>, vector<96x16xf32>, vector<1x16xf32> -> vector<1x16xf32>
    %112 = arith.mulf %106, %106 : vector<64x96xf32>
    %cst_91 = arith.constant dense<0.000000e+00> : vector<96xf32>
    %113 = vector.multi_reduction <add>, %112, %cst_91 [0] : vector<64x96xf32> to vector<96xf32>
    %114 = vector.shape_cast %113 : vector<96xf32> to vector<1x96xf32>
    %cst_92 = arith.constant dense<0.000000e+00> : vector<1x16xf32>
    %115 = tpu.matmul %114, %108, %cst_92 {dimension_numbers = #tpu.dot_dimension_numbers<[1], [0], [0], [1], [0, 0, 1, 1], [], []>} : vector<1x96xf32>, vector<96x16xf32>, vector<1x16xf32> -> vector<1x16xf32>
    %cst_93 = arith.constant 0.00260416674 : f32
    %116 = vector.broadcast %cst_93 : f32 to vector<1x16xf32>
    %117 = arith.mulf %111, %116 : vector<1x16xf32>
    %cst_94 = arith.constant 0.00260416674 : f32
    %118 = vector.broadcast %cst_94 : f32 to vector<1x16xf32>
    %119 = arith.mulf %115, %118 : vector<1x16xf32>
    %120 = arith.mulf %117, %117 : vector<1x16xf32>
    %121 = arith.subf %119, %120 : vector<1x16xf32>
    %cst_95 = arith.constant 0.000000e+00 : f32
    %122 = vector.broadcast %cst_95 : f32 to vector<1x16xf32>
    %123 = arith.maximumf %121, %122 : vector<1x16xf32>
    %c0_96 = arith.constant 0 : index
    %c0_97 = arith.constant 0 : index
    %124 = vector.load %arg13[%c0_96, %c0_97] : memref<1x16xf32, #tpu.memory_space<vmem>>, vector<1x16xf32>
    %cst_98 = arith.constant 9.99999974E-6 : f32
    %125 = vector.broadcast %cst_98 : f32 to vector<1x16xf32>
    %126 = arith.addf %123, %125 : vector<1x16xf32>
    %127 = math.rsqrt %126 : vector<1x16xf32>
    %128 = arith.mulf %124, %127 : vector<1x16xf32>
    %c0_99 = arith.constant 0 : index
    %c0_100 = arith.constant 0 : index
    %129 = vector.load %arg14[%c0_99, %c0_100] : memref<1x16xf32, #tpu.memory_space<vmem>>, vector<1x16xf32>
    %130 = arith.mulf %117, %128 : vector<1x16xf32>
    %131 = arith.subf %129, %130 : vector<1x16xf32>
    %c0_101 = arith.constant 0 : index
    %c0_102 = arith.constant 0 : index
    %132 = vector.load %arg12[%c0_101, %c0_102] : memref<16x96xbf16, #tpu.memory_space<vmem>>, vector<16x96xbf16>
    %133 = arith.extf %132 : vector<16x96xbf16> to vector<16x96xf32>
    %cst_103 = arith.constant dense<0.000000e+00> : vector<1x96xf32>
    %134 = tpu.matmul %128, %133, %cst_103 {dimension_numbers = #tpu.dot_dimension_numbers<[1], [0], [0], [1], [0, 0, 1, 1], [], []>} : vector<1x16xf32>, vector<16x96xf32>, vector<1x96xf32> -> vector<1x96xf32>
    %cst_104 = arith.constant dense<0.000000e+00> : vector<1x96xf32>
    %135 = tpu.matmul %131, %133, %cst_104 {dimension_numbers = #tpu.dot_dimension_numbers<[1], [0], [0], [1], [0, 0, 1, 1], [], []>} : vector<1x16xf32>, vector<16x96xf32>, vector<1x96xf32> -> vector<1x96xf32>
    %136 = vector.broadcast %134 : vector<1x96xf32> to vector<64x96xf32>
    %137 = arith.mulf %106, %136 : vector<64x96xf32>
    %138 = vector.broadcast %135 : vector<1x96xf32> to vector<64x96xf32>
    %139 = arith.addf %137, %138 : vector<64x96xf32>
    %cst_105 = arith.constant 0.000000e+00 : f32
    %140 = vector.broadcast %cst_105 : f32 to vector<64x96xf32>
    %141 = arith.maximumf %139, %140 : vector<64x96xf32>
    %cst_106 = arith.constant 0.000000e+00 : f32
    %142 = vector.broadcast %cst_106 : f32 to vector<32x96xf32>
    %c0_107 = arith.constant 0 : index
    %c0_108 = arith.constant 0 : index
    %c0_109 = arith.constant 0 : index
    %143 = vector.load %arg15[%c0_107, %c0_108, %c0_109] : memref<4x32x64xbf16, #tpu.memory_space<vmem>>, vector<1x32x64xbf16>
    %144 = vector.shape_cast %143 : vector<1x32x64xbf16> to vector<32x64xbf16>
    %145 = arith.extf %144 : vector<32x64xbf16> to vector<32x64xf32>
    %cst_110 = arith.constant dense<0.000000e+00> : vector<32x96xf32>
    %146 = tpu.matmul %145, %141, %cst_110 {dimension_numbers = #tpu.dot_dimension_numbers<[1], [0], [0], [1], [0, 0, 1, 1], [], []>} : vector<32x64xf32>, vector<64x96xf32>, vector<32x96xf32> -> vector<32x96xf32>
    %c0_111 = arith.constant 0 : index
    %c0_112 = arith.constant 0 : index
    %c0_113 = arith.constant 0 : index
    %147 = vector.load %arg16[%c0_111, %c0_112, %c0_113] : memref<4x96x96xf32, #tpu.memory_space<vmem>>, vector<1x96x96xf32>
    %148 = vector.shape_cast %147 : vector<1x96x96xf32> to vector<96x96xf32>
    %cst_114 = arith.constant dense<0.000000e+00> : vector<32x96xf32>
    %149 = tpu.matmul %146, %148, %cst_114 {dimension_numbers = #tpu.dot_dimension_numbers<[1], [0], [0], [1], [0, 0, 1, 1], [], []>} : vector<32x96xf32>, vector<96x96xf32>, vector<32x96xf32> -> vector<32x96xf32>
    %150 = arith.addf %142, %149 : vector<32x96xf32>
    %c1_115 = arith.constant 1 : index
    %c0_116 = arith.constant 0 : index
    %c0_117 = arith.constant 0 : index
    %151 = vector.load %arg15[%c1_115, %c0_116, %c0_117] : memref<4x32x64xbf16, #tpu.memory_space<vmem>>, vector<1x32x64xbf16>
    %152 = vector.shape_cast %151 : vector<1x32x64xbf16> to vector<32x64xbf16>
    %153 = arith.extf %152 : vector<32x64xbf16> to vector<32x64xf32>
    %cst_118 = arith.constant dense<0.000000e+00> : vector<32x96xf32>
    %154 = tpu.matmul %153, %141, %cst_118 {dimension_numbers = #tpu.dot_dimension_numbers<[1], [0], [0], [1], [0, 0, 1, 1], [], []>} : vector<32x64xf32>, vector<64x96xf32>, vector<32x96xf32> -> vector<32x96xf32>
    %c1_119 = arith.constant 1 : index
    %c0_120 = arith.constant 0 : index
    %c0_121 = arith.constant 0 : index
    %155 = vector.load %arg16[%c1_119, %c0_120, %c0_121] : memref<4x96x96xf32, #tpu.memory_space<vmem>>, vector<1x96x96xf32>
    %156 = vector.shape_cast %155 : vector<1x96x96xf32> to vector<96x96xf32>
    %cst_122 = arith.constant dense<0.000000e+00> : vector<32x96xf32>
    %157 = tpu.matmul %154, %156, %cst_122 {dimension_numbers = #tpu.dot_dimension_numbers<[1], [0], [0], [1], [0, 0, 1, 1], [], []>} : vector<32x96xf32>, vector<96x96xf32>, vector<32x96xf32> -> vector<32x96xf32>
    %158 = arith.addf %150, %157 : vector<32x96xf32>
    %c2_123 = arith.constant 2 : index
    %c0_124 = arith.constant 0 : index
    %c0_125 = arith.constant 0 : index
    %159 = vector.load %arg15[%c2_123, %c0_124, %c0_125] : memref<4x32x64xbf16, #tpu.memory_space<vmem>>, vector<1x32x64xbf16>
    %160 = vector.shape_cast %159 : vector<1x32x64xbf16> to vector<32x64xbf16>
    %161 = arith.extf %160 : vector<32x64xbf16> to vector<32x64xf32>
    %cst_126 = arith.constant dense<0.000000e+00> : vector<32x96xf32>
    %162 = tpu.matmul %161, %141, %cst_126 {dimension_numbers = #tpu.dot_dimension_numbers<[1], [0], [0], [1], [0, 0, 1, 1], [], []>} : vector<32x64xf32>, vector<64x96xf32>, vector<32x96xf32> -> vector<32x96xf32>
    %c2_127 = arith.constant 2 : index
    %c0_128 = arith.constant 0 : index
    %c0_129 = arith.constant 0 : index
    %163 = vector.load %arg16[%c2_127, %c0_128, %c0_129] : memref<4x96x96xf32, #tpu.memory_space<vmem>>, vector<1x96x96xf32>
    %164 = vector.shape_cast %163 : vector<1x96x96xf32> to vector<96x96xf32>
    %cst_130 = arith.constant dense<0.000000e+00> : vector<32x96xf32>
    %165 = tpu.matmul %162, %164, %cst_130 {dimension_numbers = #tpu.dot_dimension_numbers<[1], [0], [0], [1], [0, 0, 1, 1], [], []>} : vector<32x96xf32>, vector<96x96xf32>, vector<32x96xf32> -> vector<32x96xf32>
    %166 = arith.addf %158, %165 : vector<32x96xf32>
    %c3_131 = arith.constant 3 : index
    %c0_132 = arith.constant 0 : index
    %c0_133 = arith.constant 0 : index
    %167 = vector.load %arg15[%c3_131, %c0_132, %c0_133] : memref<4x32x64xbf16, #tpu.memory_space<vmem>>, vector<1x32x64xbf16>
    %168 = vector.shape_cast %167 : vector<1x32x64xbf16> to vector<32x64xbf16>
    %169 = arith.extf %168 : vector<32x64xbf16> to vector<32x64xf32>
    %cst_134 = arith.constant dense<0.000000e+00> : vector<32x96xf32>
    %170 = tpu.matmul %169, %141, %cst_134 {dimension_numbers = #tpu.dot_dimension_numbers<[1], [0], [0], [1], [0, 0, 1, 1], [], []>} : vector<32x64xf32>, vector<64x96xf32>, vector<32x96xf32> -> vector<32x96xf32>
    %c3_135 = arith.constant 3 : index
    %c0_136 = arith.constant 0 : index
    %c0_137 = arith.constant 0 : index
    %171 = vector.load %arg16[%c3_135, %c0_136, %c0_137] : memref<4x96x96xf32, #tpu.memory_space<vmem>>, vector<1x96x96xf32>
    %172 = vector.shape_cast %171 : vector<1x96x96xf32> to vector<96x96xf32>
    %cst_138 = arith.constant dense<0.000000e+00> : vector<32x96xf32>
    %173 = tpu.matmul %170, %172, %cst_138 {dimension_numbers = #tpu.dot_dimension_numbers<[1], [0], [0], [1], [0, 0, 1, 1], [], []>} : vector<32x96xf32>, vector<96x96xf32>, vector<32x96xf32> -> vector<32x96xf32>
    %174 = arith.addf %166, %173 : vector<32x96xf32>
    %c0_139 = arith.constant 0 : index
    %c0_140 = arith.constant 0 : index
    %175 = vector.load %arg17[%c0_139, %c0_140] : memref<96x32xbf16, #tpu.memory_space<vmem>>, vector<96x32xbf16>
    %176 = arith.extf %175 : vector<96x32xbf16> to vector<96x32xf32>
    %cst_141 = arith.constant dense<0.000000e+00> : vector<96xf32>
    %177 = vector.multi_reduction <add>, %174, %cst_141 [0] : vector<32x96xf32> to vector<96xf32>
    %178 = vector.shape_cast %177 : vector<96xf32> to vector<1x96xf32>
    %cst_142 = arith.constant dense<0.000000e+00> : vector<1x32xf32>
    %179 = tpu.matmul %178, %176, %cst_142 {dimension_numbers = #tpu.dot_dimension_numbers<[1], [0], [0], [1], [0, 0, 1, 1], [], []>} : vector<1x96xf32>, vector<96x32xf32>, vector<1x32xf32> -> vector<1x32xf32>
    %180 = arith.mulf %174, %174 : vector<32x96xf32>
    %cst_143 = arith.constant dense<0.000000e+00> : vector<96xf32>
    %181 = vector.multi_reduction <add>, %180, %cst_143 [0] : vector<32x96xf32> to vector<96xf32>
    %182 = vector.shape_cast %181 : vector<96xf32> to vector<1x96xf32>
    %cst_144 = arith.constant dense<0.000000e+00> : vector<1x32xf32>
    %183 = tpu.matmul %182, %176, %cst_144 {dimension_numbers = #tpu.dot_dimension_numbers<[1], [0], [0], [1], [0, 0, 1, 1], [], []>} : vector<1x96xf32>, vector<96x32xf32>, vector<1x32xf32> -> vector<1x32xf32>
    %cst_145 = arith.constant 0.010416667 : f32
    %184 = vector.broadcast %cst_145 : f32 to vector<1x32xf32>
    %185 = arith.mulf %179, %184 : vector<1x32xf32>
    %cst_146 = arith.constant 0.010416667 : f32
    %186 = vector.broadcast %cst_146 : f32 to vector<1x32xf32>
    %187 = arith.mulf %183, %186 : vector<1x32xf32>
    %188 = arith.mulf %185, %185 : vector<1x32xf32>
    %189 = arith.subf %187, %188 : vector<1x32xf32>
    %cst_147 = arith.constant 0.000000e+00 : f32
    %190 = vector.broadcast %cst_147 : f32 to vector<1x32xf32>
    %191 = arith.maximumf %189, %190 : vector<1x32xf32>
    %c0_148 = arith.constant 0 : index
    %c0_149 = arith.constant 0 : index
    %192 = vector.load %arg19[%c0_148, %c0_149] : memref<1x32xf32, #tpu.memory_space<vmem>>, vector<1x32xf32>
    %cst_150 = arith.constant 9.99999974E-6 : f32
    %193 = vector.broadcast %cst_150 : f32 to vector<1x32xf32>
    %194 = arith.addf %191, %193 : vector<1x32xf32>
    %195 = math.rsqrt %194 : vector<1x32xf32>
    %196 = arith.mulf %192, %195 : vector<1x32xf32>
    %c0_151 = arith.constant 0 : index
    %c0_152 = arith.constant 0 : index
    %197 = vector.load %arg20[%c0_151, %c0_152] : memref<1x32xf32, #tpu.memory_space<vmem>>, vector<1x32xf32>
    %198 = arith.mulf %185, %196 : vector<1x32xf32>
    %199 = arith.subf %197, %198 : vector<1x32xf32>
    %c0_153 = arith.constant 0 : index
    %c0_154 = arith.constant 0 : index
    %200 = vector.load %arg18[%c0_153, %c0_154] : memref<32x96xbf16, #tpu.memory_space<vmem>>, vector<32x96xbf16>
    %201 = arith.extf %200 : vector<32x96xbf16> to vector<32x96xf32>
    %cst_155 = arith.constant dense<0.000000e+00> : vector<1x96xf32>
    %202 = tpu.matmul %196, %201, %cst_155 {dimension_numbers = #tpu.dot_dimension_numbers<[1], [0], [0], [1], [0, 0, 1, 1], [], []>} : vector<1x32xf32>, vector<32x96xf32>, vector<1x96xf32> -> vector<1x96xf32>
    %cst_156 = arith.constant dense<0.000000e+00> : vector<1x96xf32>
    %203 = tpu.matmul %199, %201, %cst_156 {dimension_numbers = #tpu.dot_dimension_numbers<[1], [0], [0], [1], [0, 0, 1, 1], [], []>} : vector<1x32xf32>, vector<32x96xf32>, vector<1x96xf32> -> vector<1x96xf32>
    %204 = vector.broadcast %202 : vector<1x96xf32> to vector<32x96xf32>
    %205 = arith.mulf %174, %204 : vector<32x96xf32>
    %206 = vector.broadcast %203 : vector<1x96xf32> to vector<32x96xf32>
    %207 = arith.addf %205, %206 : vector<32x96xf32>
    %cst_157 = arith.constant 0.000000e+00 : f32
    %208 = vector.broadcast %cst_157 : f32 to vector<32x96xf32>
    %209 = arith.maximumf %207, %208 : vector<32x96xf32>
    %c0_158 = arith.constant 0 : index
    %c0_159 = arith.constant 0 : index
    %210 = vector.load %arg21[%c0_158, %c0_159] : memref<96x128xf32, #tpu.memory_space<vmem>>, vector<96x128xf32>
    %cst_160 = arith.constant dense<0.000000e+00> : vector<32x128xf32>
    %211 = tpu.matmul %209, %210, %cst_160 {dimension_numbers = #tpu.dot_dimension_numbers<[1], [0], [0], [1], [0, 0, 1, 1], [], []>} : vector<32x96xf32>, vector<96x128xf32>, vector<32x128xf32> -> vector<32x128xf32>
    %c0_161 = arith.constant 0 : index
    %c0_162 = arith.constant 0 : index
    %212 = vector.load %arg22[%c0_161, %c0_162] : memref<32x128xbf16, #tpu.memory_space<vmem>>, vector<32x128xbf16>
    %213 = arith.extf %212 : vector<32x128xbf16> to vector<32x128xf32>
    %214 = arith.mulf %211, %213 : vector<32x128xf32>
    %c0_163 = arith.constant 0 : index
    %c0_164 = arith.constant 0 : index
    %215 = vector.load %arg24[%c0_163, %c0_164] : memref<2x32xbf16, #tpu.memory_space<vmem>>, vector<2x32xbf16>
    %216 = arith.extf %215 : vector<2x32xbf16> to vector<2x32xf32>
    %cst_165 = arith.constant dense<0.000000e+00> : vector<2x128xf32>
    %217 = tpu.matmul %216, %214, %cst_165 {dimension_numbers = #tpu.dot_dimension_numbers<[1], [0], [0], [1], [0, 0, 1, 1], [], []>} : vector<2x32xf32>, vector<32x128xf32>, vector<2x128xf32> -> vector<2x128xf32>
    %c0_166 = arith.constant 0 : index
    %c0_167 = arith.constant 0 : index
    %218 = vector.load %arg23[%c0_166, %c0_167] : memref<128x8xbf16, #tpu.memory_space<vmem>>, vector<128x8xbf16>
    %219 = arith.extf %218 : vector<128x8xbf16> to vector<128x8xf32>
    %cst_168 = arith.constant dense<0.000000e+00> : vector<2x8xf32>
    %220 = tpu.matmul %217, %219, %cst_168 {dimension_numbers = #tpu.dot_dimension_numbers<[1], [0], [0], [1], [0, 0, 1, 1], [], []>} : vector<2x128xf32>, vector<128x8xf32>, vector<2x8xf32> -> vector<2x8xf32>
    %c0_169 = arith.constant 0 : index
    %c0_170 = arith.constant 0 : index
    %221 = vector.load %arg25[%c0_169, %c0_170] : memref<1x8xf32, #tpu.memory_space<vmem>>, vector<1x8xf32>
    %222 = vector.broadcast %221 : vector<1x8xf32> to vector<2x8xf32>
    %223 = arith.addf %220, %222 : vector<2x8xf32>
    %c0_171 = arith.constant 0 : index
    %c0_172 = arith.constant 0 : index
    %224 = vector.load %arg26[%c0_171, %c0_172] : memref<2x8xf32, #tpu.memory_space<vmem>>, vector<2x8xf32>
    tpu.vector_store %arg26[%c0_171, %c0_172], %223 {strides = array<i32>} : memref<2x8xf32, #tpu.memory_space<vmem>>, vector<2x8xf32>,
    return
  }
}

</mosaic_0001>

<llo_original>
// kernel: forward_pallas.1
$region0: #{forward_pallas.1}
  #allocation0 [shape = 'u32[]', space=smem, size = 0x4, offset = 0x4, fixed_abs, tag = 'smem constant byte address 0x4 - core index']
  #allocation1 [shape = 'u32[144,128]{1,0:T(1,128)}', space=vmem, size = 0x12000, scoped, tag = 'internal scratch']
  %s0 = inlined_call_operand.hbm [shape: f32[32,24], index: 0, kind: input, shape index: {}]
  %s1 = inlined_call_operand.vmem [shape: f32[256,32], index: 1, kind: input, shape index: {}]
  %s2 = inlined_call_operand.vmem [shape: f32[256,1], index: 2, kind: input, shape index: {}]
  %s3 = inlined_call_operand.vmem [shape: bf16[4,128,256], index: 3, kind: input, shape index: {}]
  %s4 = inlined_call_operand.vmem [shape: f32[4,24,96], index: 4, kind: input, shape index: {}]
  %s5 = inlined_call_operand.vmem [shape: bf16[96,8], index: 5, kind: input, shape index: {}]
  %s6 = inlined_call_operand.hbm [shape: bf16[8,96], index: 6, kind: input, shape index: {}]
  %s7 = inlined_call_operand.vmem [shape: f32[1,8], index: 7, kind: input, shape index: {}]
  %s8 = inlined_call_operand.vmem [shape: f32[1,8], index: 8, kind: input, shape index: {}]
  %s9 = inlined_call_operand.vmem [shape: bf16[4,64,128], index: 9, kind: input, shape index: {}]
  %s10 = inlined_call_operand.hbm [shape: f32[4,96,96], index: 10, kind: input, shape index: {}]
  %s11 = inlined_call_operand.vmem [shape: bf16[96,16], index: 11, kind: input, shape index: {}]
  %s12 = inlined_call_operand.vmem [shape: bf16[16,96], index: 12, kind: input, shape index: {}]
  %s13 = inlined_call_operand.vmem [shape: f32[1,16], index: 13, kind: input, shape index: {}]
  %s14 = inlined_call_operand.vmem [shape: f32[1,16], index: 14, kind: input, shape index: {}]
  %s15 = inlined_call_operand.hbm [shape: bf16[4,32,64], index: 15, kind: input, shape index: {}]
  %s16 = inlined_call_operand.hbm [shape: f32[4,96,96], index: 16, kind: input, shape index: {}]
  %s17 = inlined_call_operand.vmem [shape: bf16[96,32], index: 17, kind: input, shape index: {}]
  %s18 = inlined_call_operand.hbm [shape: bf16[32,96], index: 18, kind: input, shape index: {}]
  %s19 = inlined_call_operand.vmem [shape: f32[1,32], index: 19, kind: input, shape index: {}]
  %s20 = inlined_call_operand.vmem [shape: f32[1,32], index: 20, kind: input, shape index: {}]
  %s21 = inlined_call_operand.vmem [shape: f32[96,128], index: 21, kind: input, shape index: {}]
  %s22 = inlined_call_operand.hbm [shape: bf16[32,128], index: 22, kind: input, shape index: {}]
  %s23 = inlined_call_operand.vmem [shape: bf16[128,8], index: 23, kind: input, shape index: {}]
  %s24 = inlined_call_operand.hbm [shape: bf16[2,32], index: 24, kind: input, shape index: {}]
  %s25 = inlined_call_operand.vmem [shape: f32[1,8], index: 25, kind: input, shape index: {}]
  %s26 = inlined_call_operand.hbm [shape: f32[2,8], index: 26, kind: output, shape index: {}]
  %s27 = sld [smem:[#allocation0]]
  $region146: #{forward_pallas.1} parent=0
    _
  %s29 = ssub.s32 1, %s27
  %s30 = scalar_select 0, %s29, %s27
  $region1: #{forward_pallas.1} parent=0
    #allocation2 [shape = 'u8[16384]{0}', space=vmem, size = 0x4000, scoped, tag = 'input window, operand 0, single buffered']
    #allocation3 [shape = 's32[1]{0}', space=sflag, size = 0x4, scoped, tag = 'scoped memory for forward_pallas.1']
    #allocation4 [shape = 's32[1]{0}', space=sflag, size = 0x4, scoped, tag = 'scoped memory for forward_pallas.1']
    #allocation5 [shape = 'u8[2048]{0}', space=vmem, size = 0x800, scoped, tag = 'input window, operand 6, single buffered']
    #allocation6 [shape = 's32[1]{0}', space=sflag, size = 0x4, scoped, tag = 'scoped memory for forward_pallas.1']
    #allocation7 [shape = 'u8[196608]{0}', space=vmem, size = 0x30000, scoped, tag = 'input window, operand 10, single buffered']
    #allocation8 [shape = 'u8[32768]{0}', space=vmem, size = 0x8000, scoped, tag = 'input window, operand 15, single buffered']
    #allocation9 [shape = 's32[1]{0}', space=sflag, size = 0x4, scoped, tag = 'scoped memory for forward_pallas.1']
    #allocation10 [shape = 'u8[196608]{0}', space=vmem, size = 0x30000, scoped, tag = 'input window, operand 16, single buffered']
    #allocation11 [shape = 'u8[8192]{0}', space=vmem, size = 0x2000, scoped, tag = 'input window, operand 18, single buffered']
    #allocation12 [shape = 's32[1]{0}', space=sflag, size = 0x4, scoped, tag = 'scoped memory for forward_pallas.1']
    #allocation13 [shape = 'u8[8192]{0}', space=vmem, size = 0x2000, scoped, tag = 'input window, operand 22, single buffered']
    #allocation14 [shape = 'u8[512]{0}', space=vmem, size = 0x400, scoped, tag = 'input window, operand 24, single buffered']
    #allocation15 [shape = 's32[1]{0}', space=sflag, size = 0x4, scoped, tag = 'scoped memory for forward_pallas.1']
    #allocation16 [shape = 'u8[1024]{0}', space=vmem, size = 0x400, scoped, tag = 'output window, operand 0, single buffered']
    %31 = vsyncpa [#allocation3], 0
    %32 = vsyncpa [#allocation6], 0
    %33 = vsyncpa [#allocation9], 0
    %34 = vsyncpa [#allocation12], 0
    %35 = vsyncpa [#allocation15], 0
    %36 = vsyncpa [#allocation4], 0
    // Predicated region
    $region2: #{forward_pallas.1} parent=1 // pred_check
      _
    $region3: #{forward_pallas.1} parent=1 // pred_check_branch
      %38 = sbr.rel (0) target = $region5
    $region4: #{forward_pallas.1} parent=1 // pred_region
      %s40 = ssub.s32 512, 512
      %41 = vsyncadd [#allocation3], %s40
      %s42 = sshll.u32 [#allocation2], 4
      %s43 = int_to_ptr.vmem [resolvable:$true] %s42
      %48 = dma.hbm_to_vmem [thread:$0]  %s0, 512, %s43, [#allocation3], 128, 128, 8
    $region5: #{forward_pallas.1} parent=1 // pred_fallthru
      _
    // Predicated region
    $region6: #{forward_pallas.1} parent=1 // pred_check
      _
    $region7: #{forward_pallas.1} parent=1 // pred_check_branch
      %50 = sbr.rel (0) target = $region9
    $region8: #{forward_pallas.1} parent=1 // pred_region
      _
    $region9: #{forward_pallas.1} parent=1 // pred_fallthru
      _
    // Predicated region
    $region10: #{forward_pallas.1} parent=1 // pred_check
      _
    $region11: #{forward_pallas.1} parent=1 // pred_check_branch
      %52 = sbr.rel (0) target = $region13
    $region12: #{forward_pallas.1} parent=1 // pred_region
      _
    $region13: #{forward_pallas.1} parent=1 // pred_fallthru
      _
    // Predicated region
    $region14: #{forward_pallas.1} parent=1 // pred_check
      _
    $region15: #{forward_pallas.1} parent=1 // pred_check_branch
      %54 = sbr.rel (0) target = $region17
    $region16: #{forward_pallas.1} parent=1 // pred_region
      _
    $region17: #{forward_pallas.1} parent=1 // pred_fallthru
      _
    // Predicated region
    $region18: #{forward_pallas.1} parent=1 // pred_check
      _
    $region19: #{forward_pallas.1} parent=1 // pred_check_branch
      %56 = sbr.rel (0) target = $region21
    $region20: #{forward_pallas.1} parent=1 // pred_region
      _
    $region21: #{forward_pallas.1} parent=1 // pred_fallthru
      _
    // Predicated region
    $region22: #{forward_pallas.1} parent=1 // pred_check
      _
    $region23: #{forward_pallas.1} parent=1 // pred_check_branch
      %58 = sbr.rel (0) target = $region25
    $region24: #{forward_pallas.1} parent=1 // pred_region
      _
    $region25: #{forward_pallas.1} parent=1 // pred_fallthru
      _
    // Predicated region
    $region26: #{forward_pallas.1} parent=1 // pred_check
      _
    $region27: #{forward_pallas.1} parent=1 // pred_check_branch
      %60 = sbr.rel (0) target = $region29
    $region28: #{forward_pallas.1} parent=1 // pred_region
      %s62 = ssub.s32 64, 64
      %63 = vsyncadd [#allocation6], %s62
      %s65 = sshll.u32 [#allocation5], 4
      %s66 = int_to_ptr.vmem [resolvable:$true] %s65
      %68 = dma.hbm_to_vmem [thread:$0]  %s6, 64, %s66, [#allocation6]
    $region29: #{forward_pallas.1} parent=1 // pred_fallthru
      _
    // Predicated region
    $region30: #{forward_pallas.1} parent=1 // pred_check
      _
    $region31: #{forward_pallas.1} parent=1 // pred_check_branch
      %70 = sbr.rel (0) target = $region33
    $region32: #{forward_pallas.1} parent=1 // pred_region
      _
    $region33: #{forward_pallas.1} parent=1 // pred_fallthru
      _
    // Predicated region
    $region34: #{forward_pallas.1} parent=1 // pred_check
      _
    $region35: #{forward_pallas.1} parent=1 // pred_check_branch
      %72 = sbr.rel (0) target = $region37
    $region36: #{forward_pallas.1} parent=1 // pred_region
      _
    $region37: #{forward_pallas.1} parent=1 // pred_fallthru
      _
    // Predicated region
    $region38: #{forward_pallas.1} parent=1 // pred_check
      _
    $region39: #{forward_pallas.1} parent=1 // pred_check_branch
      %74 = sbr.rel (0) target = $region41
    $region40: #{forward_pallas.1} parent=1 // pred_region
      _
    $region41: #{forward_pallas.1} parent=1 // pred_fallthru
      _
    // Predicated region
    $region42: #{forward_pallas.1} parent=1 // pred_check
      _
    $region43: #{forward_pallas.1} parent=1 // pred_check_branch
      %76 = sbr.rel (0) target = $region45
    $region44: #{forward_pallas.1} parent=1 // pred_region
      %s78 = ssub.s32 6144, 6144
      %79 = vsyncadd [#allocation6], %s78
      %s80 = sshll.u32 [#allocation7], 4
      %s81 = int_to_ptr.vmem [resolvable:$true] %s80
      %86 = dma.hbm_to_vmem [thread:$0]  %s10, 6144, %s81, [#allocation6], 128, 128, 8
    $region45: #{forward_pallas.1} parent=1 // pred_fallthru
      _
    // Predicated region
    $region46: #{forward_pallas.1} parent=1 // pred_check
      _
    $region47: #{forward_pallas.1} parent=1 // pred_check_branch
      %88 = sbr.rel (0) target = $region49
    $region48: #{forward_pallas.1} parent=1 // pred_region
      _
    $region49: #{forward_pallas.1} parent=1 // pred_fallthru
      _
    // Predicated region
    $region50: #{forward_pallas.1} parent=1 // pred_check
      _
    $region51: #{forward_pallas.1} parent=1 // pred_check_branch
      %90 = sbr.rel (0) target = $region53
    $region52: #{forward_pallas.1} parent=1 // pred_region
      _
    $region53: #{forward_pallas.1} parent=1 // pred_fallthru
      _
    // Predicated region
    $region54: #{forward_pallas.1} parent=1 // pred_check
      _
    $region55: #{forward_pallas.1} parent=1 // pred_check_branch
      %92 = sbr.rel (0) target = $region57
    $region56: #{forward_pallas.1} parent=1 // pred_region
      _
    $region57: #{forward_pallas.1} parent=1 // pred_fallthru
      _
    // Predicated region
    $region58: #{forward_pallas.1} parent=1 // pred_check
      _
    $region59: #{forward_pallas.1} parent=1 // pred_check_branch
      %94 = sbr.rel (0) target = $region61
    $region60: #{forward_pallas.1} parent=1 // pred_region
      _
    $region61: #{forward_pallas.1} parent=1 // pred_fallthru
      _
    // Predicated region
    $region62: #{forward_pallas.1} parent=1 // pred_check
      _
    $region63: #{forward_pallas.1} parent=1 // pred_check_branch
      %96 = sbr.rel (0) target = $region65
    $region64: #{forward_pallas.1} parent=1 // pred_region
      %s98 = ssub.s32 1024, 1024
      %99 = vsyncadd [#allocation9], %s98
      %s100 = sshll.u32 [#allocation8], 4
      %s101 = int_to_ptr.vmem [resolvable:$true] %s100
      %106 = dma.hbm_to_vmem [thread:$0]  %s15, 1024, %s101, [#allocation9], 64, 64, 4
    $region65: #{forward_pallas.1} parent=1 // pred_fallthru
      _
    // Predicated region
    $region66: #{forward_pallas.1} parent=1 // pred_check
      _
    $region67: #{forward_pallas.1} parent=1 // pred_check_branch
      %108 = sbr.rel (0) target = $region69
    $region68: #{forward_pallas.1} parent=1 // pred_region
      %s110 = ssub.s32 6144, 6144
      %111 = vsyncadd [#allocation9], %s110
      %s112 = sshll.u32 [#allocation10], 4
      %s113 = int_to_ptr.vmem [resolvable:$true] %s112
      %118 = dma.hbm_to_vmem [thread:$0]  %s16, 6144, %s113, [#allocation9], 128, 128, 8
    $region69: #{forward_pallas.1} parent=1 // pred_fallthru
      _
    // Predicated region
    $region70: #{forward_pallas.1} parent=1 // pred_check
      _
    $region71: #{forward_pallas.1} parent=1 // pred_check_branch
      %120 = sbr.rel (0) target = $region73
    $region72: #{forward_pallas.1} parent=1 // pred_region
      _
    $region73: #{forward_pallas.1} parent=1 // pred_fallthru
      _
    // Predicated region
    $region74: #{forward_pallas.1} parent=1 // pred_check
      _
    $region75: #{forward_pallas.1} parent=1 // pred_check_branch
      %122 = sbr.rel (0) target = $region77
    $region76: #{forward_pallas.1} parent=1 // pred_region
      %s124 = ssub.s32 256, 256
      %125 = vsyncadd [#allocation12], %s124
      %s126 = sshll.u32 [#allocation11], 4
      %s127 = int_to_ptr.vmem [resolvable:$true] %s126
      %132 = dma.hbm_to_vmem [thread:$0]  %s18, 256, %s127, [#allocation12], 64, 64, 4
    $region77: #{forward_pallas.1} parent=1 // pred_fallthru
      _
    // Predicated region
    $region78: #{forward_pallas.1} parent=1 // pred_check
      _
    $region79: #{forward_pallas.1} parent=1 // pred_check_branch
      %134 = sbr.rel (0) target = $region81
    $region80: #{forward_pallas.1} parent=1 // pred_region
      _
    $region81: #{forward_pallas.1} parent=1 // pred_fallthru
      _
    // Predicated region
    $region82: #{forward_pallas.1} parent=1 // pred_check
      _
    $region83: #{forward_pallas.1} parent=1 // pred_check_branch
      %136 = sbr.rel (0) target = $region85
    $region84: #{forward_pallas.1} parent=1 // pred_region
      _
    $region85: #{forward_pallas.1} parent=1 // pred_fallthru
      _
    // Predicated region
    $region86: #{forward_pallas.1} parent=1 // pred_check
      _
    $region87: #{forward_pallas.1} parent=1 // pred_check_branch
      %138 = sbr.rel (0) target = $region89
    $region88: #{forward_pallas.1} parent=1 // pred_region
      _
    $region89: #{forward_pallas.1} parent=1 // pred_fallthru
      _
    // Predicated region
    $region90: #{forward_pallas.1} parent=1 // pred_check
      _
    $region91: #{forward_pallas.1} parent=1 // pred_check_branch
      %140 = sbr.rel (0) target = $region93
    $region92: #{forward_pallas.1} parent=1 // pred_region
      %s142 = ssub.s32 256, 256
      %143 = vsyncadd [#allocation12], %s142
      %s144 = sshll.u32 [#allocation13], 4
      %s145 = int_to_ptr.vmem [resolvable:$true] %s144
      %150 = dma.hbm_to_vmem [thread:$0]  %s22, 256, %s145, [#allocation12], 64, 64, 4
    $region93: #{forward_pallas.1} parent=1 // pred_fallthru
      _
    // Predicated region
    $region94: #{forward_pallas.1} parent=1 // pred_check
      _
    $region95: #{forward_pallas.1} parent=1 // pred_check_branch
      %152 = sbr.rel (0) target = $region97
    $region96: #{forward_pallas.1} parent=1 // pred_region
      _
    $region97: #{forward_pallas.1} parent=1 // pred_fallthru
      _
    // Predicated region
    $region98: #{forward_pallas.1} parent=1 // pred_check
      _
    $region99: #{forward_pallas.1} parent=1 // pred_check_branch
      %154 = sbr.rel (0) target = $region101
    $region100: #{forward_pallas.1} parent=1 // pred_region
      %s156 = ssub.s32 16, 16
      %157 = vsyncadd [#allocation15], %s156
      %s159 = sshll.u32 [#allocation14], 4
      %s160 = int_to_ptr.vmem [resolvable:$true] %s159
      %162 = dma.hbm_to_vmem [thread:$0]  %s24, 16, %s160, [#allocation15]
    $region101: #{forward_pallas.1} parent=1 // pred_fallthru
      _
    // Predicated region
    $region102: #{forward_pallas.1} parent=1 // pred_check
      _
    $region103: #{forward_pallas.1} parent=1 // pred_check_branch
      %164 = sbr.rel (0) target = $region105
    $region104: #{forward_pallas.1} parent=1 // pred_region
      _
    $region105: #{forward_pallas.1} parent=1 // pred_fallthru
      _
    // Predicated region
    $region106: #{forward_pallas.1} parent=1 // pred_check
      _
    $region107: #{forward_pallas.1} parent=1 // pred_check_branch
      %166 = sbr.rel (0) target = $region109
    $region108: #{forward_pallas.1} parent=1 // pred_region
      %167 = dma.done [#allocation3], 512
    $region109: #{forward_pallas.1} parent=1 // pred_fallthru
      _
    // Predicated region
    $region110: #{forward_pallas.1} parent=1 // pred_check
      _
    $region111: #{forward_pallas.1} parent=1 // pred_check_branch
      %169 = sbr.rel (0) target = $region113
    $region112: #{forward_pallas.1} parent=1 // pred_region
      %170 = dma.done [#allocation6], 64
    $region113: #{forward_pallas.1} parent=1 // pred_fallthru
      _
    // Predicated region
    $region114: #{forward_pallas.1} parent=1 // pred_check
      _
    $region115: #{forward_pallas.1} parent=1 // pred_check_branch
      %172 = sbr.rel (0) target = $region117
    $region116: #{forward_pallas.1} parent=1 // pred_region
      %173 = dma.done [#allocation6], 6144
    $region117: #{forward_pallas.1} parent=1 // pred_fallthru
      _
    // Predicated region
    $region118: #{forward_pallas.1} parent=1 // pred_check
      _
    $region119: #{forward_pallas.1} parent=1 // pred_check_branch
      %175 = sbr.rel (0) target = $region121
    $region120: #{forward_pallas.1} parent=1 // pred_region
      %176 = dma.done [#allocation9], 1024
    $region121: #{forward_pallas.1} parent=1 // pred_fallthru
      _
    // Predicated region
    $region122: #{forward_pallas.1} parent=1 // pred_check
      _
    $region123: #{forward_pallas.1} parent=1 // pred_check_branch
      %178 = sbr.rel (0) target = $region125
    $region124: #{forward_pallas.1} parent=1 // pred_region
      %179 = dma.done [#allocation9], 6144
    $region125: #{forward_pallas.1} parent=1 // pred_fallthru
      _
    // Predicated region
    $region126: #{forward_pallas.1} parent=1 // pred_check
      _
    $region127: #{forward_pallas.1} parent=1 // pred_check_branch
      %181 = sbr.rel (0) target = $region129
    $region128: #{forward_pallas.1} parent=1 // pred_region
      %182 = dma.done [#allocation12], 256
    $region129: #{forward_pallas.1} parent=1 // pred_fallthru
      _
    // Predicated region
    $region130: #{forward_pallas.1} parent=1 // pred_check
      _
    $region131: #{forward_pallas.1} parent=1 // pred_check_branch
      %184 = sbr.rel (0) target = $region133
    $region132: #{forward_pallas.1} parent=1 // pred_region
      %185 = dma.done [#allocation12], 256
    $region133: #{forward_pallas.1} parent=1 // pred_fallthru
      _
    // Predicated region
    $region134: #{forward_pallas.1} parent=1 // pred_check
      _
    $region135: #{forward_pallas.1} parent=1 // pred_check_branch
      %187 = sbr.rel (0) target = $region137
    $region136: #{forward_pallas.1} parent=1 // pred_region
      %188 = dma.done [#allocation15], 16
    $region137: #{forward_pallas.1} parent=1 // pred_fallthru
      _
    %v189 = vld [vmem:[%s1] sm:$0xff]
    %v190 = vld [vmem:[%s1 + $0x8] sm:$0xff]
    %v191 = vld [vmem:[%s1 + $0x10] sm:$0xff]
    %v192 = vld [vmem:[%s1 + $0x18] sm:$0xff]
    %v193 = vld [vmem:[%s1 + $0x20] sm:$0xff]
    %v194 = vld [vmem:[%s1 + $0x28] sm:$0xff]
    %v195 = vld [vmem:[%s1 + $0x30] sm:$0xff]
    %v196 = vld [vmem:[%s1 + $0x38] sm:$0xff]
    %v197 = vld [vmem:[%s1 + $0x40] sm:$0xff]
    %v198 = vld [vmem:[%s1 + $0x48] sm:$0xff]
    %v199 = vld [vmem:[%s1 + $0x50] sm:$0xff]
    %v200 = vld [vmem:[%s1 + $0x58] sm:$0xff]
    %v201 = vld [vmem:[%s1 + $0x60] sm:$0xff]
    %v202 = vld [vmem:[%s1 + $0x68] sm:$0xff]
    %v203 = vld [vmem:[%s1 + $0x70] sm:$0xff]
    %v204 = vld [vmem:[%s1 + $0x78] sm:$0xff]
    %v205 = vld [vmem:[%s1 + $0x80] sm:$0xff]
    %v206 = vld [vmem:[%s1 + $0x88] sm:$0xff]
    %v207 = vld [vmem:[%s1 + $0x90] sm:$0xff]
    %v208 = vld [vmem:[%s1 + $0x98] sm:$0xff]
    %v209 = vld [vmem:[%s1 + $0xa0] sm:$0xff]
    %v210 = vld [vmem:[%s1 + $0xa8] sm:$0xff]
    %v211 = vld [vmem:[%s1 + $0xb0] sm:$0xff]
    %v212 = vld [vmem:[%s1 + $0xb8] sm:$0xff]
    %v213 = vld [vmem:[%s1 + $0xc0] sm:$0xff]
    %v214 = vld [vmem:[%s1 + $0xc8] sm:$0xff]
    %v215 = vld [vmem:[%s1 + $0xd0] sm:$0xff]
    %v216 = vld [vmem:[%s1 + $0xd8] sm:$0xff]
    %v217 = vld [vmem:[%s1 + $0xe0] sm:$0xff]
    %v218 = vld [vmem:[%s1 + $0xe8] sm:$0xff]
    %v219 = vld [vmem:[%s1 + $0xf0] sm:$0xff]
    %v220 = vld [vmem:[%s1 + $0xf8] sm:$0xff]
    %v221 = vld [vmem:[#allocation2] sm:$0xff]
    %v222 = vld [vmem:[#allocation2 + $0x8] sm:$0xff]
    %v223 = vld [vmem:[#allocation2 + $0x10] sm:$0xff]
    %v224 = vld [vmem:[#allocation2 + $0x18] sm:$0xff]
    %v225 = vld [vmem:[%s2] sm:$0xff]
    %v226 = vld [vmem:[%s2 + $0x8] sm:$0xff]
    %v227 = vld [vmem:[%s2 + $0x10] sm:$0xff]
    %v228 = vld [vmem:[%s2 + $0x18] sm:$0xff]
    %v229 = vld [vmem:[%s2 + $0x20] sm:$0xff]
    %v230 = vld [vmem:[%s2 + $0x28] sm:$0xff]
    %v231 = vld [vmem:[%s2 + $0x30] sm:$0xff]
    %v232 = vld [vmem:[%s2 + $0x38] sm:$0xff]
    %v233 = vld [vmem:[%s2 + $0x40] sm:$0xff]
    %v234 = vld [vmem:[%s2 + $0x48] sm:$0xff]
    %v235 = vld [vmem:[%s2 + $0x50] sm:$0xff]
    %v236 = vld [vmem:[%s2 + $0x58] sm:$0xff]
    %v237 = vld [vmem:[%s2 + $0x60] sm:$0xff]
    %v238 = vld [vmem:[%s2 + $0x68] sm:$0xff]
    %v239 = vld [vmem:[%s2 + $0x70] sm:$0xff]
    %v240 = vld [vmem:[%s2 + $0x78] sm:$0xff]
    %v241 = vld [vmem:[%s2 + $0x80] sm:$0xff]
    %v242 = vld [vmem:[%s2 + $0x88] sm:$0xff]
    %v243 = vld [vmem:[%s2 + $0x90] sm:$0xff]
    %v244 = vld [vmem:[%s2 + $0x98] sm:$0xff]
    %v245 = vld [vmem:[%s2 + $0xa0] sm:$0xff]
    %v246 = vld [vmem:[%s2 + $0xa8] sm:$0xff]
    %v247 = vld [vmem:[%s2 + $0xb0] sm:$0xff]
    %v248 = vld [vmem:[%s2 + $0xb8] sm:$0xff]
    %v249 = vld [vmem:[%s2 + $0xc0] sm:$0xff]
    %v250 = vld [vmem:[%s2 + $0xc8] sm:$0xff]
    %v251 = vld [vmem:[%s2 + $0xd0] sm:$0xff]
    %v252 = vld [vmem:[%s2 + $0xd8] sm:$0xff]
    %v253 = vld [vmem:[%s2 + $0xe0] sm:$0xff]
    %v254 = vld [vmem:[%s2 + $0xe8] sm:$0xff]
    %v255 = vld [vmem:[%s2 + $0xf0] sm:$0xff]
    %v256 = vld [vmem:[%s2 + $0xf8] sm:$0xff]
    %258 = vset.pattern.permute.xlu0 0
    %259 = vperm.xlu0 %258, %v225
    %v260 = vpop.permute.xlu0 %259
    %263 = vset.pattern.permute.xlu0 0
    %264 = vperm.xlu0 %263, %v226
    %v265 = vpop.permute.xlu0 %264
    %268 = vset.pattern.permute.xlu0 0
    %269 = vperm.xlu0 %268, %v227
    %v270 = vpop.permute.xlu0 %269
    %273 = vset.pattern.permute.xlu0 0
    %274 = vperm.xlu0 %273, %v228
    %v275 = vpop.permute.xlu0 %274
    %278 = vset.pattern.permute.xlu0 0
    %279 = vperm.xlu0 %278, %v229
    %v280 = vpop.permute.xlu0 %279
    %283 = vset.pattern.permute.xlu0 0
    %284 = vperm.xlu0 %283, %v230
    %v285 = vpop.permute.xlu0 %284
    %288 = vset.pattern.permute.xlu0 0
    %289 = vperm.xlu0 %288, %v231
    %v290 = vpop.permute.xlu0 %289
    %293 = vset.pattern.permute.xlu0 0
    %294 = vperm.xlu0 %293, %v232
    %v295 = vpop.permute.xlu0 %294
    %298 = vset.pattern.permute.xlu0 0
    %299 = vperm.xlu0 %298, %v233
    %v300 = vpop.permute.xlu0 %299
    %303 = vset.pattern.permute.xlu0 0
    %304 = vperm.xlu0 %303, %v234
    %v305 = vpop.permute.xlu0 %304
    %308 = vset.pattern.permute.xlu0 0
    %309 = vperm.xlu0 %308, %v235
    %v310 = vpop.permute.xlu0 %309
    %313 = vset.pattern.permute.xlu0 0
    %314 = vperm.xlu0 %313, %v236
    %v315 = vpop.permute.xlu0 %314
    %318 = vset.pattern.permute.xlu0 0
    %319 = vperm.xlu0 %318, %v237
    %v320 = vpop.permute.xlu0 %319
    %323 = vset.pattern.permute.xlu0 0
    %324 = vperm.xlu0 %323, %v238
    %v325 = vpop.permute.xlu0 %324
    %328 = vset.pattern.permute.xlu0 0
    %329 = vperm.xlu0 %328, %v239
    %v330 = vpop.permute.xlu0 %329
    %333 = vset.pattern.permute.xlu0 0
    %334 = vperm.xlu0 %333, %v240
    %v335 = vpop.permute.xlu0 %334
    %338 = vset.pattern.permute.xlu0 0
    %339 = vperm.xlu0 %338, %v241
    %v340 = vpop.permute.xlu0 %339
    %343 = vset.pattern.permute.xlu0 0
    %344 = vperm.xlu0 %343, %v242
    %v345 = vpop.permute.xlu0 %344
    %348 = vset.pattern.permute.xlu0 0
    %349 = vperm.xlu0 %348, %v243
    %v350 = vpop.permute.xlu0 %349
    %353 = vset.pattern.permute.xlu0 0
    %354 = vperm.xlu0 %353, %v244
    %v355 = vpop.permute.xlu0 %354
    %358 = vset.pattern.permute.xlu0 0
    %359 = vperm.xlu0 %358, %v245
    %v360 = vpop.permute.xlu0 %359
    %363 = vset.pattern.permute.xlu0 0
    %364 = vperm.xlu0 %363, %v246
    %v365 = vpop.permute.xlu0 %364
    %368 = vset.pattern.permute.xlu0 0
    %369 = vperm.xlu0 %368, %v247
    %v370 = vpop.permute.xlu0 %369
    %373 = vset.pattern.permute.xlu0 0
    %374 = vperm.xlu0 %373, %v248
    %v375 = vpop.permute.xlu0 %374
    %378 = vset.pattern.permute.xlu0 0
    %379 = vperm.xlu0 %378, %v249
    %v380 = vpop.permute.xlu0 %379
    %383 = vset.pattern.permute.xlu0 0
    %384 = vperm.xlu0 %383, %v250
    %v385 = vpop.permute.xlu0 %384
    %388 = vset.pattern.permute.xlu0 0
    %389 = vperm.xlu0 %388, %v251
    %v390 = vpop.permute.xlu0 %389
    %393 = vset.pattern.permute.xlu0 0
    %394 = vperm.xlu0 %393, %v252
    %v395 = vpop.permute.xlu0 %394
    %398 = vset.pattern.permute.xlu0 0
    %399 = vperm.xlu0 %398, %v253
    %v400 = vpop.permute.xlu0 %399
    %403 = vset.pattern.permute.xlu0 0
    %404 = vperm.xlu0 %403, %v254
    %v405 = vpop.permute.xlu0 %404
    %408 = vset.pattern.permute.xlu0 0
    %409 = vperm.xlu0 %408, %v255
    %v410 = vpop.permute.xlu0 %409
    %413 = vset.pattern.permute.xlu0 0
    %414 = vperm.xlu0 %413, %v256
    %v415 = vpop.permute.xlu0 %414
    %vm417 = vcmask 261120
    %v419 = vsel %vm417, %v189, 0
    %v422 = vsel %vm417, %v190, 0
    %v425 = vsel %vm417, %v191, 0
    %v428 = vsel %vm417, %v192, 0
    %v431 = vsel %vm417, %v193, 0
    %v434 = vsel %vm417, %v194, 0
    %v437 = vsel %vm417, %v195, 0
    %v440 = vsel %vm417, %v196, 0
    %v443 = vsel %vm417, %v197, 0
    %v446 = vsel %vm417, %v198, 0
    %v449 = vsel %vm417, %v199, 0
    %v452 = vsel %vm417, %v200, 0
    %v455 = vsel %vm417, %v201, 0
    %v458 = vsel %vm417, %v202, 0
    %v461 = vsel %vm417, %v203, 0
    %v464 = vsel %vm417, %v204, 0
    %v467 = vsel %vm417, %v205, 0
    %v470 = vsel %vm417, %v206, 0
    %v473 = vsel %vm417, %v207, 0
    %v476 = vsel %vm417, %v208, 0
    %v479 = vsel %vm417, %v209, 0
    %v482 = vsel %vm417, %v210, 0
    %v485 = vsel %vm417, %v211, 0
    %v488 = vsel %vm417, %v212, 0
    %v491 = vsel %vm417, %v213, 0
    %v494 = vsel %vm417, %v214, 0
    %v497 = vsel %vm417, %v215, 0
    %v500 = vsel %vm417, %v216, 0
    %v503 = vsel %vm417, %v217, 0
    %v506 = vsel %vm417, %v218, 0
    %v509 = vsel %vm417, %v219, 0
    %v512 = vsel %vm417, %v220, 0
    %514 = vmatprep.subr.mxu0 0.0
    %515 = vmatpush1.msra.mxu0 0.0
    %516 = vmatprep.subr.mxu0 0.0
    %517 = vmatpush1.msra.mxu0 0.0
    %518 = vmatprep.subr.mxu0 0.0
    %519 = vmatpush1.msra.mxu0 0.0
    %520 = vmatprep.subr.mxu0 0.0
    %521 = vmatpush1.msra.mxu0 0.0
    %522 = vmatprep.subr.mxu0 0.0
    %523 = vmatpush1.msra.mxu0 0.0
    %524 = vmatprep.subr.mxu0 0.0
    %525 = vmatpush1.msra.mxu0 0.0
    %526 = vmatprep.subr.mxu0 0.0
    %527 = vmatpush1.msra.mxu0 0.0
    %528 = vmatprep.subr.mxu0 0.0
    %529 = vmatpush1.msra.mxu0 0.0
    %530 = vmatprep.subr.mxu0 0.0
    %531 = vmatpush1.msra.mxu0 0.0
    %532 = vmatprep.subr.mxu0 0.0
    %533 = vmatpush1.msra.mxu0 0.0
    %534 = vmatprep.subr.mxu0 0.0
    %535 = vmatpush1.msra.mxu0 0.0
    %536 = vmatprep.subr.mxu0 0.0
    %537 = vmatpush1.msra.mxu0 0.0
    %538 = vmatprep.subr.mxu0 0.0
    %539 = vmatpush1.msra.mxu0 %v224
    %540 = vmatprep.subr.mxu0 0.0
    %541 = vmatpush1.msra.mxu0 %v223
    %542 = vmatprep.subr.mxu0 0.0
    %543 = vmatpush1.msra.mxu0 %v222
    %544 = vmatprep.subr.mxu0 0.0
    %545 = vmatpush1.msra.mxu0 %v221
    %546 = vmatprep.subr.mxu0 0.0
    %547 = vmatpush2.msra.mxu0 0.0
    %548 = vmatprep.subr.mxu0 0.0
    %549 = vmatpush2.msra.mxu0 0.0
    %550 = vmatprep.subr.mxu0 0.0
    %551 = vmatpush2.msra.mxu0 0.0
    %552 = vmatprep.subr.mxu0 0.0
    %553 = vmatpush2.msra.mxu0 0.0
    %554 = vmatprep.subr.mxu0 0.0
    %555 = vmatpush2.msra.mxu0 0.0
    %556 = vmatprep.subr.mxu0 0.0
    %557 = vmatpush2.msra.mxu0 0.0
    %558 = vmatprep.subr.mxu0 0.0
    %559 = vmatpush2.msra.mxu0 0.0
    %560 = vmatprep.subr.mxu0 0.0
    %561 = vmatpush2.msra.mxu0 0.0
    %562 = vmatprep.subr.mxu0 0.0
    %563 = vmatpush2.msra.mxu0 0.0
    %564 = vmatprep.subr.mxu0 0.0
    %565 = vmatpush2.msra.mxu0 0.0
    %566 = vmatprep.subr.mxu0 0.0
    %567 = vmatpush2.msra.mxu0 0.0
    %568 = vmatprep.subr.mxu0 0.0
    %569 = vmatpush2.msra.mxu0 0.0
    %570 = vmatprep.subr.mxu0 0.0
    %571 = vmatpush2.msra.mxu0 0.0
    %572 = vmatprep.subr.mxu0 0.0
    %573 = vmatpush2.msra.mxu0 0.0
    %574 = vmatprep.subr.mxu0 0.0
    %575 = vmatpush2.msra.mxu0 0.0
    %576 = vmatprep.subr.mxu0 0.0
    %577 = vmatpush2.msra.mxu0 0.0
    %578 = vmatprep.mubr.f32.mxu0 0.0
    %579 = vmatmul.mubr.f32.gmra.mxu0 %v419
    %v580 = vpop.f32.mrf.mxu0
    %v581 = vadd.f32 %v260, %v580
    %v582 = vpop.f32.mrf.mxu0
    %583 = vmatprep.mubr.f32.mxu0 0.0
    %584 = vmatmul.mubr.f32.gmra.mxu0 %v422
    %v585 = vpop.f32.mrf.mxu0
    %v586 = vadd.f32 %v265, %v585
    %v587 = vpop.f32.mrf.mxu0
    %588 = vmatprep.mubr.f32.mxu0 0.0
    %589 = vmatmul.mubr.f32.gmra.mxu0 %v425
    %v590 = vpop.f32.mrf.mxu0
    %v591 = vadd.f32 %v270, %v590
    %v592 = vpop.f32.mrf.mxu0
    %593 = vmatprep.mubr.f32.mxu0 0.0
    %594 = vmatmul.mubr.f32.gmra.mxu0 %v428
    %v595 = vpop.f32.mrf.mxu0
    %v596 = vadd.f32 %v275, %v595
    %v597 = vpop.f32.mrf.mxu0
    %598 = vmatprep.mubr.f32.mxu0 0.0
    %599 = vmatmul.mubr.f32.gmra.mxu0 %v431
    %v600 = vpop.f32.mrf.mxu0
    %v601 = vadd.f32 %v280, %v600
    %v602 = vpop.f32.mrf.mxu0
    %603 = vmatprep.mubr.f32.mxu0 0.0
    %604 = vmatmul.mubr.f32.gmra.mxu0 %v434
    %v605 = vpop.f32.mrf.mxu0
    %v606 = vadd.f32 %v285, %v605
    %v607 = vpop.f32.mrf.mxu0
    %608 = vmatprep.mubr.f32.mxu0 0.0
    %609 = vmatmul.mubr.f32.gmra.mxu0 %v437
    %v610 = vpop.f32.mrf.mxu0
    %v611 = vadd.f32 %v290, %v610
    %v612 = vpop.f32.mrf.mxu0
    %613 = vmatprep.mubr.f32.mxu0 0.0
    %614 = vmatmul.mubr.f32.gmra.mxu0 %v440
    %v615 = vpop.f32.mrf.mxu0
    %v616 = vadd.f32 %v295, %v615
    %v617 = vpop.f32.mrf.mxu0
    %618 = vmatprep.mubr.f32.mxu0 0.0
    %619 = vmatmul.mubr.f32.gmra.mxu0 %v443
    %v620 = vpop.f32.mrf.mxu0
    %v621 = vadd.f32 %v300, %v620
    %v622 = vpop.f32.mrf.mxu0
    %623 = vmatprep.mubr.f32.mxu0 0.0
    %624 = vmatmul.mubr.f32.gmra.mxu0 %v446
    %v625 = vpop.f32.mrf.mxu0
    %v626 = vadd.f32 %v305, %v625
    %v627 = vpop.f32.mrf.mxu0
    %628 = vmatprep.mubr.f32.mxu0 0.0
    %629 = vmatmul.mubr.f32.gmra.mxu0 %v449
    %v630 = vpop.f32.mrf.mxu0
    %v631 = vadd.f32 %v310, %v630
    %v632 = vpop.f32.mrf.mxu0
    %633 = vmatprep.mubr.f32.mxu0 0.0
    %634 = vmatmul.mubr.f32.gmra.mxu0 %v452
    %v635 = vpop.f32.mrf.mxu0
    %v636 = vadd.f32 %v315, %v635
    %v637 = vpop.f32.mrf.mxu0
    %638 = vmatprep.mubr.f32.mxu0 0.0
    %639 = vmatmul.mubr.f32.gmra.mxu0 %v455
    %v640 = vpop.f32.mrf.mxu0
    %v641 = vadd.f32 %v320, %v640
    %v642 = vpop.f32.mrf.mxu0
    %643 = vmatprep.mubr.f32.mxu0 0.0
    %644 = vmatmul.mubr.f32.gmra.mxu0 %v458
    %v645 = vpop.f32.mrf.mxu0
    %v646 = vadd.f32 %v325, %v645
    %v647 = vpop.f32.mrf.mxu0
    %648 = vmatprep.mubr.f32.mxu0 0.0
    %649 = vmatmul.mubr.f32.gmra.mxu0 %v461
    %v650 = vpop.f32.mrf.mxu0
    %v651 = vadd.f32 %v330, %v650
    %v652 = vpop.f32.mrf.mxu0
    %653 = vmatprep.mubr.f32.mxu0 0.0
    %654 = vmatmul.mubr.f32.gmra.mxu0 %v464
    %v655 = vpop.f32.mrf.mxu0
    %v656 = vadd.f32 %v335, %v655
    %v657 = vpop.f32.mrf.mxu0
    %658 = vmatprep.mubr.f32.mxu0 0.0
    %659 = vmatmul.mubr.f32.gmra.mxu0 %v467
    %v660 = vpop.f32.mrf.mxu0
    %v661 = vadd.f32 %v340, %v660
    %v662 = vpop.f32.mrf.mxu0
    %663 = vmatprep.mubr.f32.mxu0 0.0
    %664 = vmatmul.mubr.f32.gmra.mxu0 %v470
    %v665 = vpop.f32.mrf.mxu0
    %v666 = vadd.f32 %v345, %v665
    %v667 = vpop.f32.mrf.mxu0
    %668 = vmatprep.mubr.f32.mxu0 0.0
    %669 = vmatmul.mubr.f32.gmra.mxu0 %v473
    %v670 = vpop.f32.mrf.mxu0
    %v671 = vadd.f32 %v350, %v670
    %v672 = vpop.f32.mrf.mxu0
    %673 = vmatprep.mubr.f32.mxu0 0.0
    %674 = vmatmul.mubr.f32.gmra.mxu0 %v476
    %v675 = vpop.f32.mrf.mxu0
    %v676 = vadd.f32 %v355, %v675
    %v677 = vpop.f32.mrf.mxu0
    %678 = vmatprep.mubr.f32.mxu0 0.0
    %679 = vmatmul.mubr.f32.gmra.mxu0 %v479
    %v680 = vpop.f32.mrf.mxu0
    %v681 = vadd.f32 %v360, %v680
    %v682 = vpop.f32.mrf.mxu0
    %683 = vmatprep.mubr.f32.mxu0 0.0
    %684 = vmatmul.mubr.f32.gmra.mxu0 %v482
    %v685 = vpop.f32.mrf.mxu0
    %v686 = vadd.f32 %v365, %v685
    %v687 = vpop.f32.mrf.mxu0
    %688 = vmatprep.mubr.f32.mxu0 0.0
    %689 = vmatmul.mubr.f32.gmra.mxu0 %v485
    %v690 = vpop.f32.mrf.mxu0
    %v691 = vadd.f32 %v370, %v690
    %v692 = vpop.f32.mrf.mxu0
    %693 = vmatprep.mubr.f32.mxu0 0.0
    %694 = vmatmul.mubr.f32.gmra.mxu0 %v488
    %v695 = vpop.f32.mrf.mxu0
    %v696 = vadd.f32 %v375, %v695
    %v697 = vpop.f32.mrf.mxu0
    %698 = vmatprep.mubr.f32.mxu0 0.0
    %699 = vmatmul.mubr.f32.gmra.mxu0 %v491
    %v700 = vpop.f32.mrf.mxu0
    %v701 = vadd.f32 %v380, %v700
    %v702 = vpop.f32.mrf.mxu0
    %703 = vmatprep.mubr.f32.mxu0 0.0
    %704 = vmatmul.mubr.f32.gmra.mxu0 %v494
    %v705 = vpop.f32.mrf.mxu0
    %v706 = vadd.f32 %v385, %v705
    %v707 = vpop.f32.mrf.mxu0
    %708 = vmatprep.mubr.f32.mxu0 0.0
    %709 = vmatmul.mubr.f32.gmra.mxu0 %v497
    %v710 = vpop.f32.mrf.mxu0
    %v711 = vadd.f32 %v390, %v710
    %v712 = vpop.f32.mrf.mxu0
    %713 = vmatprep.mubr.f32.mxu0 0.0
    %714 = vmatmul.mubr.f32.gmra.mxu0 %v500
    %v715 = vpop.f32.mrf.mxu0
    %v716 = vadd.f32 %v395, %v715
    %v717 = vpop.f32.mrf.mxu0
    %718 = vmatprep.mubr.f32.mxu0 0.0
    %719 = vmatmul.mubr.f32.gmra.mxu0 %v503
    %v720 = vpop.f32.mrf.mxu0
    %v721 = vadd.f32 %v400, %v720
    %v722 = vpop.f32.mrf.mxu0
    %723 = vmatprep.mubr.f32.mxu0 0.0
    %724 = vmatmul.mubr.f32.gmra.mxu0 %v506
    %v725 = vpop.f32.mrf.mxu0
    %v726 = vadd.f32 %v405, %v725
    %v727 = vpop.f32.mrf.mxu0
    %728 = vmatprep.mubr.f32.mxu0 0.0
    %729 = vmatmul.mubr.f32.gmra.mxu0 %v509
    %v730 = vpop.f32.mrf.mxu0
    %v731 = vadd.f32 %v410, %v730
    %v732 = vpop.f32.mrf.mxu0
    %733 = vmatprep.mubr.f32.mxu0 0.0
    %734 = vmatmul.mubr.f32.gmra.mxu0 %v512
    %v735 = vpop.f32.mrf.mxu0
    %v736 = vadd.f32 %v415, %v735
    %v737 = vpop.f32.mrf.mxu0
    %738 = vdwg.mxu0
    %v739 = vld [vmem:[%s3] sm:$0xff]
    %v740 = vld [vmem:[%s3 + $0x8] sm:$0xff]
    %v741 = vld [vmem:[%s3 + $0x10] sm:$0xff]
    %v742 = vld [vmem:[%s3 + $0x18] sm:$0xff]
    %v743 = vld [vmem:[%s3 + $0x20] sm:$0xff]
    %v744 = vld [vmem:[%s3 + $0x28] sm:$0xff]
    %v745 = vld [vmem:[%s3 + $0x30] sm:$0xff]
    %v746 = vld [vmem:[%s3 + $0x38] sm:$0xff]
    %v747 = vld [vmem:[%s3 + $0x40] sm:$0xff]
    %v748 = vld [vmem:[%s3 + $0x48] sm:$0xff]
    %v749 = vld [vmem:[%s3 + $0x50] sm:$0xff]
    %v750 = vld [vmem:[%s3 + $0x58] sm:$0xff]
    %v751 = vld [vmem:[%s3 + $0x60] sm:$0xff]
    %v752 = vld [vmem:[%s3 + $0x68] sm:$0xff]
    %v753 = vld [vmem:[%s3 + $0x70] sm:$0xff]
    %v754 = vld [vmem:[%s3 + $0x78] sm:$0xff]
    %v755 = vunpack.c.l.bf16 %v739
    %v756 = vunpack.c.h.bf16 %v739
    %v757 = vunpack.c.l.bf16 %v740
    %v758 = vunpack.c.h.bf16 %v740
    %v759 = vunpack.c.l.bf16 %v741
    %v760 = vunpack.c.h.bf16 %v741
    %v761 = vunpack.c.l.bf16 %v742
    %v762 = vunpack.c.h.bf16 %v742
    %v763 = vunpack.c.l.bf16 %v743
    %v764 = vunpack.c.h.bf16 %v743
    %v765 = vunpack.c.l.bf16 %v744
    %v766 = vunpack.c.h.bf16 %v744
    %v767 = vunpack.c.l.bf16 %v745
    %v768 = vunpack.c.h.bf16 %v745
    %v769 = vunpack.c.l.bf16 %v746
    %v770 = vunpack.c.h.bf16 %v746
    %v771 = vunpack.c.l.bf16 %v747
    %v772 = vunpack.c.h.bf16 %v747
    %v773 = vunpack.c.l.bf16 %v748
    %v774 = vunpack.c.h.bf16 %v748
    %v775 = vunpack.c.l.bf16 %v749
    %v776 = vunpack.c.h.bf16 %v749
    %v777 = vunpack.c.l.bf16 %v750
    %v778 = vunpack.c.h.bf16 %v750
    %v779 = vunpack.c.l.bf16 %v751
    %v780 = vunpack.c.h.bf16 %v751
    %v781 = vunpack.c.l.bf16 %v752
    %v782 = vunpack.c.h.bf16 %v752
    %v783 = vunpack.c.l.bf16 %v753
    %v784 = vunpack.c.h.bf16 %v753
    %v785 = vunpack.c.l.bf16 %v754
    %v786 = vunpack.c.h.bf16 %v754
    %787 = vmatprep.subr.mxu0 0.0
    %788 = vmatpush1.msra.mxu0 %v656
    %789 = vmatprep.subr.mxu0 0.0
    %790 = vmatpush1.msra.mxu0 %v651
    %791 = vmatprep.subr.mxu0 0.0
    %792 = vmatpush1.msra.mxu0 %v646
    %793 = vmatprep.subr.mxu0 0.0
    %794 = vmatpush1.msra.mxu0 %v641
    %795 = vmatprep.subr.mxu0 0.0
    %796 = vmatpush1.msra.mxu0 %v636
    %797 = vmatprep.subr.mxu0 0.0
    %798 = vmatpush1.msra.mxu0 %v631
    %799 = vmatprep.subr.mxu0 0.0
    %800 = vmatpush1.msra.mxu0 %v626
    %801 = vmatprep.subr.mxu0 0.0
    %802 = vmatpush1.msra.mxu0 %v621
    %803 = vmatprep.subr.mxu0 0.0
    %804 = vmatpush1.msra.mxu0 %v616
    %805 = vmatprep.subr.mxu0 0.0
    %806 = vmatpush1.msra.mxu0 %v611
    %807 = vmatprep.subr.mxu0 0.0
    %808 = vmatpush1.msra.mxu0 %v606
    %809 = vmatprep.subr.mxu0 0.0
    %810 = vmatpush1.msra.mxu0 %v601
    %811 = vmatprep.subr.mxu0 0.0
    %812 = vmatpush1.msra.mxu0 %v596
    %813 = vmatprep.subr.mxu0 0.0
    %814 = vmatpush1.msra.mxu0 %v591
    %815 = vmatprep.subr.mxu0 0.0
    %816 = vmatpush1.msra.mxu0 %v586
    %817 = vmatprep.subr.mxu0 0.0
    %818 = vmatpush1.msra.mxu0 %v581
    %819 = vmatprep.subr.mxu0 0.0
    %820 = vmatpush2.msra.mxu0 %v736
    %821 = vmatprep.subr.mxu0 0.0
    %822 = vmatpush2.msra.mxu0 %v731
    %823 = vmatprep.subr.mxu0 0.0
    %824 = vmatpush2.msra.mxu0 %v726
    %825 = vmatprep.subr.mxu0 0.0
    %826 = vmatpush2.msra.mxu0 %v721
    %827 = vmatprep.subr.mxu0 0.0
    %828 = vmatpush2.msra.mxu0 %v716
    %829 = vmatprep.subr.mxu0 0.0
    %830 = vmatpush2.msra.mxu0 %v711
    %831 = vmatprep.subr.mxu0 0.0
    %832 = vmatpush2.msra.mxu0 %v706
    %833 = vmatprep.subr.mxu0 0.0
    %834 = vmatpush2.msra.mxu0 %v701
    %835 = vmatprep.subr.mxu0 0.0
    %836 = vmatpush2.msra.mxu0 %v696
    %837 = vmatprep.subr.mxu0 0.0
    %838 = vmatpush2.msra.mxu0 %v691
    %839 = vmatprep.subr.mxu0 0.0
    %840 = vmatpush2.msra.mxu0 %v686
    %841 = vmatprep.subr.mxu0 0.0
    %842 = vmatpush2.msra.mxu0 %v681
    %843 = vmatprep.subr.mxu0 0.0
    %844 = vmatpush2.msra.mxu0 %v676
    %845 = vmatprep.subr.mxu0 0.0
    %846 = vmatpush2.msra.mxu0 %v671
    %847 = vmatprep.subr.mxu0 0.0
    %848 = vmatpush2.msra.mxu0 %v666
    %849 = vmatprep.subr.mxu0 0.0
    %850 = vmatpush2.msra.mxu0 %v661
    %851 = vmatprep.mubr.f32.mxu0 %v756
    %852 = vmatmul.mubr.f32.gmra.mxu0 %v755
    %v853 = vpop.f32.mrf.mxu0
    %v854 = vadd.f32 0.0, %v853
    %v855 = vpop.f32.mrf.mxu0
    %856 = vmatprep.mubr.f32.mxu0 %v758
    %857 = vmatmul.mubr.f32.gmra.mxu0 %v757
    %v858 = vpop.f32.mrf.mxu0
    %v859 = vadd.f32 0.0, %v858
    %v860 = vpop.f32.mrf.mxu0
    %861 = vmatprep.mubr.f32.mxu0 %v760
    %862 = vmatmul.mubr.f32.gmra.mxu0 %v759
    %v863 = vpop.f32.mrf.mxu0
    %v864 = vadd.f32 0.0, %v863
    %v865 = vpop.f32.mrf.mxu0
    %866 = vmatprep.mubr.f32.mxu0 %v762
    %867 = vmatmul.mubr.f32.gmra.mxu0 %v761
    %v868 = vpop.f32.mrf.mxu0
    %v869 = vadd.f32 0.0, %v868
    %v870 = vpop.f32.mrf.mxu0
    %871 = vmatprep.mubr.f32.mxu0 %v764
    %872 = vmatmul.mubr.f32.gmra.mxu0 %v763
    %v873 = vpop.f32.mrf.mxu0
    %v874 = vadd.f32 0.0, %v873
    %v875 = vpop.f32.mrf.mxu0
    %876 = vmatprep.mubr.f32.mxu0 %v766
    %877 = vmatmul.mubr.f32.gmra.mxu0 %v765
    %v878 = vpop.f32.mrf.mxu0
    %v879 = vadd.f32 0.0, %v878
    %v880 = vpop.f32.mrf.mxu0
    %881 = vmatprep.mubr.f32.mxu0 %v768
    %882 = vmatmul.mubr.f32.gmra.mxu0 %v767
    %v883 = vpop.f32.mrf.mxu0
    %v884 = vadd.f32 0.0, %v883
    %v885 = vpop.f32.mrf.mxu0
    %886 = vmatprep.mubr.f32.mxu0 %v770
    %887 = vmatmul.mubr.f32.gmra.mxu0 %v769
    %v888 = vpop.f32.mrf.mxu0
    %v889 = vadd.f32 0.0, %v888
    %v890 = vpop.f32.mrf.mxu0
    %891 = vmatprep.mubr.f32.mxu0 %v772
    %892 = vmatmul.mubr.f32.gmra.mxu0 %v771
    %v893 = vpop.f32.mrf.mxu0
    %v894 = vadd.f32 0.0, %v893
    %v895 = vpop.f32.mrf.mxu0
    %896 = vmatprep.mubr.f32.mxu0 %v774
    %897 = vmatmul.mubr.f32.gmra.mxu0 %v773
    %v898 = vpop.f32.mrf.mxu0
    %v899 = vadd.f32 0.0, %v898
    %v900 = vpop.f32.mrf.mxu0
    %901 = vmatprep.mubr.f32.mxu0 %v776
    %902 = vmatmul.mubr.f32.gmra.mxu0 %v775
    %v903 = vpop.f32.mrf.mxu0
    %v904 = vadd.f32 0.0, %v903
    %v905 = vpop.f32.mrf.mxu0
    %906 = vmatprep.mubr.f32.mxu0 %v778
    %907 = vmatmul.mubr.f32.gmra.mxu0 %v777
    %v908 = vpop.f32.mrf.mxu0
    %v909 = vadd.f32 0.0, %v908
    %v910 = vpop.f32.mrf.mxu0
    %911 = vmatprep.mubr.f32.mxu0 %v780
    %912 = vmatmul.mubr.f32.gmra.mxu0 %v779
    %v913 = vpop.f32.mrf.mxu0
    %v914 = vadd.f32 0.0, %v913
    %v915 = vpop.f32.mrf.mxu0
    %916 = vmatprep.mubr.f32.mxu0 %v782
    %917 = vmatmul.mubr.f32.gmra.mxu0 %v781
    %v918 = vpop.f32.mrf.mxu0
    %v919 = vadd.f32 0.0, %v918
    %v920 = vpop.f32.mrf.mxu0
    %921 = vmatprep.mubr.f32.mxu0 %v784
    %922 = vmatmul.mubr.f32.gmra.mxu0 %v783
    %v923 = vpop.f32.mrf.mxu0
    %v924 = vadd.f32 0.0, %v923
    %v925 = vpop.f32.mrf.mxu0
    %926 = vmatprep.mubr.f32.mxu0 %v786
    %927 = vmatmul.mubr.f32.gmra.mxu0 %v785
    %v928 = vpop.f32.mrf.mxu0
    %v929 = vadd.f32 0.0, %v928
    %v930 = vpop.f32.mrf.mxu0
    %931 = vdwg.mxu0
    %v932 = vld [vmem:[%s4] sm:$0xff]
    %v933 = vld [vmem:[%s4 + $0x8] sm:$0xff]
    %v934 = vld [vmem:[%s4 + $0x10] sm:$0xff]
    %s935 = scalar_lea.vmem %s3, 128
    %v936 = vld [vmem:[%s935] sm:$0xff]
    %v937 = vld [vmem:[%s935 + $0x8] sm:$0xff]
    %v938 = vld [vmem:[%s935 + $0x10] sm:$0xff]
    %v939 = vld [vmem:[%s935 + $0x18] sm:$0xff]
    %v940 = vld [vmem:[%s935 + $0x20] sm:$0xff]
    %v941 = vld [vmem:[%s935 + $0x28] sm:$0xff]
    %v942 = vld [vmem:[%s935 + $0x30] sm:$0xff]
    %v943 = vld [vmem:[%s935 + $0x38] sm:$0xff]
    %v944 = vld [vmem:[%s935 + $0x40] sm:$0xff]
    %v945 = vld [vmem:[%s935 + $0x48] sm:$0xff]
    %v946 = vld [vmem:[%s935 + $0x50] sm:$0xff]
    %v947 = vld [vmem:[%s935 + $0x58] sm:$0xff]
    %v948 = vld [vmem:[%s935 + $0x60] sm:$0xff]
    %v949 = vld [vmem:[%s935 + $0x68] sm:$0xff]
    %v950 = vld [vmem:[%s935 + $0x70] sm:$0xff]
    %v951 = vld [vmem:[%s935 + $0x78] sm:$0xff]
    %v952 = vunpack.c.l.bf16 %v936
    %v953 = vunpack.c.h.bf16 %v936
    %v954 = vunpack.c.l.bf16 %v937
    %v955 = vunpack.c.h.bf16 %v937
    %v956 = vunpack.c.l.bf16 %v938
    %v957 = vunpack.c.h.bf16 %v938
    %v958 = vunpack.c.l.bf16 %v939
    %v959 = vunpack.c.h.bf16 %v939
    %v960 = vunpack.c.l.bf16 %v940
    %v961 = vunpack.c.h.bf16 %v940
    %v962 = vunpack.c.l.bf16 %v941
    %v963 = vunpack.c.h.bf16 %v941
    %v964 = vunpack.c.l.bf16 %v942
    %v965 = vunpack.c.h.bf16 %v942
    %v966 = vunpack.c.l.bf16 %v943
    %v967 = vunpack.c.h.bf16 %v943
    %v968 = vunpack.c.l.bf16 %v944
    %v969 = vunpack.c.h.bf16 %v944
    %v970 = vunpack.c.l.bf16 %v945
    %v971 = vunpack.c.h.bf16 %v945
    %v972 = vunpack.c.l.bf16 %v946
    %v973 = vunpack.c.h.bf16 %v946
    %v974 = vunpack.c.l.bf16 %v947
    %v975 = vunpack.c.h.bf16 %v947
    %v976 = vunpack.c.l.bf16 %v948
    %v977 = vunpack.c.h.bf16 %v948
    %v978 = vunpack.c.l.bf16 %v949
    %v979 = vunpack.c.h.bf16 %v949
    %v980 = vunpack.c.l.bf16 %v950
    %v981 = vunpack.c.h.bf16 %v950
    %v982 = vunpack.c.l.bf16 %v951
    %v983 = vunpack.c.h.bf16 %v951
    %984 = vmatprep.subr.mxu0 0.0
    %985 = vmatpush1.msra.mxu0 %v656
    %986 = vmatprep.subr.mxu0 0.0
    %987 = vmatpush1.msra.mxu0 %v651
    %988 = vmatprep.subr.mxu0 0.0
    %989 = vmatpush1.msra.mxu0 %v646
    %990 = vmatprep.subr.mxu0 0.0
    %991 = vmatpush1.msra.mxu0 %v641
    %992 = vmatprep.subr.mxu0 0.0
    %993 = vmatpush1.msra.mxu0 %v636
    %994 = vmatprep.subr.mxu0 0.0
    %995 = vmatpush1.msra.mxu0 %v631
    %996 = vmatprep.subr.mxu0 0.0
    %997 = vmatpush1.msra.mxu0 %v626
    %998 = vmatprep.subr.mxu0 0.0
    %999 = vmatpush1.msra.mxu0 %v621
    %1000 = vmatprep.subr.mxu0 0.0
    %1001 = vmatpush1.msra.mxu0 %v616
    %1002 = vmatprep.subr.mxu0 0.0
    %1003 = vmatpush1.msra.mxu0 %v611
    %1004 = vmatprep.subr.mxu0 0.0
    %1005 = vmatpush1.msra.mxu0 %v606
    %1006 = vmatprep.subr.mxu0 0.0
    %1007 = vmatpush1.msra.mxu0 %v601
    %1008 = vmatprep.subr.mxu0 0.0
    %1009 = vmatpush1.msra.mxu0 %v596
    %1010 = vmatprep.subr.mxu0 0.0
    %1011 = vmatpush1.msra.mxu0 %v591
    %1012 = vmatprep.subr.mxu0 0.0
    %1013 = vmatpush1.msra.mxu0 %v586
    %1014 = vmatprep.subr.mxu0 0.0
    %1015 = vmatpush1.msra.mxu0 %v581
    %1016 = vmatprep.subr.mxu0 0.0
    %1017 = vmatpush2.msra.mxu0 %v736
    %1018 = vmatprep.subr.mxu0 0.0
    %1019 = vmatpush2.msra.mxu0 %v731
    %1020 = vmatprep.subr.mxu0 0.0
    %1021 = vmatpush2.msra.mxu0 %v726
    %1022 = vmatprep.subr.mxu0 0.0
    %1023 = vmatpush2.msra.mxu0 %v721
    %1024 = vmatprep.subr.mxu0 0.0
    %1025 = vmatpush2.msra.mxu0 %v716
    %1026 = vmatprep.subr.mxu0 0.0
    %1027 = vmatpush2.msra.mxu0 %v711
    %1028 = vmatprep.subr.mxu0 0.0
    %1029 = vmatpush2.msra.mxu0 %v706
    %1030 = vmatprep.subr.mxu0 0.0
    %1031 = vmatpush2.msra.mxu0 %v701
    %1032 = vmatprep.subr.mxu0 0.0
    %1033 = vmatpush2.msra.mxu0 %v696
    %1034 = vmatprep.subr.mxu0 0.0
    %1035 = vmatpush2.msra.mxu0 %v691
    %1036 = vmatprep.subr.mxu0 0.0
    %1037 = vmatpush2.msra.mxu0 %v686
    %1038 = vmatprep.subr.mxu0 0.0
    %1039 = vmatpush2.msra.mxu0 %v681
    %1040 = vmatprep.subr.mxu0 0.0
    %1041 = vmatpush2.msra.mxu0 %v676
    %1042 = vmatprep.subr.mxu0 0.0
    %1043 = vmatpush2.msra.mxu0 %v671
    %1044 = vmatprep.subr.mxu0 0.0
    %1045 = vmatpush2.msra.mxu0 %v666
    %1046 = vmatprep.subr.mxu0 0.0
    %1047 = vmatpush2.msra.mxu0 %v661
    %1048 = vmatprep.mubr.f32.mxu0 %v953
    %1049 = vmatmul.mubr.f32.gmra.mxu0 %v952
    %v1050 = vpop.f32.mrf.mxu0
    %v1051 = vadd.f32 0.0, %v1050
    %v1052 = vpop.f32.mrf.mxu0
    %1053 = vmatprep.mubr.f32.mxu0 %v955
    %1054 = vmatmul.mubr.f32.gmra.mxu0 %v954
    %v1055 = vpop.f32.mrf.mxu0
    %v1056 = vadd.f32 0.0, %v1055
    %v1057 = vpop.f32.mrf.mxu0
    %1058 = vmatprep.mubr.f32.mxu0 %v957
    %1059 = vmatmul.mubr.f32.gmra.mxu0 %v956
    %v1060 = vpop.f32.mrf.mxu0
    %v1061 = vadd.f32 0.0, %v1060
    %v1062 = vpop.f32.mrf.mxu0
    %1063 = vmatprep.mubr.f32.mxu0 %v959
    %1064 = vmatmul.mubr.f32.gmra.mxu0 %v958
    %v1065 = vpop.f32.mrf.mxu0
    %v1066 = vadd.f32 0.0, %v1065
    %v1067 = vpop.f32.mrf.mxu0
    %1068 = vmatprep.mubr.f32.mxu0 %v961
    %1069 = vmatmul.mubr.f32.gmra.mxu0 %v960
    %v1070 = vpop.f32.mrf.mxu0
    %v1071 = vadd.f32 0.0, %v1070
    %v1072 = vpop.f32.mrf.mxu0
    %1073 = vmatprep.mubr.f32.mxu0 %v963
    %1074 = vmatmul.mubr.f32.gmra.mxu0 %v962
    %v1075 = vpop.f32.mrf.mxu0
    %v1076 = vadd.f32 0.0, %v1075
    %v1077 = vpop.f32.mrf.mxu0
    %1078 = vmatprep.mubr.f32.mxu0 %v965
    %1079 = vmatmul.mubr.f32.gmra.mxu0 %v964
    %v1080 = vpop.f32.mrf.mxu0
    %v1081 = vadd.f32 0.0, %v1080
    %v1082 = vpop.f32.mrf.mxu0
    %1083 = vmatprep.mubr.f32.mxu0 %v967
    %1084 = vmatmul.mubr.f32.gmra.mxu0 %v966
    %v1085 = vpop.f32.mrf.mxu0
    %v1086 = vadd.f32 0.0, %v1085
    %v1087 = vpop.f32.mrf.mxu0
    %1088 = vmatprep.mubr.f32.mxu0 %v969
    %1089 = vmatmul.mubr.f32.gmra.mxu0 %v968
    %v1090 = vpop.f32.mrf.mxu0
    %v1091 = vadd.f32 0.0, %v1090
    %v1092 = vpop.f32.mrf.mxu0
    %1093 = vmatprep.mubr.f32.mxu0 %v971
    %1094 = vmatmul.mubr.f32.gmra.mxu0 %v970
    %v1095 = vpop.f32.mrf.mxu0
    %v1096 = vadd.f32 0.0, %v1095
    %v1097 = vpop.f32.mrf.mxu0
    %1098 = vmatprep.mubr.f32.mxu0 %v973
    %1099 = vmatmul.mubr.f32.gmra.mxu0 %v972
    %v1100 = vpop.f32.mrf.mxu0
    %v1101 = vadd.f32 0.0, %v1100
    %v1102 = vpop.f32.mrf.mxu0
    %1103 = vmatprep.mubr.f32.mxu0 %v975
    %1104 = vmatmul.mubr.f32.gmra.mxu0 %v974
    %v1105 = vpop.f32.mrf.mxu0
    %v1106 = vadd.f32 0.0, %v1105
    %v1107 = vpop.f32.mrf.mxu0
    %1108 = vmatprep.mubr.f32.mxu0 %v977
    %1109 = vmatmul.mubr.f32.gmra.mxu0 %v976
    %v1110 = vpop.f32.mrf.mxu0
    %v1111 = vadd.f32 0.0, %v1110
    %v1112 = vpop.f32.mrf.mxu0
    %1113 = vmatprep.mubr.f32.mxu0 %v979
    %1114 = vmatmul.mubr.f32.gmra.mxu0 %v978
    %v1115 = vpop.f32.mrf.mxu0
    %v1116 = vadd.f32 0.0, %v1115
    %v1117 = vpop.f32.mrf.mxu0
    %1118 = vmatprep.mubr.f32.mxu0 %v981
    %1119 = vmatmul.mubr.f32.gmra.mxu0 %v980
    %v1120 = vpop.f32.mrf.mxu0
    %v1121 = vadd.f32 0.0, %v1120
    %v1122 = vpop.f32.mrf.mxu0
    %1123 = vmatprep.mubr.f32.mxu0 %v983
    %1124 = vmatmul.mubr.f32.gmra.mxu0 %v982
    %v1125 = vpop.f32.mrf.mxu0
    %v1126 = vadd.f32 0.0, %v1125
    %v1127 = vpop.f32.mrf.mxu0
    %1128 = vdwg.mxu0
    %s1129 = scalar_lea.vmem %s4, 24
    %v1130 = vld [vmem:[%s1129] sm:$0xff]
    %v1131 = vld [vmem:[%s1129 + $0x8] sm:$0xff]
    %v1132 = vld [vmem:[%s1129 + $0x10] sm:$0xff]
    %vm1133 = vcmask 195584
    %v1135 = vsel %vm1133, %v1051, 0
    %v1138 = vsel %vm1133, %v1056, 0
    %v1141 = vsel %vm1133, %v1061, 0
    %v1144 = vsel %vm1133, %v1066, 0
    %v1147 = vsel %vm1133, %v1071, 0
    %v1150 = vsel %vm1133, %v1076, 0
    %v1153 = vsel %vm1133, %v1081, 0
    %v1156 = vsel %vm1133, %v1086, 0
    %v1159 = vsel %vm1133, %v1091, 0
    %v1162 = vsel %vm1133, %v1096, 0
    %v1165 = vsel %vm1133, %v1101, 0
    %v1168 = vsel %vm1133, %v1106, 0
    %v1171 = vsel %vm1133, %v1111, 0
    %v1174 = vsel %vm1133, %v1116, 0
    %v1177 = vsel %vm1133, %v1121, 0
    %v1180 = vsel %vm1133, %v1126, 0
    %1182 = vmatprep.subr.mxu0 0.0
    %1183 = vmatpush1.msra.mxu0 0.0
    %1184 = vmatprep.subr.mxu0 0.0
    %1185 = vmatpush1.msra.mxu0 0.0
    %1186 = vmatprep.subr.mxu0 0.0
    %1187 = vmatpush1.msra.mxu0 0.0
    %1188 = vmatprep.subr.mxu0 0.0
    %1189 = vmatpush1.msra.mxu0 0.0
    %1190 = vmatprep.subr.mxu0 0.0
    %1191 = vmatpush1.msra.mxu0 0.0
    %1192 = vmatprep.subr.mxu0 0.0
    %1193 = vmatpush1.msra.mxu0 0.0
    %1194 = vmatprep.subr.mxu0 0.0
    %1195 = vmatpush1.msra.mxu0 0.0
    %1196 = vmatprep.subr.mxu0 0.0
    %1197 = vmatpush1.msra.mxu0 0.0
    %1198 = vmatprep.subr.mxu0 0.0
    %1199 = vmatpush1.msra.mxu0 0.0
    %1200 = vmatprep.subr.mxu0 0.0
    %1201 = vmatpush1.msra.mxu0 0.0
    %1202 = vmatprep.subr.mxu0 0.0
    %1203 = vmatpush1.msra.mxu0 0.0
    %1204 = vmatprep.subr.mxu0 0.0
    %1205 = vmatpush1.msra.mxu0 0.0
    %1206 = vmatprep.subr.mxu0 0.0
    %1207 = vmatpush1.msra.mxu0 0.0
    %1208 = vmatprep.subr.mxu0 0.0
    %1209 = vmatpush1.msra.mxu0 %v1132
    %1210 = vmatprep.subr.mxu0 0.0
    %1211 = vmatpush1.msra.mxu0 %v1131
    %1212 = vmatprep.subr.mxu0 0.0
    %1213 = vmatpush1.msra.mxu0 %v1130
    %1214 = vmatprep.subr.mxu0 0.0
    %1215 = vmatpush2.msra.mxu0 0.0
    %1216 = vmatprep.subr.mxu0 0.0
    %1217 = vmatpush2.msra.mxu0 0.0
    %1218 = vmatprep.subr.mxu0 0.0
    %1219 = vmatpush2.msra.mxu0 0.0
    %1220 = vmatprep.subr.mxu0 0.0
    %1221 = vmatpush2.msra.mxu0 0.0
    %1222 = vmatprep.subr.mxu0 0.0
    %1223 = vmatpush2.msra.mxu0 0.0
    %1224 = vmatprep.subr.mxu0 0.0
    %1225 = vmatpush2.msra.mxu0 0.0
    %1226 = vmatprep.subr.mxu0 0.0
    %1227 = vmatpush2.msra.mxu0 0.0
    %1228 = vmatprep.subr.mxu0 0.0
    %1229 = vmatpush2.msra.mxu0 0.0
    %1230 = vmatprep.subr.mxu0 0.0
    %1231 = vmatpush2.msra.mxu0 0.0
    %1232 = vmatprep.subr.mxu0 0.0
    %1233 = vmatpush2.msra.mxu0 0.0
    %1234 = vmatprep.subr.mxu0 0.0
    %1235 = vmatpush2.msra.mxu0 0.0
    %1236 = vmatprep.subr.mxu0 0.0
    %1237 = vmatpush2.msra.mxu0 0.0
    %1238 = vmatprep.subr.mxu0 0.0
    %1239 = vmatpush2.msra.mxu0 0.0
    %1240 = vmatprep.subr.mxu0 0.0
    %1241 = vmatpush2.msra.mxu0 0.0
    %1242 = vmatprep.subr.mxu0 0.0
    %1243 = vmatpush2.msra.mxu0 0.0
    %1244 = vmatprep.subr.mxu0 0.0
    %1245 = vmatpush2.msra.mxu0 0.0
    %1246 = vmatprep.mubr.f32.mxu0 0.0
    %1247 = vmatmul.mubr.f32.gmra.mxu0 %v1135
    %v1248 = vpop.f32.mrf.mxu0
    %v1249 = vadd.f32 0.0, %v1248
    %v1250 = vpop.f32.mrf.mxu0
    %1251 = vmatprep.mubr.f32.mxu0 0.0
    %1252 = vmatmul.mubr.f32.gmra.mxu0 %v1138
    %v1253 = vpop.f32.mrf.mxu0
    %v1254 = vadd.f32 0.0, %v1253
    %v1255 = vpop.f32.mrf.mxu0
    %1256 = vmatprep.mubr.f32.mxu0 0.0
    %1257 = vmatmul.mubr.f32.gmra.mxu0 %v1141
    %v1258 = vpop.f32.mrf.mxu0
    %v1259 = vadd.f32 0.0, %v1258
    %v1260 = vpop.f32.mrf.mxu0
    %1261 = vmatprep.mubr.f32.mxu0 0.0
    %1262 = vmatmul.mubr.f32.gmra.mxu0 %v1144
    %v1263 = vpop.f32.mrf.mxu0
    %v1264 = vadd.f32 0.0, %v1263
    %v1265 = vpop.f32.mrf.mxu0
    %1266 = vmatprep.mubr.f32.mxu0 0.0
    %1267 = vmatmul.mubr.f32.gmra.mxu0 %v1147
    %v1268 = vpop.f32.mrf.mxu0
    %v1269 = vadd.f32 0.0, %v1268
    %v1270 = vpop.f32.mrf.mxu0
    %1271 = vmatprep.mubr.f32.mxu0 0.0
    %1272 = vmatmul.mubr.f32.gmra.mxu0 %v1150
    %v1273 = vpop.f32.mrf.mxu0
    %v1274 = vadd.f32 0.0, %v1273
    %v1275 = vpop.f32.mrf.mxu0
    %1276 = vmatprep.mubr.f32.mxu0 0.0
    %1277 = vmatmul.mubr.f32.gmra.mxu0 %v1153
    %v1278 = vpop.f32.mrf.mxu0
    %v1279 = vadd.f32 0.0, %v1278
    %v1280 = vpop.f32.mrf.mxu0
    %1281 = vmatprep.mubr.f32.mxu0 0.0
    %1282 = vmatmul.mubr.f32.gmra.mxu0 %v1156
    %v1283 = vpop.f32.mrf.mxu0
    %v1284 = vadd.f32 0.0, %v1283
    %v1285 = vpop.f32.mrf.mxu0
    %1286 = vmatprep.mubr.f32.mxu0 0.0
    %1287 = vmatmul.mubr.f32.gmra.mxu0 %v1159
    %v1288 = vpop.f32.mrf.mxu0
    %v1289 = vadd.f32 0.0, %v1288
    %v1290 = vpop.f32.mrf.mxu0
    %1291 = vmatprep.mubr.f32.mxu0 0.0
    %1292 = vmatmul.mubr.f32.gmra.mxu0 %v1162
    %v1293 = vpop.f32.mrf.mxu0
    %v1294 = vadd.f32 0.0, %v1293
    %v1295 = vpop.f32.mrf.mxu0
    %1296 = vmatprep.mubr.f32.mxu0 0.0
    %1297 = vmatmul.mubr.f32.gmra.mxu0 %v1165
    %v1298 = vpop.f32.mrf.mxu0
    %v1299 = vadd.f32 0.0, %v1298
    %v1300 = vpop.f32.mrf.mxu0
    %1301 = vmatprep.mubr.f32.mxu0 0.0
    %1302 = vmatmul.mubr.f32.gmra.mxu0 %v1168
    %v1303 = vpop.f32.mrf.mxu0
    %v1304 = vadd.f32 0.0, %v1303
    %v1305 = vpop.f32.mrf.mxu0
    %1306 = vmatprep.mubr.f32.mxu0 0.0
    %1307 = vmatmul.mubr.f32.gmra.mxu0 %v1171
    %v1308 = vpop.f32.mrf.mxu0
    %v1309 = vadd.f32 0.0, %v1308
    %v1310 = vpop.f32.mrf.mxu0
    %1311 = vmatprep.mubr.f32.mxu0 0.0
    %1312 = vmatmul.mubr.f32.gmra.mxu0 %v1174
    %v1313 = vpop.f32.mrf.mxu0
    %v1314 = vadd.f32 0.0, %v1313
    %v1315 = vpop.f32.mrf.mxu0
    %1316 = vmatprep.mubr.f32.mxu0 0.0
    %1317 = vmatmul.mubr.f32.gmra.mxu0 %v1177
    %v1318 = vpop.f32.mrf.mxu0
    %v1319 = vadd.f32 0.0, %v1318
    %v1320 = vpop.f32.mrf.mxu0
    %1321 = vmatprep.mubr.f32.mxu0 0.0
    %1322 = vmatmul.mubr.f32.gmra.mxu0 %v1180
    %v1323 = vpop.f32.mrf.mxu0
    %v1324 = vadd.f32 0.0, %v1323
    %v1325 = vpop.f32.mrf.mxu0
    %1326 = vdwg.mxu0
    %v1328 = vsel %vm1133, %v854, 0
    %v1331 = vsel %vm1133, %v859, 0
    %v1334 = vsel %vm1133, %v864, 0
    %v1337 = vsel %vm1133, %v869, 0
    %v1340 = vsel %vm1133, %v874, 0
    %v1343 = vsel %vm1133, %v879, 0
    %v1346 = vsel %vm1133, %v884, 0
    %v1349 = vsel %vm1133, %v889, 0
    %v1352 = vsel %vm1133, %v894, 0
    %v1355 = vsel %vm1133, %v899, 0
    %v1358 = vsel %vm1133, %v904, 0
    %v1361 = vsel %vm1133, %v909, 0
    %v1364 = vsel %vm1133, %v914, 0
    %v1367 = vsel %vm1133, %v919, 0
    %v1370 = vsel %vm1133, %v924, 0
    %v1373 = vsel %vm1133, %v929, 0
    %1375 = vmatprep.subr.mxu0 0.0
    %1376 = vmatpush1.msra.mxu0 0.0
    %1377 = vmatprep.subr.mxu0 0.0
    %1378 = vmatpush1.msra.mxu0 0.0
    %1379 = vmatprep.subr.mxu0 0.0
    %1380 = vmatpush1.msra.mxu0 0.0
    %1381 = vmatprep.subr.mxu0 0.0
    %1382 = vmatpush1.msra.mxu0 0.0
    %1383 = vmatprep.subr.mxu0 0.0
    %1384 = vmatpush1.msra.mxu0 0.0
    %1385 = vmatprep.subr.mxu0 0.0
    %1386 = vmatpush1.msra.mxu0 0.0
    %1387 = vmatprep.subr.mxu0 0.0
    %1388 = vmatpush1.msra.mxu0 0.0
    %1389 = vmatprep.subr.mxu0 0.0
    %1390 = vmatpush1.msra.mxu0 0.0
    %1391 = vmatprep.subr.mxu0 0.0
    %1392 = vmatpush1.msra.mxu0 0.0
    %1393 = vmatprep.subr.mxu0 0.0
    %1394 = vmatpush1.msra.mxu0 0.0
    %1395 = vmatprep.subr.mxu0 0.0
    %1396 = vmatpush1.msra.mxu0 0.0
    %1397 = vmatprep.subr.mxu0 0.0
    %1398 = vmatpush1.msra.mxu0 0.0
    %1399 = vmatprep.subr.mxu0 0.0
    %1400 = vmatpush1.msra.mxu0 0.0
    %1401 = vmatprep.subr.mxu0 0.0
    %1402 = vmatpush1.msra.mxu0 %v934
    %1403 = vmatprep.subr.mxu0 0.0
    %1404 = vmatpush1.msra.mxu0 %v933
    %1405 = vmatprep.subr.mxu0 0.0
    %1406 = vmatpush1.msra.mxu0 %v932
    %1407 = vmatprep.subr.mxu0 0.0
    %1408 = vmatpush2.msra.mxu0 0.0
    %1409 = vmatprep.subr.mxu0 0.0
    %1410 = vmatpush2.msra.mxu0 0.0
    %1411 = vmatprep.subr.mxu0 0.0
    %1412 = vmatpush2.msra.mxu0 0.0
    %1413 = vmatprep.subr.mxu0 0.0
    %1414 = vmatpush2.msra.mxu0 0.0
    %1415 = vmatprep.subr.mxu0 0.0
    %1416 = vmatpush2.msra.mxu0 0.0
    %1417 = vmatprep.subr.mxu0 0.0
    %1418 = vmatpush2.msra.mxu0 0.0
    %1419 = vmatprep.subr.mxu0 0.0
    %1420 = vmatpush2.msra.mxu0 0.0
    %1421 = vmatprep.subr.mxu0 0.0
    %1422 = vmatpush2.msra.mxu0 0.0
    %1423 = vmatprep.subr.mxu0 0.0
    %1424 = vmatpush2.msra.mxu0 0.0
    %1425 = vmatprep.subr.mxu0 0.0
    %1426 = vmatpush2.msra.mxu0 0.0
    %1427 = vmatprep.subr.mxu0 0.0
    %1428 = vmatpush2.msra.mxu0 0.0
    %1429 = vmatprep.subr.mxu0 0.0
    %1430 = vmatpush2.msra.mxu0 0.0
    %1431 = vmatprep.subr.mxu0 0.0
    %1432 = vmatpush2.msra.mxu0 0.0
    %1433 = vmatprep.subr.mxu0 0.0
    %1434 = vmatpush2.msra.mxu0 0.0
    %1435 = vmatprep.subr.mxu0 0.0
    %1436 = vmatpush2.msra.mxu0 0.0
    %1437 = vmatprep.subr.mxu0 0.0
    %1438 = vmatpush2.msra.mxu0 0.0
    %1439 = vmatprep.mubr.f32.mxu0 0.0
    %1440 = vmatmul.mubr.f32.gmra.mxu0 %v1328
    %v1441 = vpop.f32.mrf.mxu0
    %v1442 = vadd.f32 %v1249, %v1441
    %v1443 = vpop.f32.mrf.mxu0
    %1444 = vmatprep.mubr.f32.mxu0 0.0
    %1445 = vmatmul.mubr.f32.gmra.mxu0 %v1331
    %v1446 = vpop.f32.mrf.mxu0
    %v1447 = vadd.f32 %v1254, %v1446
    %v1448 = vpop.f32.mrf.mxu0
    %1449 = vmatprep.mubr.f32.mxu0 0.0
    %1450 = vmatmul.mubr.f32.gmra.mxu0 %v1334
    %v1451 = vpop.f32.mrf.mxu0
    %v1452 = vadd.f32 %v1259, %v1451
    %v1453 = vpop.f32.mrf.mxu0
    %1454 = vmatprep.mubr.f32.mxu0 0.0
    %1455 = vmatmul.mubr.f32.gmra.mxu0 %v1337
    %v1456 = vpop.f32.mrf.mxu0
    %v1457 = vadd.f32 %v1264, %v1456
    %v1458 = vpop.f32.mrf.mxu0
    %1459 = vmatprep.mubr.f32.mxu0 0.0
    %1460 = vmatmul.mubr.f32.gmra.mxu0 %v1340
    %v1461 = vpop.f32.mrf.mxu0
    %v1462 = vadd.f32 %v1269, %v1461
    %v1463 = vpop.f32.mrf.mxu0
    %1464 = vmatprep.mubr.f32.mxu0 0.0
    %1465 = vmatmul.mubr.f32.gmra.mxu0 %v1343
    %v1466 = vpop.f32.mrf.mxu0
    %v1467 = vadd.f32 %v1274, %v1466
    %v1468 = vpop.f32.mrf.mxu0
    %1469 = vmatprep.mubr.f32.mxu0 0.0
    %1470 = vmatmul.mubr.f32.gmra.mxu0 %v1346
    %v1471 = vpop.f32.mrf.mxu0
    %v1472 = vadd.f32 %v1279, %v1471
    %v1473 = vpop.f32.mrf.mxu0
    %1474 = vmatprep.mubr.f32.mxu0 0.0
    %1475 = vmatmul.mubr.f32.gmra.mxu0 %v1349
    %v1476 = vpop.f32.mrf.mxu0
    %v1477 = vadd.f32 %v1284, %v1476
    %v1478 = vpop.f32.mrf.mxu0
    %1479 = vmatprep.mubr.f32.mxu0 0.0
    %1480 = vmatmul.mubr.f32.gmra.mxu0 %v1352
    %v1481 = vpop.f32.mrf.mxu0
    %v1482 = vadd.f32 %v1289, %v1481
    %v1483 = vpop.f32.mrf.mxu0
    %1484 = vmatprep.mubr.f32.mxu0 0.0
    %1485 = vmatmul.mubr.f32.gmra.mxu0 %v1355
    %v1486 = vpop.f32.mrf.mxu0
    %v1487 = vadd.f32 %v1294, %v1486
    %v1488 = vpop.f32.mrf.mxu0
    %1489 = vmatprep.mubr.f32.mxu0 0.0
    %1490 = vmatmul.mubr.f32.gmra.mxu0 %v1358
    %v1491 = vpop.f32.mrf.mxu0
    %v1492 = vadd.f32 %v1299, %v1491
    %v1493 = vpop.f32.mrf.mxu0
    %1494 = vmatprep.mubr.f32.mxu0 0.0
    %1495 = vmatmul.mubr.f32.gmra.mxu0 %v1361
    %v1496 = vpop.f32.mrf.mxu0
    %v1497 = vadd.f32 %v1304, %v1496
    %v1498 = vpop.f32.mrf.mxu0
    %1499 = vmatprep.mubr.f32.mxu0 0.0
    %1500 = vmatmul.mubr.f32.gmra.mxu0 %v1364
    %v1501 = vpop.f32.mrf.mxu0
    %v1502 = vadd.f32 %v1309, %v1501
    %v1503 = vpop.f32.mrf.mxu0
    %1504 = vmatprep.mubr.f32.mxu0 0.0
    %1505 = vmatmul.mubr.f32.gmra.mxu0 %v1367
    %v1506 = vpop.f32.mrf.mxu0
    %v1507 = vadd.f32 %v1314, %v1506
    %v1508 = vpop.f32.mrf.mxu0
    %1509 = vmatprep.mubr.f32.mxu0 0.0
    %1510 = vmatmul.mubr.f32.gmra.mxu0 %v1370
    %v1511 = vpop.f32.mrf.mxu0
    %v1512 = vadd.f32 %v1319, %v1511
    %v1513 = vpop.f32.mrf.mxu0
    %1514 = vmatprep.mubr.f32.mxu0 0.0
    %1515 = vmatmul.mubr.f32.gmra.mxu0 %v1373
    %v1516 = vpop.f32.mrf.mxu0
    %v1517 = vadd.f32 %v1324, %v1516
    %v1518 = vpop.f32.mrf.mxu0
    %1519 = vdwg.mxu0
    %s1520 = scalar_lea.vmem %s3, 256
    %v1521 = vld [vmem:[%s1520] sm:$0xff]
    %v1522 = vld [vmem:[%s1520 + $0x8] sm:$0xff]
    %v1523 = vld [vmem:[%s1520 + $0x10] sm:$0xff]
    %v1524 = vld [vmem:[%s1520 + $0x18] sm:$0xff]
    %v1525 = vld [vmem:[%s1520 + $0x20] sm:$0xff]
    %v1526 = vld [vmem:[%s1520 + $0x28] sm:$0xff]
    %v1527 = vld [vmem:[%s1520 + $0x30] sm:$0xff]
    %v1528 = vld [vmem:[%s1520 + $0x38] sm:$0xff]
    %v1529 = vld [vmem:[%s1520 + $0x40] sm:$0xff]
    %v1530 = vld [vmem:[%s1520 + $0x48] sm:$0xff]
    %v1531 = vld [vmem:[%s1520 + $0x50] sm:$0xff]
    %v1532 = vld [vmem:[%s1520 + $0x58] sm:$0xff]
    %v1533 = vld [vmem:[%s1520 + $0x60] sm:$0xff]
    %v1534 = vld [vmem:[%s1520 + $0x68] sm:$0xff]
    %v1535 = vld [vmem:[%s1520 + $0x70] sm:$0xff]
    %v1536 = vld [vmem:[%s1520 + $0x78] sm:$0xff]
    %v1537 = vunpack.c.l.bf16 %v1521
    %v1538 = vunpack.c.h.bf16 %v1521
    %v1539 = vunpack.c.l.bf16 %v1522
    %v1540 = vunpack.c.h.bf16 %v1522
    %v1541 = vunpack.c.l.bf16 %v1523
    %v1542 = vunpack.c.h.bf16 %v1523
    %v1543 = vunpack.c.l.bf16 %v1524
    %v1544 = vunpack.c.h.bf16 %v1524
    %v1545 = vunpack.c.l.bf16 %v1525
    %v1546 = vunpack.c.h.bf16 %v1525
    %v1547 = vunpack.c.l.bf16 %v1526
    %v1548 = vunpack.c.h.bf16 %v1526
    %v1549 = vunpack.c.l.bf16 %v1527
    %v1550 = vunpack.c.h.bf16 %v1527
    %v1551 = vunpack.c.l.bf16 %v1528
    %v1552 = vunpack.c.h.bf16 %v1528
    %v1553 = vunpack.c.l.bf16 %v1529
    %v1554 = vunpack.c.h.bf16 %v1529
    %v1555 = vunpack.c.l.bf16 %v1530
    %v1556 = vunpack.c.h.bf16 %v1530
    %v1557 = vunpack.c.l.bf16 %v1531
    %v1558 = vunpack.c.h.bf16 %v1531
    %v1559 = vunpack.c.l.bf16 %v1532
    %v1560 = vunpack.c.h.bf16 %v1532
    %v1561 = vunpack.c.l.bf16 %v1533
    %v1562 = vunpack.c.h.bf16 %v1533
    %v1563 = vunpack.c.l.bf16 %v1534
    %v1564 = vunpack.c.h.bf16 %v1534
    %v1565 = vunpack.c.l.bf16 %v1535
    %v1566 = vunpack.c.h.bf16 %v1535
    %v1567 = vunpack.c.l.bf16 %v1536
    %v1568 = vunpack.c.h.bf16 %v1536
    %1569 = vmatprep.subr.mxu0 0.0
    %1570 = vmatpush1.msra.mxu0 %v656
    %1571 = vmatprep.subr.mxu0 0.0
    %1572 = vmatpush1.msra.mxu0 %v651
    %1573 = vmatprep.subr.mxu0 0.0
    %1574 = vmatpush1.msra.mxu0 %v646
    %1575 = vmatprep.subr.mxu0 0.0
    %1576 = vmatpush1.msra.mxu0 %v641
    %1577 = vmatprep.subr.mxu0 0.0
    %1578 = vmatpush1.msra.mxu0 %v636
    %1579 = vmatprep.subr.mxu0 0.0
    %1580 = vmatpush1.msra.mxu0 %v631
    %1581 = vmatprep.subr.mxu0 0.0
    %1582 = vmatpush1.msra.mxu0 %v626
    %1583 = vmatprep.subr.mxu0 0.0
    %1584 = vmatpush1.msra.mxu0 %v621
    %1585 = vmatprep.subr.mxu0 0.0
    %1586 = vmatpush1.msra.mxu0 %v616
    %1587 = vmatprep.subr.mxu0 0.0
    %1588 = vmatpush1.msra.mxu0 %v611
    %1589 = vmatprep.subr.mxu0 0.0
    %1590 = vmatpush1.msra.mxu0 %v606
    %1591 = vmatprep.subr.mxu0 0.0
    %1592 = vmatpush1.msra.mxu0 %v601
    %1593 = vmatprep.subr.mxu0 0.0
    %1594 = vmatpush1.msra.mxu0 %v596
    %1595 = vmatprep.subr.mxu0 0.0
    %1596 = vmatpush1.msra.mxu0 %v591
    %1597 = vmatprep.subr.mxu0 0.0
    %1598 = vmatpush1.msra.mxu0 %v586
    %1599 = vmatprep.subr.mxu0 0.0
    %1600 = vmatpush1.msra.mxu0 %v581
    %1601 = vmatprep.subr.mxu0 0.0
    %1602 = vmatpush2.msra.mxu0 %v736
    %1603 = vmatprep.subr.mxu0 0.0
    %1604 = vmatpush2.msra.mxu0 %v731
    %1605 = vmatprep.subr.mxu0 0.0
    %1606 = vmatpush2.msra.mxu0 %v726
    %1607 = vmatprep.subr.mxu0 0.0
    %1608 = vmatpush2.msra.mxu0 %v721
    %1609 = vmatprep.subr.mxu0 0.0
    %1610 = vmatpush2.msra.mxu0 %v716
    %1611 = vmatprep.subr.mxu0 0.0
    %1612 = vmatpush2.msra.mxu0 %v711
    %1613 = vmatprep.subr.mxu0 0.0
    %1614 = vmatpush2.msra.mxu0 %v706
    %1615 = vmatprep.subr.mxu0 0.0
    %1616 = vmatpush2.msra.mxu0 %v701
    %1617 = vmatprep.subr.mxu0 0.0
    %1618 = vmatpush2.msra.mxu0 %v696
    %1619 = vmatprep.subr.mxu0 0.0
    %1620 = vmatpush2.msra.mxu0 %v691
    %1621 = vmatprep.subr.mxu0 0.0
    %1622 = vmatpush2.msra.mxu0 %v686
    %1623 = vmatprep.subr.mxu0 0.0
    %1624 = vmatpush2.msra.mxu0 %v681
    %1625 = vmatprep.subr.mxu0 0.0
    %1626 = vmatpush2.msra.mxu0 %v676
    %1627 = vmatprep.subr.mxu0 0.0
    %1628 = vmatpush2.msra.mxu0 %v671
    %1629 = vmatprep.subr.mxu0 0.0
    %1630 = vmatpush2.msra.mxu0 %v666
    %1631 = vmatprep.subr.mxu0 0.0
    %1632 = vmatpush2.msra.mxu0 %v661
    %1633 = vmatprep.mubr.f32.mxu0 %v1538
    %1634 = vmatmul.mubr.f32.gmra.mxu0 %v1537
    %v1635 = vpop.f32.mrf.mxu0
    %v1636 = vadd.f32 0.0, %v1635
    %v1637 = vpop.f32.mrf.mxu0
    %1638 = vmatprep.mubr.f32.mxu0 %v1540
    %1639 = vmatmul.mubr.f32.gmra.mxu0 %v1539
    %v1640 = vpop.f32.mrf.mxu0
    %v1641 = vadd.f32 0.0, %v1640
    %v1642 = vpop.f32.mrf.mxu0
    %1643 = vmatprep.mubr.f32.mxu0 %v1542
    %1644 = vmatmul.mubr.f32.gmra.mxu0 %v1541
    %v1645 = vpop.f32.mrf.mxu0
    %v1646 = vadd.f32 0.0, %v1645
    %v1647 = vpop.f32.mrf.mxu0
    %1648 = vmatprep.mubr.f32.mxu0 %v1544
    %1649 = vmatmul.mubr.f32.gmra.mxu0 %v1543
    %v1650 = vpop.f32.mrf.mxu0
    %v1651 = vadd.f32 0.0, %v1650
    %v1652 = vpop.f32.mrf.mxu0
    %1653 = vmatprep.mubr.f32.mxu0 %v1546
    %1654 = vmatmul.mubr.f32.gmra.mxu0 %v1545
    %v1655 = vpop.f32.mrf.mxu0
    %v1656 = vadd.f32 0.0, %v1655
    %v1657 = vpop.f32.mrf.mxu0
    %1658 = vmatprep.mubr.f32.mxu0 %v1548
    %1659 = vmatmul.mubr.f32.gmra.mxu0 %v1547
    %v1660 = vpop.f32.mrf.mxu0
    %v1661 = vadd.f32 0.0, %v1660
    %v1662 = vpop.f32.mrf.mxu0
    %1663 = vmatprep.mubr.f32.mxu0 %v1550
    %1664 = vmatmul.mubr.f32.gmra.mxu0 %v1549
    %v1665 = vpop.f32.mrf.mxu0
    %v1666 = vadd.f32 0.0, %v1665
    %v1667 = vpop.f32.mrf.mxu0
    %1668 = vmatprep.mubr.f32.mxu0 %v1552
    %1669 = vmatmul.mubr.f32.gmra.mxu0 %v1551
    %v1670 = vpop.f32.mrf.mxu0
    %v1671 = vadd.f32 0.0, %v1670
    %v1672 = vpop.f32.mrf.mxu0
    %1673 = vmatprep.mubr.f32.mxu0 %v1554
    %1674 = vmatmul.mubr.f32.gmra.mxu0 %v1553
    %v1675 = vpop.f32.mrf.mxu0
    %v1676 = vadd.f32 0.0, %v1675
    %v1677 = vpop.f32.mrf.mxu0
    %1678 = vmatprep.mubr.f32.mxu0 %v1556
    %1679 = vmatmul.mubr.f32.gmra.mxu0 %v1555
    %v1680 = vpop.f32.mrf.mxu0
    %v1681 = vadd.f32 0.0, %v1680
    %v1682 = vpop.f32.mrf.mxu0
    %1683 = vmatprep.mubr.f32.mxu0 %v1558
    %1684 = vmatmul.mubr.f32.gmra.mxu0 %v1557
    %v1685 = vpop.f32.mrf.mxu0
    %v1686 = vadd.f32 0.0, %v1685
    %v1687 = vpop.f32.mrf.mxu0
    %1688 = vmatprep.mubr.f32.mxu0 %v1560
    %1689 = vmatmul.mubr.f32.gmra.mxu0 %v1559
    %v1690 = vpop.f32.mrf.mxu0
    %v1691 = vadd.f32 0.0, %v1690
    %v1692 = vpop.f32.mrf.mxu0
    %1693 = vmatprep.mubr.f32.mxu0 %v1562
    %1694 = vmatmul.mubr.f32.gmra.mxu0 %v1561
    %v1695 = vpop.f32.mrf.mxu0
    %v1696 = vadd.f32 0.0, %v1695
    %v1697 = vpop.f32.mrf.mxu0
    %1698 = vmatprep.mubr.f32.mxu0 %v1564
    %1699 = vmatmul.mubr.f32.gmra.mxu0 %v1563
    %v1700 = vpop.f32.mrf.mxu0
    %v1701 = vadd.f32 0.0, %v1700
    %v1702 = vpop.f32.mrf.mxu0
    %1703 = vmatprep.mubr.f32.mxu0 %v1566
    %1704 = vmatmul.mubr.f32.gmra.mxu0 %v1565
    %v1705 = vpop.f32.mrf.mxu0
    %v1706 = vadd.f32 0.0, %v1705
    %v1707 = vpop.f32.mrf.mxu0
    %1708 = vmatprep.mubr.f32.mxu0 %v1568
    %1709 = vmatmul.mubr.f32.gmra.mxu0 %v1567
    %v1710 = vpop.f32.mrf.mxu0
    %v1711 = vadd.f32 0.0, %v1710
    %v1712 = vpop.f32.mrf.mxu0
    %1713 = vdwg.mxu0
    %s1714 = scalar_lea.vmem %s4, 48
    %v1715 = vld [vmem:[%s1714] sm:$0xff]
    %v1716 = vld [vmem:[%s1714 + $0x8] sm:$0xff]
    %v1717 = vld [vmem:[%s1714 + $0x10] sm:$0xff]
    %v1719 = vsel %vm1133, %v1636, 0
    %v1722 = vsel %vm1133, %v1641, 0
    %v1725 = vsel %vm1133, %v1646, 0
    %v1728 = vsel %vm1133, %v1651, 0
    %v1731 = vsel %vm1133, %v1656, 0
    %v1734 = vsel %vm1133, %v1661, 0
    %v1737 = vsel %vm1133, %v1666, 0
    %v1740 = vsel %vm1133, %v1671, 0
    %v1743 = vsel %vm1133, %v1676, 0
    %v1746 = vsel %vm1133, %v1681, 0
    %v1749 = vsel %vm1133, %v1686, 0
    %v1752 = vsel %vm1133, %v1691, 0
    %v1755 = vsel %vm1133, %v1696, 0
    %v1758 = vsel %vm1133, %v1701, 0
    %v1761 = vsel %vm1133, %v1706, 0
    %v1764 = vsel %vm1133, %v1711, 0
    %1766 = vmatprep.subr.mxu0 0.0
    %1767 = vmatpush1.msra.mxu0 0.0
    %1768 = vmatprep.subr.mxu0 0.0
    %1769 = vmatpush1.msra.mxu0 0.0
    %1770 = vmatprep.subr.mxu0 0.0
    %1771 = vmatpush1.msra.mxu0 0.0
    %1772 = vmatprep.subr.mxu0 0.0
    %1773 = vmatpush1.msra.mxu0 0.0
    %1774 = vmatprep.subr.mxu0 0.0
    %1775 = vmatpush1.msra.mxu0 0.0
    %1776 = vmatprep.subr.mxu0 0.0
    %1777 = vmatpush1.msra.mxu0 0.0
    %1778 = vmatprep.subr.mxu0 0.0
    %1779 = vmatpush1.msra.mxu0 0.0
    %1780 = vmatprep.subr.mxu0 0.0
    %1781 = vmatpush1.msra.mxu0 0.0
    %1782 = vmatprep.subr.mxu0 0.0
    %1783 = vmatpush1.msra.mxu0 0.0
    %1784 = vmatprep.subr.mxu0 0.0
    %1785 = vmatpush1.msra.mxu0 0.0
    %1786 = vmatprep.subr.mxu0 0.0
    %1787 = vmatpush1.msra.mxu0 0.0
    %1788 = vmatprep.subr.mxu0 0.0
    %1789 = vmatpush1.msra.mxu0 0.0
    %1790 = vmatprep.subr.mxu0 0.0
    %1791 = vmatpush1.msra.mxu0 0.0
    %1792 = vmatprep.subr.mxu0 0.0
    %1793 = vmatpush1.msra.mxu0 %v1717
    %1794 = vmatprep.subr.mxu0 0.0
    %1795 = vmatpush1.msra.mxu0 %v1716
    %1796 = vmatprep.subr.mxu0 0.0
    %1797 = vmatpush1.msra.mxu0 %v1715
    %1798 = vmatprep.subr.mxu0 0.0
    %1799 = vmatpush2.msra.mxu0 0.0
    %1800 = vmatprep.subr.mxu0 0.0
    %1801 = vmatpush2.msra.mxu0 0.0
    %1802 = vmatprep.subr.mxu0 0.0
    %1803 = vmatpush2.msra.mxu0 0.0
    %1804 = vmatprep.subr.mxu0 0.0
    %1805 = vmatpush2.msra.mxu0 0.0
    %1806 = vmatprep.subr.mxu0 0.0
    %1807 = vmatpush2.msra.mxu0 0.0
    %1808 = vmatprep.subr.mxu0 0.0
    %1809 = vmatpush2.msra.mxu0 0.0
    %1810 = vmatprep.subr.mxu0 0.0
    %1811 = vmatpush2.msra.mxu0 0.0
    %1812 = vmatprep.subr.mxu0 0.0
    %1813 = vmatpush2.msra.mxu0 0.0
    %1814 = vmatprep.subr.mxu0 0.0
    %1815 = vmatpush2.msra.mxu0 0.0
    %1816 = vmatprep.subr.mxu0 0.0
    %1817 = vmatpush2.msra.mxu0 0.0
    %1818 = vmatprep.subr.mxu0 0.0
    %1819 = vmatpush2.msra.mxu0 0.0
    %1820 = vmatprep.subr.mxu0 0.0
    %1821 = vmatpush2.msra.mxu0 0.0
    %1822 = vmatprep.subr.mxu0 0.0
    %1823 = vmatpush2.msra.mxu0 0.0
    %1824 = vmatprep.subr.mxu0 0.0
    %1825 = vmatpush2.msra.mxu0 0.0
    %1826 = vmatprep.subr.mxu0 0.0
    %1827 = vmatpush2.msra.mxu0 0.0
    %1828 = vmatprep.subr.mxu0 0.0
    %1829 = vmatpush2.msra.mxu0 0.0
    %1830 = vmatprep.mubr.f32.mxu0 0.0
    %1831 = vmatmul.mubr.f32.gmra.mxu0 %v1719
    %v1832 = vpop.f32.mrf.mxu0
    %v1833 = vadd.f32 0.0, %v1832
    %v1834 = vpop.f32.mrf.mxu0
    %1835 = vmatprep.mubr.f32.mxu0 0.0
    %1836 = vmatmul.mubr.f32.gmra.mxu0 %v1722
    %v1837 = vpop.f32.mrf.mxu0
    %v1838 = vadd.f32 0.0, %v1837
    %v1839 = vpop.f32.mrf.mxu0
    %1840 = vmatprep.mubr.f32.mxu0 0.0
    %1841 = vmatmul.mubr.f32.gmra.mxu0 %v1725
    %v1842 = vpop.f32.mrf.mxu0
    %v1843 = vadd.f32 0.0, %v1842
    %v1844 = vpop.f32.mrf.mxu0
    %1845 = vmatprep.mubr.f32.mxu0 0.0
    %1846 = vmatmul.mubr.f32.gmra.mxu0 %v1728
    %v1847 = vpop.f32.mrf.mxu0
    %v1848 = vadd.f32 0.0, %v1847
    %v1849 = vpop.f32.mrf.mxu0
    %1850 = vmatprep.mubr.f32.mxu0 0.0
    %1851 = vmatmul.mubr.f32.gmra.mxu0 %v1731
    %v1852 = vpop.f32.mrf.mxu0
    %v1853 = vadd.f32 0.0, %v1852
    %v1854 = vpop.f32.mrf.mxu0
    %1855 = vmatprep.mubr.f32.mxu0 0.0
    %1856 = vmatmul.mubr.f32.gmra.mxu0 %v1734
    %v1857 = vpop.f32.mrf.mxu0
    %v1858 = vadd.f32 0.0, %v1857
    %v1859 = vpop.f32.mrf.mxu0
    %1860 = vmatprep.mubr.f32.mxu0 0.0
    %1861 = vmatmul.mubr.f32.gmra.mxu0 %v1737
    %v1862 = vpop.f32.mrf.mxu0
    %v1863 = vadd.f32 0.0, %v1862
    %v1864 = vpop.f32.mrf.mxu0
    %1865 = vmatprep.mubr.f32.mxu0 0.0
    %1866 = vmatmul.mubr.f32.gmra.mxu0 %v1740
    %v1867 = vpop.f32.mrf.mxu0
    %v1868 = vadd.f32 0.0, %v1867
    %v1869 = vpop.f32.mrf.mxu0
    %1870 = vmatprep.mubr.f32.mxu0 0.0
    %1871 = vmatmul.mubr.f32.gmra.mxu0 %v1743
    %v1872 = vpop.f32.mrf.mxu0
    %v1873 = vadd.f32 0.0, %v1872
    %v1874 = vpop.f32.mrf.mxu0
    %1875 = vmatprep.mubr.f32.mxu0 0.0
    %1876 = vmatmul.mubr.f32.gmra.mxu0 %v1746
    %v1877 = vpop.f32.mrf.mxu0
    %v1878 = vadd.f32 0.0, %v1877
    %v1879 = vpop.f32.mrf.mxu0
    %1880 = vmatprep.mubr.f32.mxu0 0.0
    %1881 = vmatmul.mubr.f32.gmra.mxu0 %v1749
    %v1882 = vpop.f32.mrf.mxu0
    %v1883 = vadd.f32 0.0, %v1882
    %v1884 = vpop.f32.mrf.mxu0
    %1885 = vmatprep.mubr.f32.mxu0 0.0
    %1886 = vmatmul.mubr.f32.gmra.mxu0 %v1752
    %v1887 = vpop.f32.mrf.mxu0
    %v1888 = vadd.f32 0.0, %v1887
    %v1889 = vpop.f32.mrf.mxu0
    %1890 = vmatprep.mubr.f32.mxu0 0.0
    %1891 = vmatmul.mubr.f32.gmra.mxu0 %v1755
    %v1892 = vpop.f32.mrf.mxu0
    %v1893 = vadd.f32 0.0, %v1892
    %v1894 = vpop.f32.mrf.mxu0
    %1895 = vmatprep.mubr.f32.mxu0 0.0
    %1896 = vmatmul.mubr.f32.gmra.mxu0 %v1758
    %v1897 = vpop.f32.mrf.mxu0
    %v1898 = vadd.f32 0.0, %v1897
    %v1899 = vpop.f32.mrf.mxu0
    %1900 = vmatprep.mubr.f32.mxu0 0.0
    %1901 = vmatmul.mubr.f32.gmra.mxu0 %v1761
    %v1902 = vpop.f32.mrf.mxu0
    %v1903 = vadd.f32 0.0, %v1902
    %v1904 = vpop.f32.mrf.mxu0
    %1905 = vmatprep.mubr.f32.mxu0 0.0
    %1906 = vmatmul.mubr.f32.gmra.mxu0 %v1764
    %v1907 = vpop.f32.mrf.mxu0
    %v1908 = vadd.f32 0.0, %v1907
    %v1909 = vpop.f32.mrf.mxu0
    %1910 = vdwg.mxu0
    %v1911 = vadd.f32 %v1442, %v1833
    %v1912 = vadd.f32 %v1447, %v1838
    %v1913 = vadd.f32 %v1452, %v1843
    %v1914 = vadd.f32 %v1457, %v1848
    %v1915 = vadd.f32 %v1462, %v1853
    %v1916 = vadd.f32 %v1467, %v1858
    %v1917 = vadd.f32 %v1472, %v1863
    %v1918 = vadd.f32 %v1477, %v1868
    %v1919 = vadd.f32 %v1482, %v1873
    %v1920 = vadd.f32 %v1487, %v1878
    %v1921 = vadd.f32 %v1492, %v1883
    %v1922 = vadd.f32 %v1497, %v1888
    %v1923 = vadd.f32 %v1502, %v1893
    %v1924 = vadd.f32 %v1507, %v1898
    %v1925 = vadd.f32 %v1512, %v1903
    %v1926 = vadd.f32 %v1517, %v1908
    %s1927 = scalar_lea.vmem %s3, 384
    %v1928 = vld [vmem:[%s1927] sm:$0xff]
    %v1929 = vld [vmem:[%s1927 + $0x8] sm:$0xff]
    %v1930 = vld [vmem:[%s1927 + $0x10] sm:$0xff]
    %v1931 = vld [vmem:[%s1927 + $0x18] sm:$0xff]
    %v1932 = vld [vmem:[%s1927 + $0x20] sm:$0xff]
    %v1933 = vld [vmem:[%s1927 + $0x28] sm:$0xff]
    %v1934 = vld [vmem:[%s1927 + $0x30] sm:$0xff]
    %v1935 = vld [vmem:[%s1927 + $0x38] sm:$0xff]
    %v1936 = vld [vmem:[%s1927 + $0x40] sm:$0xff]
    %v1937 = vld [vmem:[%s1927 + $0x48] sm:$0xff]
    %v1938 = vld [vmem:[%s1927 + $0x50] sm:$0xff]
    %v1939 = vld [vmem:[%s1927 + $0x58] sm:$0xff]
    %v1940 = vld [vmem:[%s1927 + $0x60] sm:$0xff]
    %v1941 = vld [vmem:[%s1927 + $0x68] sm:$0xff]
    %v1942 = vld [vmem:[%s1927 + $0x70] sm:$0xff]
    %v1943 = vld [vmem:[%s1927 + $0x78] sm:$0xff]
    %v1944 = vunpack.c.l.bf16 %v1928
    %v1945 = vunpack.c.h.bf16 %v1928
    %v1946 = vunpack.c.l.bf16 %v1929
    %v1947 = vunpack.c.h.bf16 %v1929
    %v1948 = vunpack.c.l.bf16 %v1930
    %v1949 = vunpack.c.h.bf16 %v1930
    %v1950 = vunpack.c.l.bf16 %v1931
    %v1951 = vunpack.c.h.bf16 %v1931
    %v1952 = vunpack.c.l.bf16 %v1932
    %v1953 = vunpack.c.h.bf16 %v1932
    %v1954 = vunpack.c.l.bf16 %v1933
    %v1955 = vunpack.c.h.bf16 %v1933
    %v1956 = vunpack.c.l.bf16 %v1934
    %v1957 = vunpack.c.h.bf16 %v1934
    %v1958 = vunpack.c.l.bf16 %v1935
    %v1959 = vunpack.c.h.bf16 %v1935
    %v1960 = vunpack.c.l.bf16 %v1936
    %v1961 = vunpack.c.h.bf16 %v1936
    %v1962 = vunpack.c.l.bf16 %v1937
    %v1963 = vunpack.c.h.bf16 %v1937
    %v1964 = vunpack.c.l.bf16 %v1938
    %v1965 = vunpack.c.h.bf16 %v1938
    %v1966 = vunpack.c.l.bf16 %v1939
    %v1967 = vunpack.c.h.bf16 %v1939
    %v1968 = vunpack.c.l.bf16 %v1940
    %v1969 = vunpack.c.h.bf16 %v1940
    %v1970 = vunpack.c.l.bf16 %v1941
    %v1971 = vunpack.c.h.bf16 %v1941
    %v1972 = vunpack.c.l.bf16 %v1942
    %v1973 = vunpack.c.h.bf16 %v1942
    %v1974 = vunpack.c.l.bf16 %v1943
    %v1975 = vunpack.c.h.bf16 %v1943
    %1976 = vmatprep.subr.mxu0 0.0
    %1977 = vmatpush1.msra.mxu0 %v656
    %1978 = vmatprep.subr.mxu0 0.0
    %1979 = vmatpush1.msra.mxu0 %v651
    %1980 = vmatprep.subr.mxu0 0.0
    %1981 = vmatpush1.msra.mxu0 %v646
    %1982 = vmatprep.subr.mxu0 0.0
    %1983 = vmatpush1.msra.mxu0 %v641
    %1984 = vmatprep.subr.mxu0 0.0
    %1985 = vmatpush1.msra.mxu0 %v636
    %1986 = vmatprep.subr.mxu0 0.0
    %1987 = vmatpush1.msra.mxu0 %v631
    %1988 = vmatprep.subr.mxu0 0.0
    %1989 = vmatpush1.msra.mxu0 %v626
    %1990 = vmatprep.subr.mxu0 0.0
    %1991 = vmatpush1.msra.mxu0 %v621
    %1992 = vmatprep.subr.mxu0 0.0
    %1993 = vmatpush1.msra.mxu0 %v616
    %1994 = vmatprep.subr.mxu0 0.0
    %1995 = vmatpush1.msra.mxu0 %v611
    %1996 = vmatprep.subr.mxu0 0.0
    %1997 = vmatpush1.msra.mxu0 %v606
    %1998 = vmatprep.subr.mxu0 0.0
    %1999 = vmatpush1.msra.mxu0 %v601
    %2000 = vmatprep.subr.mxu0 0.0
    %2001 = vmatpush1.msra.mxu0 %v596
    %2002 = vmatprep.subr.mxu0 0.0
    %2003 = vmatpush1.msra.mxu0 %v591
    %2004 = vmatprep.subr.mxu0 0.0
    %2005 = vmatpush1.msra.mxu0 %v586
    %2006 = vmatprep.subr.mxu0 0.0
    %2007 = vmatpush1.msra.mxu0 %v581
    %2008 = vmatprep.subr.mxu0 0.0
    %2009 = vmatpush2.msra.mxu0 %v736
    %2010 = vmatprep.subr.mxu0 0.0
    %2011 = vmatpush2.msra.mxu0 %v731
    %2012 = vmatprep.subr.mxu0 0.0
    %2013 = vmatpush2.msra.mxu0 %v726
    %2014 = vmatprep.subr.mxu0 0.0
    %2015 = vmatpush2.msra.mxu0 %v721
    %2016 = vmatprep.subr.mxu0 0.0
    %2017 = vmatpush2.msra.mxu0 %v716
    %2018 = vmatprep.subr.mxu0 0.0
    %2019 = vmatpush2.msra.mxu0 %v711
    %2020 = vmatprep.subr.mxu0 0.0
    %2021 = vmatpush2.msra.mxu0 %v706
    %2022 = vmatprep.subr.mxu0 0.0
    %2023 = vmatpush2.msra.mxu0 %v701
    %2024 = vmatprep.subr.mxu0 0.0
    %2025 = vmatpush2.msra.mxu0 %v696
    %2026 = vmatprep.subr.mxu0 0.0
    %2027 = vmatpush2.msra.mxu0 %v691
    %2028 = vmatprep.subr.mxu0 0.0
    %2029 = vmatpush2.msra.mxu0 %v686
    %2030 = vmatprep.subr.mxu0 0.0
    %2031 = vmatpush2.msra.mxu0 %v681
    %2032 = vmatprep.subr.mxu0 0.0
    %2033 = vmatpush2.msra.mxu0 %v676
    %2034 = vmatprep.subr.mxu0 0.0
    %2035 = vmatpush2.msra.mxu0 %v671
    %2036 = vmatprep.subr.mxu0 0.0
    %2037 = vmatpush2.msra.mxu0 %v666
    %2038 = vmatprep.subr.mxu0 0.0
    %2039 = vmatpush2.msra.mxu0 %v661
    %2040 = vmatprep.mubr.f32.mxu0 %v1945
    %2041 = vmatmul.mubr.f32.gmra.mxu0 %v1944
    %v2042 = vpop.f32.mrf.mxu0
    %v2043 = vadd.f32 0.0, %v2042
    %v2044 = vpop.f32.mrf.mxu0
    %2045 = vmatprep.mubr.f32.mxu0 %v1947
    %2046 = vmatmul.mubr.f32.gmra.mxu0 %v1946
    %v2047 = vpop.f32.mrf.mxu0
    %v2048 = vadd.f32 0.0, %v2047
    %v2049 = vpop.f32.mrf.mxu0
    %2050 = vmatprep.mubr.f32.mxu0 %v1949
    %2051 = vmatmul.mubr.f32.gmra.mxu0 %v1948
    %v2052 = vpop.f32.mrf.mxu0
    %v2053 = vadd.f32 0.0, %v2052
    %v2054 = vpop.f32.mrf.mxu0
    %2055 = vmatprep.mubr.f32.mxu0 %v1951
    %2056 = vmatmul.mubr.f32.gmra.mxu0 %v1950
    %v2057 = vpop.f32.mrf.mxu0
    %v2058 = vadd.f32 0.0, %v2057
    %v2059 = vpop.f32.mrf.mxu0
    %2060 = vmatprep.mubr.f32.mxu0 %v1953
    %2061 = vmatmul.mubr.f32.gmra.mxu0 %v1952
    %v2062 = vpop.f32.mrf.mxu0
    %v2063 = vadd.f32 0.0, %v2062
    %v2064 = vpop.f32.mrf.mxu0
    %2065 = vmatprep.mubr.f32.mxu0 %v1955
    %2066 = vmatmul.mubr.f32.gmra.mxu0 %v1954
    %v2067 = vpop.f32.mrf.mxu0
    %v2068 = vadd.f32 0.0, %v2067
    %v2069 = vpop.f32.mrf.mxu0
    %2070 = vmatprep.mubr.f32.mxu0 %v1957
    %2071 = vmatmul.mubr.f32.gmra.mxu0 %v1956
    %v2072 = vpop.f32.mrf.mxu0
    %v2073 = vadd.f32 0.0, %v2072
    %v2074 = vpop.f32.mrf.mxu0
    %2075 = vmatprep.mubr.f32.mxu0 %v1959
    %2076 = vmatmul.mubr.f32.gmra.mxu0 %v1958
    %v2077 = vpop.f32.mrf.mxu0
    %v2078 = vadd.f32 0.0, %v2077
    %v2079 = vpop.f32.mrf.mxu0
    %2080 = vmatprep.mubr.f32.mxu0 %v1961
    %2081 = vmatmul.mubr.f32.gmra.mxu0 %v1960
    %v2082 = vpop.f32.mrf.mxu0
    %v2083 = vadd.f32 0.0, %v2082
    %v2084 = vpop.f32.mrf.mxu0
    %2085 = vmatprep.mubr.f32.mxu0 %v1963
    %2086 = vmatmul.mubr.f32.gmra.mxu0 %v1962
    %v2087 = vpop.f32.mrf.mxu0
    %v2088 = vadd.f32 0.0, %v2087
    %v2089 = vpop.f32.mrf.mxu0
    %2090 = vmatprep.mubr.f32.mxu0 %v1965
    %2091 = vmatmul.mubr.f32.gmra.mxu0 %v1964
    %v2092 = vpop.f32.mrf.mxu0
    %v2093 = vadd.f32 0.0, %v2092
    %v2094 = vpop.f32.mrf.mxu0
    %2095 = vmatprep.mubr.f32.mxu0 %v1967
    %2096 = vmatmul.mubr.f32.gmra.mxu0 %v1966
    %v2097 = vpop.f32.mrf.mxu0
    %v2098 = vadd.f32 0.0, %v2097
    %v2099 = vpop.f32.mrf.mxu0
    %2100 = vmatprep.mubr.f32.mxu0 %v1969
    %2101 = vmatmul.mubr.f32.gmra.mxu0 %v1968
    %v2102 = vpop.f32.mrf.mxu0
    %v2103 = vadd.f32 0.0, %v2102
    %v2104 = vpop.f32.mrf.mxu0
    %2105 = vmatprep.mubr.f32.mxu0 %v1971
    %2106 = vmatmul.mubr.f32.gmra.mxu0 %v1970
    %v2107 = vpop.f32.mrf.mxu0
    %v2108 = vadd.f32 0.0, %v2107
    %v2109 = vpop.f32.mrf.mxu0
    %2110 = vmatprep.mubr.f32.mxu0 %v1973
    %2111 = vmatmul.mubr.f32.gmra.mxu0 %v1972
    %v2112 = vpop.f32.mrf.mxu0
    %v2113 = vadd.f32 0.0, %v2112
    %v2114 = vpop.f32.mrf.mxu0
    %2115 = vmatprep.mubr.f32.mxu0 %v1975
    %2116 = vmatmul.mubr.f32.gmra.mxu0 %v1974
    %v2117 = vpop.f32.mrf.mxu0
    %v2118 = vadd.f32 0.0, %v2117
    %v2119 = vpop.f32.mrf.mxu0
    %2120 = vdwg.mxu0
    %s2121 = scalar_lea.vmem %s4, 72
    %v2122 = vld [vmem:[%s2121] sm:$0xff]
    %v2123 = vld [vmem:[%s2121 + $0x8] sm:$0xff]
    %v2124 = vld [vmem:[%s2121 + $0x10] sm:$0xff]
    %v2126 = vsel %vm1133, %v2043, 0
    %v2129 = vsel %vm1133, %v2048, 0
    %v2132 = vsel %vm1133, %v2053, 0
    %v2135 = vsel %vm1133, %v2058, 0
    %v2138 = vsel %vm1133, %v2063, 0
    %v2141 = vsel %vm1133, %v2068, 0
    %v2144 = vsel %vm1133, %v2073, 0
    %v2147 = vsel %vm1133, %v2078, 0
    %v2150 = vsel %vm1133, %v2083, 0
    %v2153 = vsel %vm1133, %v2088, 0
    %v2156 = vsel %vm1133, %v2093, 0
    %v2159 = vsel %vm1133, %v2098, 0
    %v2162 = vsel %vm1133, %v2103, 0
    %v2165 = vsel %vm1133, %v2108, 0
    %v2168 = vsel %vm1133, %v2113, 0
    %v2171 = vsel %vm1133, %v2118, 0
    %2173 = vmatprep.subr.mxu0 0.0
    %2174 = vmatpush1.msra.mxu0 0.0
    %2175 = vmatprep.subr.mxu0 0.0
    %2176 = vmatpush1.msra.mxu0 0.0
    %2177 = vmatprep.subr.mxu0 0.0
    %2178 = vmatpush1.msra.mxu0 0.0
    %2179 = vmatprep.subr.mxu0 0.0
    %2180 = vmatpush1.msra.mxu0 0.0
    %2181 = vmatprep.subr.mxu0 0.0
    %2182 = vmatpush1.msra.mxu0 0.0
    %2183 = vmatprep.subr.mxu0 0.0
    %2184 = vmatpush1.msra.mxu0 0.0
    %2185 = vmatprep.subr.mxu0 0.0
    %2186 = vmatpush1.msra.mxu0 0.0
    %2187 = vmatprep.subr.mxu0 0.0
    %2188 = vmatpush1.msra.mxu0 0.0
    %2189 = vmatprep.subr.mxu0 0.0
    %2190 = vmatpush1.msra.mxu0 0.0
    %2191 = vmatprep.subr.mxu0 0.0
    %2192 = vmatpush1.msra.mxu0 0.0
    %2193 = vmatprep.subr.mxu0 0.0
    %2194 = vmatpush1.msra.mxu0 0.0
    %2195 = vmatprep.subr.mxu0 0.0
    %2196 = vmatpush1.msra.mxu0 0.0
    %2197 = vmatprep.subr.mxu0 0.0
    %2198 = vmatpush1.msra.mxu0 0.0
    %2199 = vmatprep.subr.mxu0 0.0
    %2200 = vmatpush1.msra.mxu0 %v2124
    %2201 = vmatprep.subr.mxu0 0.0
    %2202 = vmatpush1.msra.mxu0 %v2123
    %2203 = vmatprep.subr.mxu0 0.0
    %2204 = vmatpush1.msra.mxu0 %v2122
    %2205 = vmatprep.subr.mxu0 0.0
    %2206 = vmatpush2.msra.mxu0 0.0
    %2207 = vmatprep.subr.mxu0 0.0
    %2208 = vmatpush2.msra.mxu0 0.0
    %2209 = vmatprep.subr.mxu0 0.0
    %2210 = vmatpush2.msra.mxu0 0.0
    %2211 = vmatprep.subr.mxu0 0.0
    %2212 = vmatpush2.msra.mxu0 0.0
    %2213 = vmatprep.subr.mxu0 0.0
    %2214 = vmatpush2.msra.mxu0 0.0
    %2215 = vmatprep.subr.mxu0 0.0
    %2216 = vmatpush2.msra.mxu0 0.0
    %2217 = vmatprep.subr.mxu0 0.0
    %2218 = vmatpush2.msra.mxu0 0.0
    %2219 = vmatprep.subr.mxu0 0.0
    %2220 = vmatpush2.msra.mxu0 0.0
    %2221 = vmatprep.subr.mxu0 0.0
    %2222 = vmatpush2.msra.mxu0 0.0
    %2223 = vmatprep.subr.mxu0 0.0
    %2224 = vmatpush2.msra.mxu0 0.0
    %2225 = vmatprep.subr.mxu0 0.0
    %2226 = vmatpush2.msra.mxu0 0.0
    %2227 = vmatprep.subr.mxu0 0.0
    %2228 = vmatpush2.msra.mxu0 0.0
    %2229 = vmatprep.subr.mxu0 0.0
    %2230 = vmatpush2.msra.mxu0 0.0
    %2231 = vmatprep.subr.mxu0 0.0
    %2232 = vmatpush2.msra.mxu0 0.0
    %2233 = vmatprep.subr.mxu0 0.0
    %2234 = vmatpush2.msra.mxu0 0.0
    %2235 = vmatprep.subr.mxu0 0.0
    %2236 = vmatpush2.msra.mxu0 0.0
    %2237 = vmatprep.mubr.f32.mxu0 0.0
    %2238 = vmatmul.mubr.f32.gmra.mxu0 %v2126
    %v2239 = vpop.f32.mrf.mxu0
    %v2240 = vadd.f32 0.0, %v2239
    %v2241 = vpop.f32.mrf.mxu0
    %2242 = vmatprep.mubr.f32.mxu0 0.0
    %2243 = vmatmul.mubr.f32.gmra.mxu0 %v2129
    %v2244 = vpop.f32.mrf.mxu0
    %v2245 = vadd.f32 0.0, %v2244
    %v2246 = vpop.f32.mrf.mxu0
    %2247 = vmatprep.mubr.f32.mxu0 0.0
    %2248 = vmatmul.mubr.f32.gmra.mxu0 %v2132
    %v2249 = vpop.f32.mrf.mxu0
    %v2250 = vadd.f32 0.0, %v2249
    %v2251 = vpop.f32.mrf.mxu0
    %2252 = vmatprep.mubr.f32.mxu0 0.0
    %2253 = vmatmul.mubr.f32.gmra.mxu0 %v2135
    %v2254 = vpop.f32.mrf.mxu0
    %v2255 = vadd.f32 0.0, %v2254
    %v2256 = vpop.f32.mrf.mxu0
    %2257 = vmatprep.mubr.f32.mxu0 0.0
    %2258 = vmatmul.mubr.f32.gmra.mxu0 %v2138
    %v2259 = vpop.f32.mrf.mxu0
    %v2260 = vadd.f32 0.0, %v2259
    %v2261 = vpop.f32.mrf.mxu0
    %2262 = vmatprep.mubr.f32.mxu0 0.0
    %2263 = vmatmul.mubr.f32.gmra.mxu0 %v2141
    %v2264 = vpop.f32.mrf.mxu0
    %v2265 = vadd.f32 0.0, %v2264
    %v2266 = vpop.f32.mrf.mxu0
    %2267 = vmatprep.mubr.f32.mxu0 0.0
    %2268 = vmatmul.mubr.f32.gmra.mxu0 %v2144
    %v2269 = vpop.f32.mrf.mxu0
    %v2270 = vadd.f32 0.0, %v2269
    %v2271 = vpop.f32.mrf.mxu0
    %2272 = vmatprep.mubr.f32.mxu0 0.0
    %2273 = vmatmul.mubr.f32.gmra.mxu0 %v2147
    %v2274 = vpop.f32.mrf.mxu0
    %v2275 = vadd.f32 0.0, %v2274
    %v2276 = vpop.f32.mrf.mxu0
    %2277 = vmatprep.mubr.f32.mxu0 0.0
    %2278 = vmatmul.mubr.f32.gmra.mxu0 %v2150
    %v2279 = vpop.f32.mrf.mxu0
    %v2280 = vadd.f32 0.0, %v2279
    %v2281 = vpop.f32.mrf.mxu0
    %2282 = vmatprep.mubr.f32.mxu0 0.0
    %2283 = vmatmul.mubr.f32.gmra.mxu0 %v2153
    %v2284 = vpop.f32.mrf.mxu0
    %v2285 = vadd.f32 0.0, %v2284
    %v2286 = vpop.f32.mrf.mxu0
    %2287 = vmatprep.mubr.f32.mxu0 0.0
    %2288 = vmatmul.mubr.f32.gmra.mxu0 %v2156
    %v2289 = vpop.f32.mrf.mxu0
    %v2290 = vadd.f32 0.0, %v2289
    %v2291 = vpop.f32.mrf.mxu0
    %2292 = vmatprep.mubr.f32.mxu0 0.0
    %2293 = vmatmul.mubr.f32.gmra.mxu0 %v2159
    %v2294 = vpop.f32.mrf.mxu0
    %v2295 = vadd.f32 0.0, %v2294
    %v2296 = vpop.f32.mrf.mxu0
    %2297 = vmatprep.mubr.f32.mxu0 0.0
    %2298 = vmatmul.mubr.f32.gmra.mxu0 %v2162
    %v2299 = vpop.f32.mrf.mxu0
    %v2300 = vadd.f32 0.0, %v2299
    %v2301 = vpop.f32.mrf.mxu0
    %2302 = vmatprep.mubr.f32.mxu0 0.0
    %2303 = vmatmul.mubr.f32.gmra.mxu0 %v2165
    %v2304 = vpop.f32.mrf.mxu0
    %v2305 = vadd.f32 0.0, %v2304
    %v2306 = vpop.f32.mrf.mxu0
    %2307 = vmatprep.mubr.f32.mxu0 0.0
    %2308 = vmatmul.mubr.f32.gmra.mxu0 %v2168
    %v2309 = vpop.f32.mrf.mxu0
    %v2310 = vadd.f32 0.0, %v2309
    %v2311 = vpop.f32.mrf.mxu0
    %2312 = vmatprep.mubr.f32.mxu0 0.0
    %2313 = vmatmul.mubr.f32.gmra.mxu0 %v2171
    %v2314 = vpop.f32.mrf.mxu0
    %v2315 = vadd.f32 0.0, %v2314
    %v2316 = vpop.f32.mrf.mxu0
    %2317 = vdwg.mxu0
    %v2318 = vadd.f32 %v1911, %v2240
    %v2319 = vadd.f32 %v1912, %v2245
    %v2320 = vadd.f32 %v1913, %v2250
    %v2321 = vadd.f32 %v1914, %v2255
    %v2322 = vadd.f32 %v1915, %v2260
    %v2323 = vadd.f32 %v1916, %v2265
    %v2324 = vadd.f32 %v1917, %v2270
    %v2325 = vadd.f32 %v1918, %v2275
    %v2326 = vadd.f32 %v1919, %v2280
    %v2327 = vadd.f32 %v1920, %v2285
    %v2328 = vadd.f32 %v1921, %v2290
    %v2329 = vadd.f32 %v1922, %v2295
    %v2330 = vadd.f32 %v1923, %v2300
    %v2331 = vadd.f32 %v1924, %v2305
    %v2332 = vadd.f32 %v1925, %v2310
    %v2333 = vadd.f32 %v1926, %v2315
    %v2334 = vld [vmem:[%s5] sm:$0xf]
    %v2335 = vld [vmem:[%s5 + $0x4] sm:$0xf]
    %v2336 = vld [vmem:[%s5 + $0x8] sm:$0xf]
    %v2337 = vld [vmem:[%s5 + $0xc] sm:$0xf]
    %v2338 = vld [vmem:[%s5 + $0x10] sm:$0xf]
    %v2339 = vld [vmem:[%s5 + $0x14] sm:$0xf]
    %v2340 = vld [vmem:[%s5 + $0x18] sm:$0xf]
    %v2341 = vld [vmem:[%s5 + $0x1c] sm:$0xf]
    %v2342 = vld [vmem:[%s5 + $0x20] sm:$0xf]
    %v2343 = vld [vmem:[%s5 + $0x24] sm:$0xf]
    %v2344 = vld [vmem:[%s5 + $0x28] sm:$0xf]
    %v2345 = vld [vmem:[%s5 + $0x2c] sm:$0xf]
    %v2346 = vunpack.c.l.bf16 %v2334
    %v2347 = vunpack.c.l.bf16 %v2335
    %v2348 = vunpack.c.l.bf16 %v2336
    %v2349 = vunpack.c.l.bf16 %v2337
    %v2350 = vunpack.c.l.bf16 %v2338
    %v2351 = vunpack.c.l.bf16 %v2339
    %v2352 = vunpack.c.l.bf16 %v2340
    %v2353 = vunpack.c.l.bf16 %v2341
    %v2354 = vunpack.c.l.bf16 %v2342
    %v2355 = vunpack.c.l.bf16 %v2343
    %v2356 = vunpack.c.l.bf16 %v2344
    %v2357 = vunpack.c.l.bf16 %v2345
    %vm2358 = vcmask 785408
    %v2359 = vsel %vm2358, %v2318, 0.0
    %v2360 = vsel %vm2358, %v2319, 0.0
    %v2361 = vadd.f32 %v2359, %v2360
    %v2362 = vsel %vm2358, %v2320, 0.0
    %v2363 = vadd.f32 %v2361, %v2362
    %v2364 = vsel %vm2358, %v2321, 0.0
    %v2365 = vadd.f32 %v2363, %v2364
    %v2366 = vsel %vm2358, %v2322, 0.0
    %v2367 = vadd.f32 %v2365, %v2366
    %v2368 = vsel %vm2358, %v2323, 0.0
    %v2369 = vadd.f32 %v2367, %v2368
    %v2370 = vsel %vm2358, %v2324, 0.0
    %v2371 = vadd.f32 %v2369, %v2370
    %v2372 = vsel %vm2358, %v2325, 0.0
    %v2373 = vadd.f32 %v2371, %v2372
    %v2374 = vsel %vm2358, %v2326, 0.0
    %v2375 = vadd.f32 %v2373, %v2374
    %v2376 = vsel %vm2358, %v2327, 0.0
    %v2377 = vadd.f32 %v2375, %v2376
    %v2378 = vsel %vm2358, %v2328, 0.0
    %v2379 = vadd.f32 %v2377, %v2378
    %v2380 = vsel %vm2358, %v2329, 0.0
    %v2381 = vadd.f32 %v2379, %v2380
    %v2382 = vsel %vm2358, %v2330, 0.0
    %v2383 = vadd.f32 %v2381, %v2382
    %v2384 = vsel %vm2358, %v2331, 0.0
    %v2385 = vadd.f32 %v2383, %v2384
    %v2386 = vsel %vm2358, %v2332, 0.0
    %v2387 = vadd.f32 %v2385, %v2386
    %v2388 = vsel %vm2358, %v2333, 0.0
    %v2389 = vadd.f32 %v2387, %v2388
    %v2390 = vrot.slane %v2389, 4
    %v2391 = vadd.f32 %v2389, %v2390
    %v2392 = vrot.slane %v2391, 2
    %v2393 = vadd.f32 %v2391, %v2392
    %v2394 = vrot.slane %v2393, 1
    %v2395 = vadd.f32 %v2393, %v2394
    %v2397 = vsel %vm2358, %v2395, 0
    %2399 = vmatprep.subr.mxu0 0.0
    %2400 = vmatpush1.msra.mxu0 0.0
    %2401 = vmatprep.subr.mxu0 0.0
    %2402 = vmatpush1.msra.mxu0 0.0
    %2403 = vmatprep.subr.mxu0 0.0
    %2404 = vmatpush1.msra.mxu0 0.0
    %2405 = vmatprep.subr.mxu0 0.0
    %2406 = vmatpush1.msra.mxu0 0.0
    %2407 = vmatprep.subr.mxu0 0.0
    %2408 = vmatpush1.msra.mxu0 %v2357
    %2409 = vmatprep.subr.mxu0 0.0
    %2410 = vmatpush1.msra.mxu0 %v2356
    %2411 = vmatprep.subr.mxu0 0.0
    %2412 = vmatpush1.msra.mxu0 %v2355
    %2413 = vmatprep.subr.mxu0 0.0
    %2414 = vmatpush1.msra.mxu0 %v2354
    %2415 = vmatprep.subr.mxu0 0.0
    %2416 = vmatpush1.msra.mxu0 %v2353
    %2417 = vmatprep.subr.mxu0 0.0
    %2418 = vmatpush1.msra.mxu0 %v2352
    %2419 = vmatprep.subr.mxu0 0.0
    %2420 = vmatpush1.msra.mxu0 %v2351
    %2421 = vmatprep.subr.mxu0 0.0
    %2422 = vmatpush1.msra.mxu0 %v2350
    %2423 = vmatprep.subr.mxu0 0.0
    %2424 = vmatpush1.msra.mxu0 %v2349
    %2425 = vmatprep.subr.mxu0 0.0
    %2426 = vmatpush1.msra.mxu0 %v2348
    %2427 = vmatprep.subr.mxu0 0.0
    %2428 = vmatpush1.msra.mxu0 %v2347
    %2429 = vmatprep.subr.mxu0 0.0
    %2430 = vmatpush1.msra.mxu0 %v2346
    %2431 = vmatprep.subr.mxu0 0.0
    %2432 = vmatpush2.msra.mxu0 0.0
    %2433 = vmatprep.subr.mxu0 0.0
    %2434 = vmatpush2.msra.mxu0 0.0
    %2435 = vmatprep.subr.mxu0 0.0
    %2436 = vmatpush2.msra.mxu0 0.0
    %2437 = vmatprep.subr.mxu0 0.0
    %2438 = vmatpush2.msra.mxu0 0.0
    %2439 = vmatprep.subr.mxu0 0.0
    %2440 = vmatpush2.msra.mxu0 0.0
    %2441 = vmatprep.subr.mxu0 0.0
    %2442 = vmatpush2.msra.mxu0 0.0
    %2443 = vmatprep.subr.mxu0 0.0
    %2444 = vmatpush2.msra.mxu0 0.0
    %2445 = vmatprep.subr.mxu0 0.0
    %2446 = vmatpush2.msra.mxu0 0.0
    %2447 = vmatprep.subr.mxu0 0.0
    %2448 = vmatpush2.msra.mxu0 0.0
    %2449 = vmatprep.subr.mxu0 0.0
    %2450 = vmatpush2.msra.mxu0 0.0
    %2451 = vmatprep.subr.mxu0 0.0
    %2452 = vmatpush2.msra.mxu0 0.0
    %2453 = vmatprep.subr.mxu0 0.0
    %2454 = vmatpush2.msra.mxu0 0.0
    %2455 = vmatprep.subr.mxu0 0.0
    %2456 = vmatpush2.msra.mxu0 0.0
    %2457 = vmatprep.subr.mxu0 0.0
    %2458 = vmatpush2.msra.mxu0 0.0
    %2459 = vmatprep.subr.mxu0 0.0
    %2460 = vmatpush2.msra.mxu0 0.0
    %2461 = vmatprep.subr.mxu0 0.0
    %2462 = vmatpush2.msra.mxu0 0.0
    %2463 = vmatprep.mubr.f32.mxu0 0.0
    %2464 = vmatmul.mubr.f32.gmra.mxu0 %v2397
    %v2465 = vpop.f32.mrf.mxu0
    %v2466 = vadd.f32 0.0, %v2465
    %v2467 = vpop.f32.mrf.mxu0
    %2468 = vdwg.mxu0
    %v2469 = vmul.f32 %v2318, %v2318
    %v2470 = vmul.f32 %v2319, %v2319
    %v2471 = vmul.f32 %v2320, %v2320
    %v2472 = vmul.f32 %v2321, %v2321
    %v2473 = vmul.f32 %v2322, %v2322
    %v2474 = vmul.f32 %v2323, %v2323
    %v2475 = vmul.f32 %v2324, %v2324
    %v2476 = vmul.f32 %v2325, %v2325
    %v2477 = vmul.f32 %v2326, %v2326
    %v2478 = vmul.f32 %v2327, %v2327
    %v2479 = vmul.f32 %v2328, %v2328
    %v2480 = vmul.f32 %v2329, %v2329
    %v2481 = vmul.f32 %v2330, %v2330
    %v2482 = vmul.f32 %v2331, %v2331
    %v2483 = vmul.f32 %v2332, %v2332
    %v2484 = vmul.f32 %v2333, %v2333
    %v2485 = vsel %vm2358, %v2469, 0.0
    %v2486 = vsel %vm2358, %v2470, 0.0
    %v2487 = vadd.f32 %v2485, %v2486
    %v2488 = vsel %vm2358, %v2471, 0.0
    %v2489 = vadd.f32 %v2487, %v2488
    %v2490 = vsel %vm2358, %v2472, 0.0
    %v2491 = vadd.f32 %v2489, %v2490
    %v2492 = vsel %vm2358, %v2473, 0.0
    %v2493 = vadd.f32 %v2491, %v2492
    %v2494 = vsel %vm2358, %v2474, 0.0
    %v2495 = vadd.f32 %v2493, %v2494
    %v2496 = vsel %vm2358, %v2475, 0.0
    %v2497 = vadd.f32 %v2495, %v2496
    %v2498 = vsel %vm2358, %v2476, 0.0
    %v2499 = vadd.f32 %v2497, %v2498
    %v2500 = vsel %vm2358, %v2477, 0.0
    %v2501 = vadd.f32 %v2499, %v2500
    %v2502 = vsel %vm2358, %v2478, 0.0
    %v2503 = vadd.f32 %v2501, %v2502
    %v2504 = vsel %vm2358, %v2479, 0.0
    %v2505 = vadd.f32 %v2503, %v2504
    %v2506 = vsel %vm2358, %v2480, 0.0
    %v2507 = vadd.f32 %v2505, %v2506
    %v2508 = vsel %vm2358, %v2481, 0.0
    %v2509 = vadd.f32 %v2507, %v2508
    %v2510 = vsel %vm2358, %v2482, 0.0
    %v2511 = vadd.f32 %v2509, %v2510
    %v2512 = vsel %vm2358, %v2483, 0.0
    %v2513 = vadd.f32 %v2511, %v2512
    %v2514 = vsel %vm2358, %v2484, 0.0
    %v2515 = vadd.f32 %v2513, %v2514
    %v2516 = vrot.slane %v2515, 4
    %v2517 = vadd.f32 %v2515, %v2516
    %v2518 = vrot.slane %v2517, 2
    %v2519 = vadd.f32 %v2517, %v2518
    %v2520 = vrot.slane %v2519, 1
    %v2521 = vadd.f32 %v2519, %v2520
    %v2523 = vsel %vm2358, %v2521, 0
    %2525 = vmatprep.subr.mxu0 0.0
    %2526 = vmatpush1.msra.mxu0 0.0
    %2527 = vmatprep.subr.mxu0 0.0
    %2528 = vmatpush1.msra.mxu0 0.0
    %2529 = vmatprep.subr.mxu0 0.0
    %2530 = vmatpush1.msra.mxu0 0.0
    %2531 = vmatprep.subr.mxu0 0.0
    %2532 = vmatpush1.msra.mxu0 0.0
    %2533 = vmatprep.subr.mxu0 0.0
    %2534 = vmatpush1.msra.mxu0 %v2357
    %2535 = vmatprep.subr.mxu0 0.0
    %2536 = vmatpush1.msra.mxu0 %v2356
    %2537 = vmatprep.subr.mxu0 0.0
    %2538 = vmatpush1.msra.mxu0 %v2355
    %2539 = vmatprep.subr.mxu0 0.0
    %2540 = vmatpush1.msra.mxu0 %v2354
    %2541 = vmatprep.subr.mxu0 0.0
    %2542 = vmatpush1.msra.mxu0 %v2353
    %2543 = vmatprep.subr.mxu0 0.0
    %2544 = vmatpush1.msra.mxu0 %v2352
    %2545 = vmatprep.subr.mxu0 0.0
    %2546 = vmatpush1.msra.mxu0 %v2351
    %2547 = vmatprep.subr.mxu0 0.0
    %2548 = vmatpush1.msra.mxu0 %v2350
    %2549 = vmatprep.subr.mxu0 0.0
    %2550 = vmatpush1.msra.mxu0 %v2349
    %2551 = vmatprep.subr.mxu0 0.0
    %2552 = vmatpush1.msra.mxu0 %v2348
    %2553 = vmatprep.subr.mxu0 0.0
    %2554 = vmatpush1.msra.mxu0 %v2347
    %2555 = vmatprep.subr.mxu0 0.0
    %2556 = vmatpush1.msra.mxu0 %v2346
    %2557 = vmatprep.subr.mxu0 0.0
    %2558 = vmatpush2.msra.mxu0 0.0
    %2559 = vmatprep.subr.mxu0 0.0
    %2560 = vmatpush2.msra.mxu0 0.0
    %2561 = vmatprep.subr.mxu0 0.0
    %2562 = vmatpush2.msra.mxu0 0.0
    %2563 = vmatprep.subr.mxu0 0.0
    %2564 = vmatpush2.msra.mxu0 0.0
    %2565 = vmatprep.subr.mxu0 0.0
    %2566 = vmatpush2.msra.mxu0 0.0
    %2567 = vmatprep.subr.mxu0 0.0
    %2568 = vmatpush2.msra.mxu0 0.0
    %2569 = vmatprep.subr.mxu0 0.0
    %2570 = vmatpush2.msra.mxu0 0.0
    %2571 = vmatprep.subr.mxu0 0.0
    %2572 = vmatpush2.msra.mxu0 0.0
    %2573 = vmatprep.subr.mxu0 0.0
    %2574 = vmatpush2.msra.mxu0 0.0
    %2575 = vmatprep.subr.mxu0 0.0
    %2576 = vmatpush2.msra.mxu0 0.0
    %2577 = vmatprep.subr.mxu0 0.0
    %2578 = vmatpush2.msra.mxu0 0.0
    %2579 = vmatprep.subr.mxu0 0.0
    %2580 = vmatpush2.msra.mxu0 0.0
    %2581 = vmatprep.subr.mxu0 0.0
    %2582 = vmatpush2.msra.mxu0 0.0
    %2583 = vmatprep.subr.mxu0 0.0
    %2584 = vmatpush2.msra.mxu0 0.0
    %2585 = vmatprep.subr.mxu0 0.0
    %2586 = vmatpush2.msra.mxu0 0.0
    %2587 = vmatprep.subr.mxu0 0.0
    %2588 = vmatpush2.msra.mxu0 0.0
    %2589 = vmatprep.mubr.f32.mxu0 0.0
    %2590 = vmatmul.mubr.f32.gmra.mxu0 %v2523
    %v2591 = vpop.f32.mrf.mxu0
    %v2592 = vadd.f32 0.0, %v2591
    %v2593 = vpop.f32.mrf.mxu0
    %2594 = vdwg.mxu0
    %v2595 = vmul.f32 %v2466, 0.0006510417
    %v2596 = vmul.f32 %v2592, 0.0006510417
    %v2597 = vmul.f32 %v2595, %v2595
    %v2598 = vsub.f32 %v2596, %v2597
    %v2599 = vmax.f32 %v2598, 0.0
    %v2600 = vld [vmem:[%s7] sm:$0x1]
    %v2601 = vadd.f32 %v2599, 1e-05
    %v2602 = vrsqrt.pop %v2601
    %v2603 = vmul.f32 %v2600, %v2602
    %v2604 = vld [vmem:[%s8] sm:$0x1]
    %v2605 = vmul.f32 %v2595, %v2603
    %v2606 = vsub.f32 %v2604, %v2605
    %v2607 = vld [vmem:[#allocation5] sm:$0xf]
    %v2608 = vunpack.c.l.bf16 %v2607
    %vm2609 = vcmask 64512
    %v2611 = vsel %vm2609, %v2603, 0
    %2613 = vmatprep.subr.mxu0 0.0
    %2614 = vmatpush1.msra.mxu0 0.0
    %2615 = vmatprep.subr.mxu0 0.0
    %2616 = vmatpush1.msra.mxu0 0.0
    %2617 = vmatprep.subr.mxu0 0.0
    %2618 = vmatpush1.msra.mxu0 0.0
    %2619 = vmatprep.subr.mxu0 0.0
    %2620 = vmatpush1.msra.mxu0 0.0
    %2621 = vmatprep.subr.mxu0 0.0
    %2622 = vmatpush1.msra.mxu0 0.0
    %2623 = vmatprep.subr.mxu0 0.0
    %2624 = vmatpush1.msra.mxu0 0.0
    %2625 = vmatprep.subr.mxu0 0.0
    %2626 = vmatpush1.msra.mxu0 0.0
    %2627 = vmatprep.subr.mxu0 0.0
    %2628 = vmatpush1.msra.mxu0 0.0
    %2629 = vmatprep.subr.mxu0 0.0
    %2630 = vmatpush1.msra.mxu0 0.0
    %2631 = vmatprep.subr.mxu0 0.0
    %2632 = vmatpush1.msra.mxu0 0.0
    %2633 = vmatprep.subr.mxu0 0.0
    %2634 = vmatpush1.msra.mxu0 0.0
    %2635 = vmatprep.subr.mxu0 0.0
    %2636 = vmatpush1.msra.mxu0 0.0
    %2637 = vmatprep.subr.mxu0 0.0
    %2638 = vmatpush1.msra.mxu0 0.0
    %2639 = vmatprep.subr.mxu0 0.0
    %2640 = vmatpush1.msra.mxu0 0.0
    %2641 = vmatprep.subr.mxu0 0.0
    %2642 = vmatpush1.msra.mxu0 0.0
    %2643 = vmatprep.subr.mxu0 0.0
    %2644 = vmatpush1.msra.mxu0 %v2608
    %2645 = vmatprep.subr.mxu0 0.0
    %2646 = vmatpush2.msra.mxu0 0.0
    %2647 = vmatprep.subr.mxu0 0.0
    %2648 = vmatpush2.msra.mxu0 0.0
    %2649 = vmatprep.subr.mxu0 0.0
    %2650 = vmatpush2.msra.mxu0 0.0
    %2651 = vmatprep.subr.mxu0 0.0
    %2652 = vmatpush2.msra.mxu0 0.0
    %2653 = vmatprep.subr.mxu0 0.0
    %2654 = vmatpush2.msra.mxu0 0.0
    %2655 = vmatprep.subr.mxu0 0.0
    %2656 = vmatpush2.msra.mxu0 0.0
    %2657 = vmatprep.subr.mxu0 0.0
    %2658 = vmatpush2.msra.mxu0 0.0
    %2659 = vmatprep.subr.mxu0 0.0
    %2660 = vmatpush2.msra.mxu0 0.0
    %2661 = vmatprep.subr.mxu0 0.0
    %2662 = vmatpush2.msra.mxu0 0.0
    %2663 = vmatprep.subr.mxu0 0.0
    %2664 = vmatpush2.msra.mxu0 0.0
    %2665 = vmatprep.subr.mxu0 0.0
    %2666 = vmatpush2.msra.mxu0 0.0
    %2667 = vmatprep.subr.mxu0 0.0
    %2668 = vmatpush2.msra.mxu0 0.0
    %2669 = vmatprep.subr.mxu0 0.0
    %2670 = vmatpush2.msra.mxu0 0.0
    %2671 = vmatprep.subr.mxu0 0.0
    %2672 = vmatpush2.msra.mxu0 0.0
    %2673 = vmatprep.subr.mxu0 0.0
    %2674 = vmatpush2.msra.mxu0 0.0
    %2675 = vmatprep.subr.mxu0 0.0
    %2676 = vmatpush2.msra.mxu0 0.0
    %2677 = vmatprep.mubr.f32.mxu0 0.0
    %2678 = vmatmul.mubr.f32.gmra.mxu0 %v2611
    %v2679 = vpop.f32.mrf.mxu0
    %v2680 = vadd.f32 0.0, %v2679
    %v2681 = vpop.f32.mrf.mxu0
    %2682 = vdwg.mxu0
    %v2684 = vsel %vm2609, %v2606, 0
    %2686 = vmatprep.subr.mxu0 0.0
    %2687 = vmatpush1.msra.mxu0 0.0
    %2688 = vmatprep.subr.mxu0 0.0
    %2689 = vmatpush1.msra.mxu0 0.0
    %2690 = vmatprep.subr.mxu0 0.0
    %2691 = vmatpush1.msra.mxu0 0.0
    %2692 = vmatprep.subr.mxu0 0.0
    %2693 = vmatpush1.msra.mxu0 0.0
    %2694 = vmatprep.subr.mxu0 0.0
    %2695 = vmatpush1.msra.mxu0 0.0
    %2696 = vmatprep.subr.mxu0 0.0
    %2697 = vmatpush1.msra.mxu0 0.0
    %2698 = vmatprep.subr.mxu0 0.0
    %2699 = vmatpush1.msra.mxu0 0.0
    %2700 = vmatprep.subr.mxu0 0.0
    %2701 = vmatpush1.msra.mxu0 0.0
    %2702 = vmatprep.subr.mxu0 0.0
    %2703 = vmatpush1.msra.mxu0 0.0
    %2704 = vmatprep.subr.mxu0 0.0
    %2705 = vmatpush1.msra.mxu0 0.0
    %2706 = vmatprep.subr.mxu0 0.0
    %2707 = vmatpush1.msra.mxu0 0.0
    %2708 = vmatprep.subr.mxu0 0.0
    %2709 = vmatpush1.msra.mxu0 0.0
    %2710 = vmatprep.subr.mxu0 0.0
    %2711 = vmatpush1.msra.mxu0 0.0
    %2712 = vmatprep.subr.mxu0 0.0
    %2713 = vmatpush1.msra.mxu0 0.0
    %2714 = vmatprep.subr.mxu0 0.0
    %2715 = vmatpush1.msra.mxu0 0.0
    %2716 = vmatprep.subr.mxu0 0.0
    %2717 = vmatpush1.msra.mxu0 %v2608
    %2718 = vmatprep.subr.mxu0 0.0
    %2719 = vmatpush2.msra.mxu0 0.0
    %2720 = vmatprep.subr.mxu0 0.0
    %2721 = vmatpush2.msra.mxu0 0.0
    %2722 = vmatprep.subr.mxu0 0.0
    %2723 = vmatpush2.msra.mxu0 0.0
    %2724 = vmatprep.subr.mxu0 0.0
    %2725 = vmatpush2.msra.mxu0 0.0
    %2726 = vmatprep.subr.mxu0 0.0
    %2727 = vmatpush2.msra.mxu0 0.0
    %2728 = vmatprep.subr.mxu0 0.0
    %2729 = vmatpush2.msra.mxu0 0.0
    %2730 = vmatprep.subr.mxu0 0.0
    %2731 = vmatpush2.msra.mxu0 0.0
    %2732 = vmatprep.subr.mxu0 0.0
    %2733 = vmatpush2.msra.mxu0 0.0
    %2734 = vmatprep.subr.mxu0 0.0
    %2735 = vmatpush2.msra.mxu0 0.0
    %2736 = vmatprep.subr.mxu0 0.0
    %2737 = vmatpush2.msra.mxu0 0.0
    %2738 = vmatprep.subr.mxu0 0.0
    %2739 = vmatpush2.msra.mxu0 0.0
    %2740 = vmatprep.subr.mxu0 0.0
    %2741 = vmatpush2.msra.mxu0 0.0
    %2742 = vmatprep.subr.mxu0 0.0
    %2743 = vmatpush2.msra.mxu0 0.0
    %2744 = vmatprep.subr.mxu0 0.0
    %2745 = vmatpush2.msra.mxu0 0.0
    %2746 = vmatprep.subr.mxu0 0.0
    %2747 = vmatpush2.msra.mxu0 0.0
    %2748 = vmatprep.subr.mxu0 0.0
    %2749 = vmatpush2.msra.mxu0 0.0
    %2750 = vmatprep.mubr.f32.mxu0 0.0
    %2751 = vmatmul.mubr.f32.gmra.mxu0 %v2684
    %v2752 = vpop.f32.mrf.mxu0
    %v2753 = vadd.f32 0.0, %v2752
    %v2754 = vpop.f32.mrf.mxu0
    %2755 = vdwg.mxu0
    %v2756 = vlaneseq
    %v2757 = vshrl.u32 %v2756, 7
    %v2758 = vsub.s32 0, %v2757
    %v2759 = vrot.slane %v2680, %v2758
    %v2760 = vmul.f32 %v2318, %v2759
    %v2761 = vmul.f32 %v2319, %v2759
    %v2762 = vmul.f32 %v2320, %v2759
    %v2763 = vmul.f32 %v2321, %v2759
    %v2764 = vmul.f32 %v2322, %v2759
    %v2765 = vmul.f32 %v2323, %v2759
    %v2766 = vmul.f32 %v2324, %v2759
    %v2767 = vmul.f32 %v2325, %v2759
    %v2768 = vmul.f32 %v2326, %v2759
    %v2769 = vmul.f32 %v2327, %v2759
    %v2770 = vmul.f32 %v2328, %v2759
    %v2771 = vmul.f32 %v2329, %v2759
    %v2772 = vmul.f32 %v2330, %v2759
    %v2773 = vmul.f32 %v2331, %v2759
    %v2774 = vmul.f32 %v2332, %v2759
    %v2775 = vmul.f32 %v2333, %v2759
    %v2776 = vlaneseq
    %v2777 = vshrl.u32 %v2776, 7
    %v2778 = vsub.s32 0, %v2777
    %v2779 = vrot.slane %v2753, %v2778
    %v2780 = vadd.f32 %v2760, %v2779
    %v2781 = vadd.f32 %v2761, %v2779
    %v2782 = vadd.f32 %v2762, %v2779
    %v2783 = vadd.f32 %v2763, %v2779
    %v2784 = vadd.f32 %v2764, %v2779
    %v2785 = vadd.f32 %v2765, %v2779
    %v2786 = vadd.f32 %v2766, %v2779
    %v2787 = vadd.f32 %v2767, %v2779
    %v2788 = vadd.f32 %v2768, %v2779
    %v2789 = vadd.f32 %v2769, %v2779
    %v2790 = vadd.f32 %v2770, %v2779
    %v2791 = vadd.f32 %v2771, %v2779
    %v2792 = vadd.f32 %v2772, %v2779
    %v2793 = vadd.f32 %v2773, %v2779
    %v2794 = vadd.f32 %v2774, %v2779
    %v2795 = vadd.f32 %v2775, %v2779
    %v2796 = vmax.f32 %v2780, 0.0
    %v2797 = vmax.f32 %v2781, 0.0
    %v2798 = vmax.f32 %v2782, 0.0
    %v2799 = vmax.f32 %v2783, 0.0
    %v2800 = vmax.f32 %v2784, 0.0
    %v2801 = vmax.f32 %v2785, 0.0
    %v2802 = vmax.f32 %v2786, 0.0
    %v2803 = vmax.f32 %v2787, 0.0
    %v2804 = vmax.f32 %v2788, 0.0
    %v2805 = vmax.f32 %v2789, 0.0
    %v2806 = vmax.f32 %v2790, 0.0
    %v2807 = vmax.f32 %v2791, 0.0
    %v2808 = vmax.f32 %v2792, 0.0
    %v2809 = vmax.f32 %v2793, 0.0
    %v2810 = vmax.f32 %v2794, 0.0
    %v2811 = vmax.f32 %v2795, 0.0
    %v2812 = vld [vmem:[%s9] sm:$0xf]
    %v2813 = vld [vmem:[%s9 + $0x4] sm:$0xf]
    %v2814 = vld [vmem:[%s9 + $0x8] sm:$0xf]
    %v2815 = vld [vmem:[%s9 + $0xc] sm:$0xf]
    %v2816 = vld [vmem:[%s9 + $0x10] sm:$0xf]
    %v2817 = vld [vmem:[%s9 + $0x14] sm:$0xf]
    %v2818 = vld [vmem:[%s9 + $0x18] sm:$0xf]
    %v2819 = vld [vmem:[%s9 + $0x1c] sm:$0xf]
    %v2820 = vunpack.c.l.bf16 %v2812
    %v2821 = vunpack.c.l.bf16 %v2813
    %v2822 = vunpack.c.l.bf16 %v2814
    %v2823 = vunpack.c.l.bf16 %v2815
    %v2824 = vunpack.c.l.bf16 %v2816
    %v2825 = vunpack.c.l.bf16 %v2817
    %v2826 = vunpack.c.l.bf16 %v2818
    %v2827 = vunpack.c.l.bf16 %v2819
    %2828 = vmatprep.subr.mxu0 0.0
    %2829 = vmatpush1.msra.mxu0 %v2811
    %2830 = vmatprep.subr.mxu0 0.0
    %2831 = vmatpush1.msra.mxu0 %v2810
    %2832 = vmatprep.subr.mxu0 0.0
    %2833 = vmatpush1.msra.mxu0 %v2809
    %2834 = vmatprep.subr.mxu0 0.0
    %2835 = vmatpush1.msra.mxu0 %v2808
    %2836 = vmatprep.subr.mxu0 0.0
    %2837 = vmatpush1.msra.mxu0 %v2807
    %2838 = vmatprep.subr.mxu0 0.0
    %2839 = vmatpush1.msra.mxu0 %v2806
    %2840 = vmatprep.subr.mxu0 0.0
    %2841 = vmatpush1.msra.mxu0 %v2805
    %2842 = vmatprep.subr.mxu0 0.0
    %2843 = vmatpush1.msra.mxu0 %v2804
    %2844 = vmatprep.subr.mxu0 0.0
    %2845 = vmatpush1.msra.mxu0 %v2803
    %2846 = vmatprep.subr.mxu0 0.0
    %2847 = vmatpush1.msra.mxu0 %v2802
    %2848 = vmatprep.subr.mxu0 0.0
    %2849 = vmatpush1.msra.mxu0 %v2801
    %2850 = vmatprep.subr.mxu0 0.0
    %2851 = vmatpush1.msra.mxu0 %v2800
    %2852 = vmatprep.subr.mxu0 0.0
    %2853 = vmatpush1.msra.mxu0 %v2799
    %2854 = vmatprep.subr.mxu0 0.0
    %2855 = vmatpush1.msra.mxu0 %v2798
    %2856 = vmatprep.subr.mxu0 0.0
    %2857 = vmatpush1.msra.mxu0 %v2797
    %2858 = vmatprep.subr.mxu0 0.0
    %2859 = vmatpush1.msra.mxu0 %v2796
    %2860 = vmatprep.subr.mxu0 0.0
    %2861 = vmatpush2.msra.mxu0 0.0
    %2862 = vmatprep.subr.mxu0 0.0
    %2863 = vmatpush2.msra.mxu0 0.0
    %2864 = vmatprep.subr.mxu0 0.0
    %2865 = vmatpush2.msra.mxu0 0.0
    %2866 = vmatprep.subr.mxu0 0.0
    %2867 = vmatpush2.msra.mxu0 0.0
    %2868 = vmatprep.subr.mxu0 0.0
    %2869 = vmatpush2.msra.mxu0 0.0
    %2870 = vmatprep.subr.mxu0 0.0
    %2871 = vmatpush2.msra.mxu0 0.0
    %2872 = vmatprep.subr.mxu0 0.0
    %2873 = vmatpush2.msra.mxu0 0.0
    %2874 = vmatprep.subr.mxu0 0.0
    %2875 = vmatpush2.msra.mxu0 0.0
    %2876 = vmatprep.subr.mxu0 0.0
    %2877 = vmatpush2.msra.mxu0 0.0
    %2878 = vmatprep.subr.mxu0 0.0
    %2879 = vmatpush2.msra.mxu0 0.0
    %2880 = vmatprep.subr.mxu0 0.0
    %2881 = vmatpush2.msra.mxu0 0.0
    %2882 = vmatprep.subr.mxu0 0.0
    %2883 = vmatpush2.msra.mxu0 0.0
    %2884 = vmatprep.subr.mxu0 0.0
    %2885 = vmatpush2.msra.mxu0 0.0
    %2886 = vmatprep.subr.mxu0 0.0
    %2887 = vmatpush2.msra.mxu0 0.0
    %2888 = vmatprep.subr.mxu0 0.0
    %2889 = vmatpush2.msra.mxu0 0.0
    %2890 = vmatprep.subr.mxu0 0.0
    %2891 = vmatpush2.msra.mxu0 0.0
    %2892 = vmatprep.mubr.f32.mxu0 0.0
    %2893 = vmatmul.mubr.f32.gmra.mxu0 %v2820
    %v2894 = vpop.f32.mrf.mxu0
    %v2895 = vadd.f32 0.0, %v2894
    %v2896 = vpop.f32.mrf.mxu0
    %2897 = vmatprep.mubr.f32.mxu0 0.0
    %2898 = vmatmul.mubr.f32.gmra.mxu0 %v2821
    %v2899 = vpop.f32.mrf.mxu0
    %v2900 = vadd.f32 0.0, %v2899
    %v2901 = vpop.f32.mrf.mxu0
    %2902 = vmatprep.mubr.f32.mxu0 0.0
    %2903 = vmatmul.mubr.f32.gmra.mxu0 %v2822
    %v2904 = vpop.f32.mrf.mxu0
    %v2905 = vadd.f32 0.0, %v2904
    %v2906 = vpop.f32.mrf.mxu0
    %2907 = vmatprep.mubr.f32.mxu0 0.0
    %2908 = vmatmul.mubr.f32.gmra.mxu0 %v2823
    %v2909 = vpop.f32.mrf.mxu0
    %v2910 = vadd.f32 0.0, %v2909
    %v2911 = vpop.f32.mrf.mxu0
    %2912 = vmatprep.mubr.f32.mxu0 0.0
    %2913 = vmatmul.mubr.f32.gmra.mxu0 %v2824
    %v2914 = vpop.f32.mrf.mxu0
    %v2915 = vadd.f32 0.0, %v2914
    %v2916 = vpop.f32.mrf.mxu0
    %2917 = vmatprep.mubr.f32.mxu0 0.0
    %2918 = vmatmul.mubr.f32.gmra.mxu0 %v2825
    %v2919 = vpop.f32.mrf.mxu0
    %v2920 = vadd.f32 0.0, %v2919
    %v2921 = vpop.f32.mrf.mxu0
    %2922 = vmatprep.mubr.f32.mxu0 0.0
    %2923 = vmatmul.mubr.f32.gmra.mxu0 %v2826
    %v2924 = vpop.f32.mrf.mxu0
    %v2925 = vadd.f32 0.0, %v2924
    %v2926 = vpop.f32.mrf.mxu0
    %2927 = vmatprep.mubr.f32.mxu0 0.0
    %2928 = vmatmul.mubr.f32.gmra.mxu0 %v2827
    %v2929 = vpop.f32.mrf.mxu0
    %v2930 = vadd.f32 0.0, %v2929
    %v2931 = vpop.f32.mrf.mxu0
    %2932 = vdwg.mxu0
    %v2933 = vld [vmem:[#allocation7] sm:$0xff]
    %v2934 = vld [vmem:[#allocation7 + $0x8] sm:$0xff]
    %v2935 = vld [vmem:[#allocation7 + $0x10] sm:$0xff]
    %v2936 = vld [vmem:[#allocation7 + $0x18] sm:$0xff]
    %v2937 = vld [vmem:[#allocation7 + $0x20] sm:$0xff]
    %v2938 = vld [vmem:[#allocation7 + $0x28] sm:$0xff]
    %v2939 = vld [vmem:[#allocation7 + $0x30] sm:$0xff]
    %v2940 = vld [vmem:[#allocation7 + $0x38] sm:$0xff]
    %v2941 = vld [vmem:[#allocation7 + $0x40] sm:$0xff]
    %v2942 = vld [vmem:[#allocation7 + $0x48] sm:$0xff]
    %v2943 = vld [vmem:[#allocation7 + $0x50] sm:$0xff]
    %v2944 = vld [vmem:[#allocation7 + $0x58] sm:$0xff]
    %s2945 = scalar_lea.vmem %s9, 32
    %v2946 = vld [vmem:[%s2945] sm:$0xf]
    %v2947 = vld [vmem:[%s2945 + $0x4] sm:$0xf]
    %v2948 = vld [vmem:[%s2945 + $0x8] sm:$0xf]
    %v2949 = vld [vmem:[%s2945 + $0xc] sm:$0xf]
    %v2950 = vld [vmem:[%s2945 + $0x10] sm:$0xf]
    %v2951 = vld [vmem:[%s2945 + $0x14] sm:$0xf]
    %v2952 = vld [vmem:[%s2945 + $0x18] sm:$0xf]
    %v2953 = vld [vmem:[%s2945 + $0x1c] sm:$0xf]
    %v2954 = vunpack.c.l.bf16 %v2946
    %v2955 = vunpack.c.l.bf16 %v2947
    %v2956 = vunpack.c.l.bf16 %v2948
    %v2957 = vunpack.c.l.bf16 %v2949
    %v2958 = vunpack.c.l.bf16 %v2950
    %v2959 = vunpack.c.l.bf16 %v2951
    %v2960 = vunpack.c.l.bf16 %v2952
    %v2961 = vunpack.c.l.bf16 %v2953
    %2962 = vmatprep.subr.mxu0 0.0
    %2963 = vmatpush1.msra.mxu0 %v2811
    %2964 = vmatprep.subr.mxu0 0.0
    %2965 = vmatpush1.msra.mxu0 %v2810
    %2966 = vmatprep.subr.mxu0 0.0
    %2967 = vmatpush1.msra.mxu0 %v2809
    %2968 = vmatprep.subr.mxu0 0.0
    %2969 = vmatpush1.msra.mxu0 %v2808
    %2970 = vmatprep.subr.mxu0 0.0
    %2971 = vmatpush1.msra.mxu0 %v2807
    %2972 = vmatprep.subr.mxu0 0.0
    %2973 = vmatpush1.msra.mxu0 %v2806
    %2974 = vmatprep.subr.mxu0 0.0
    %2975 = vmatpush1.msra.mxu0 %v2805
    %2976 = vmatprep.subr.mxu0 0.0
    %2977 = vmatpush1.msra.mxu0 %v2804
    %2978 = vmatprep.subr.mxu0 0.0
    %2979 = vmatpush1.msra.mxu0 %v2803
    %2980 = vmatprep.subr.mxu0 0.0
    %2981 = vmatpush1.msra.mxu0 %v2802
    %2982 = vmatprep.subr.mxu0 0.0
    %2983 = vmatpush1.msra.mxu0 %v2801
    %2984 = vmatprep.subr.mxu0 0.0
    %2985 = vmatpush1.msra.mxu0 %v2800
    %2986 = vmatprep.subr.mxu0 0.0
    %2987 = vmatpush1.msra.mxu0 %v2799
    %2988 = vmatprep.subr.mxu0 0.0
    %2989 = vmatpush1.msra.mxu0 %v2798
    %2990 = vmatprep.subr.mxu0 0.0
    %2991 = vmatpush1.msra.mxu0 %v2797
    %2992 = vmatprep.subr.mxu0 0.0
    %2993 = vmatpush1.msra.mxu0 %v2796
    %2994 = vmatprep.subr.mxu0 0.0
    %2995 = vmatpush2.msra.mxu0 0.0
    %2996 = vmatprep.subr.mxu0 0.0
    %2997 = vmatpush2.msra.mxu0 0.0
    %2998 = vmatprep.subr.mxu0 0.0
    %2999 = vmatpush2.msra.mxu0 0.0
    %3000 = vmatprep.subr.mxu0 0.0
    %3001 = vmatpush2.msra.mxu0 0.0
    %3002 = vmatprep.subr.mxu0 0.0
    %3003 = vmatpush2.msra.mxu0 0.0
    %3004 = vmatprep.subr.mxu0 0.0
    %3005 = vmatpush2.msra.mxu0 0.0
    %3006 = vmatprep.subr.mxu0 0.0
    %3007 = vmatpush2.msra.mxu0 0.0
    %3008 = vmatprep.subr.mxu0 0.0
    %3009 = vmatpush2.msra.mxu0 0.0
    %3010 = vmatprep.subr.mxu0 0.0
    %3011 = vmatpush2.msra.mxu0 0.0
    %3012 = vmatprep.subr.mxu0 0.0
    %3013 = vmatpush2.msra.mxu0 0.0
    %3014 = vmatprep.subr.mxu0 0.0
    %3015 = vmatpush2.msra.mxu0 0.0
    %3016 = vmatprep.subr.mxu0 0.0
    %3017 = vmatpush2.msra.mxu0 0.0
    %3018 = vmatprep.subr.mxu0 0.0
    %3019 = vmatpush2.msra.mxu0 0.0
    %3020 = vmatprep.subr.mxu0 0.0
    %3021 = vmatpush2.msra.mxu0 0.0
    %3022 = vmatprep.subr.mxu0 0.0
    %3023 = vmatpush2.msra.mxu0 0.0
    %3024 = vmatprep.subr.mxu0 0.0
    %3025 = vmatpush2.msra.mxu0 0.0
    %3026 = vmatprep.mubr.f32.mxu0 0.0
    %3027 = vmatmul.mubr.f32.gmra.mxu0 %v2954
    %v3028 = vpop.f32.mrf.mxu0
    %v3029 = vadd.f32 0.0, %v3028
    %v3030 = vpop.f32.mrf.mxu0
    %3031 = vmatprep.mubr.f32.mxu0 0.0
    %3032 = vmatmul.mubr.f32.gmra.mxu0 %v2955
    %v3033 = vpop.f32.mrf.mxu0
    %v3034 = vadd.f32 0.0, %v3033
    %v3035 = vpop.f32.mrf.mxu0
    %3036 = vmatprep.mubr.f32.mxu0 0.0
    %3037 = vmatmul.mubr.f32.gmra.mxu0 %v2956
    %v3038 = vpop.f32.mrf.mxu0
    %v3039 = vadd.f32 0.0, %v3038
    %v3040 = vpop.f32.mrf.mxu0
    %3041 = vmatprep.mubr.f32.mxu0 0.0
    %3042 = vmatmul.mubr.f32.gmra.mxu0 %v2957
    %v3043 = vpop.f32.mrf.mxu0
    %v3044 = vadd.f32 0.0, %v3043
    %v3045 = vpop.f32.mrf.mxu0
    %3046 = vmatprep.mubr.f32.mxu0 0.0
    %3047 = vmatmul.mubr.f32.gmra.mxu0 %v2958
    %v3048 = vpop.f32.mrf.mxu0
    %v3049 = vadd.f32 0.0, %v3048
    %v3050 = vpop.f32.mrf.mxu0
    %3051 = vmatprep.mubr.f32.mxu0 0.0
    %3052 = vmatmul.mubr.f32.gmra.mxu0 %v2959
    %v3053 = vpop.f32.mrf.mxu0
    %v3054 = vadd.f32 0.0, %v3053
    %v3055 = vpop.f32.mrf.mxu0
    %3056 = vmatprep.mubr.f32.mxu0 0.0
    %3057 = vmatmul.mubr.f32.gmra.mxu0 %v2960
    %v3058 = vpop.f32.mrf.mxu0
    %v3059 = vadd.f32 0.0, %v3058
    %v3060 = vpop.f32.mrf.mxu0
    %3061 = vmatprep.mubr.f32.mxu0 0.0
    %3062 = vmatmul.mubr.f32.gmra.mxu0 %v2961
    %v3063 = vpop.f32.mrf.mxu0
    %v3064 = vadd.f32 0.0, %v3063
    %v3065 = vpop.f32.mrf.mxu0
    %3066 = vdwg.mxu0
    %s3067 = scalar_lea.vmem [#allocation7], 96
    %v3068 = vld [vmem:[%s3067] sm:$0xff]
    %v3069 = vld [vmem:[%s3067 + $0x8] sm:$0xff]
    %v3070 = vld [vmem:[%s3067 + $0x10] sm:$0xff]
    %v3071 = vld [vmem:[%s3067 + $0x18] sm:$0xff]
    %v3072 = vld [vmem:[%s3067 + $0x20] sm:$0xff]
    %v3073 = vld [vmem:[%s3067 + $0x28] sm:$0xff]
    %v3074 = vld [vmem:[%s3067 + $0x30] sm:$0xff]
    %v3075 = vld [vmem:[%s3067 + $0x38] sm:$0xff]
    %v3076 = vld [vmem:[%s3067 + $0x40] sm:$0xff]
    %v3077 = vld [vmem:[%s3067 + $0x48] sm:$0xff]
    %v3078 = vld [vmem:[%s3067 + $0x50] sm:$0xff]
    %v3079 = vld [vmem:[%s3067 + $0x58] sm:$0xff]
    %v3081 = vsel %vm2358, %v3029, 0
    %v3084 = vsel %vm2358, %v3034, 0
    %v3087 = vsel %vm2358, %v3039, 0
    %v3090 = vsel %vm2358, %v3044, 0
    %v3093 = vsel %vm2358, %v3049, 0
    %v3096 = vsel %vm2358, %v3054, 0
    %v3099 = vsel %vm2358, %v3059, 0
    %v3102 = vsel %vm2358, %v3064, 0
    %3104 = vmatprep.subr.mxu0 0.0
    %3105 = vmatpush1.msra.mxu0 0.0
    %3106 = vmatprep.subr.mxu0 0.0
    %3107 = vmatpush1.msra.mxu0 0.0
    %3108 = vmatprep.subr.mxu0 0.0
    %3109 = vmatpush1.msra.mxu0 0.0
    %3110 = vmatprep.subr.mxu0 0.0
    %3111 = vmatpush1.msra.mxu0 0.0
    %3112 = vmatprep.subr.mxu0 0.0
    %3113 = vmatpush1.msra.mxu0 %v3079
    %3114 = vmatprep.subr.mxu0 0.0
    %3115 = vmatpush1.msra.mxu0 %v3078
    %3116 = vmatprep.subr.mxu0 0.0
    %3117 = vmatpush1.msra.mxu0 %v3077
    %3118 = vmatprep.subr.mxu0 0.0
    %3119 = vmatpush1.msra.mxu0 %v3076
    %3120 = vmatprep.subr.mxu0 0.0
    %3121 = vmatpush1.msra.mxu0 %v3075
    %3122 = vmatprep.subr.mxu0 0.0
    %3123 = vmatpush1.msra.mxu0 %v3074
    %3124 = vmatprep.subr.mxu0 0.0
    %3125 = vmatpush1.msra.mxu0 %v3073
    %3126 = vmatprep.subr.mxu0 0.0
    %3127 = vmatpush1.msra.mxu0 %v3072
    %3128 = vmatprep.subr.mxu0 0.0
    %3129 = vmatpush1.msra.mxu0 %v3071
    %3130 = vmatprep.subr.mxu0 0.0
    %3131 = vmatpush1.msra.mxu0 %v3070
    %3132 = vmatprep.subr.mxu0 0.0
    %3133 = vmatpush1.msra.mxu0 %v3069
    %3134 = vmatprep.subr.mxu0 0.0
    %3135 = vmatpush1.msra.mxu0 %v3068
    %3136 = vmatprep.subr.mxu0 0.0
    %3137 = vmatpush2.msra.mxu0 0.0
    %3138 = vmatprep.subr.mxu0 0.0
    %3139 = vmatpush2.msra.mxu0 0.0
    %3140 = vmatprep.subr.mxu0 0.0
    %3141 = vmatpush2.msra.mxu0 0.0
    %3142 = vmatprep.subr.mxu0 0.0
    %3143 = vmatpush2.msra.mxu0 0.0
    %3144 = vmatprep.subr.mxu0 0.0
    %3145 = vmatpush2.msra.mxu0 0.0
    %3146 = vmatprep.subr.mxu0 0.0
    %3147 = vmatpush2.msra.mxu0 0.0
    %3148 = vmatprep.subr.mxu0 0.0
    %3149 = vmatpush2.msra.mxu0 0.0
    %3150 = vmatprep.subr.mxu0 0.0
    %3151 = vmatpush2.msra.mxu0 0.0
    %3152 = vmatprep.subr.mxu0 0.0
    %3153 = vmatpush2.msra.mxu0 0.0
    %3154 = vmatprep.subr.mxu0 0.0
    %3155 = vmatpush2.msra.mxu0 0.0
    %3156 = vmatprep.subr.mxu0 0.0
    %3157 = vmatpush2.msra.mxu0 0.0
    %3158 = vmatprep.subr.mxu0 0.0
    %3159 = vmatpush2.msra.mxu0 0.0
    %3160 = vmatprep.subr.mxu0 0.0
    %3161 = vmatpush2.msra.mxu0 0.0
    %3162 = vmatprep.subr.mxu0 0.0
    %3163 = vmatpush2.msra.mxu0 0.0
    %3164 = vmatprep.subr.mxu0 0.0
    %3165 = vmatpush2.msra.mxu0 0.0
    %3166 = vmatprep.subr.mxu0 0.0
    %3167 = vmatpush2.msra.mxu0 0.0
    %3168 = vmatprep.mubr.f32.mxu0 0.0
    %3169 = vmatmul.mubr.f32.gmra.mxu0 %v3081
    %v3170 = vpop.f32.mrf.mxu0
    %v3171 = vadd.f32 0.0, %v3170
    %v3172 = vpop.f32.mrf.mxu0
    %3173 = vmatprep.mubr.f32.mxu0 0.0
    %3174 = vmatmul.mubr.f32.gmra.mxu0 %v3084
    %v3175 = vpop.f32.mrf.mxu0
    %v3176 = vadd.f32 0.0, %v3175
    %v3177 = vpop.f32.mrf.mxu0
    %3178 = vmatprep.mubr.f32.mxu0 0.0
    %3179 = vmatmul.mubr.f32.gmra.mxu0 %v3087
    %v3180 = vpop.f32.mrf.mxu0
    %v3181 = vadd.f32 0.0, %v3180
    %v3182 = vpop.f32.mrf.mxu0
    %3183 = vmatprep.mubr.f32.mxu0 0.0
    %3184 = vmatmul.mubr.f32.gmra.mxu0 %v3090
    %v3185 = vpop.f32.mrf.mxu0
    %v3186 = vadd.f32 0.0, %v3185
    %v3187 = vpop.f32.mrf.mxu0
    %3188 = vmatprep.mubr.f32.mxu0 0.0
    %3189 = vmatmul.mubr.f32.gmra.mxu0 %v3093
    %v3190 = vpop.f32.mrf.mxu0
    %v3191 = vadd.f32 0.0, %v3190
    %v3192 = vpop.f32.mrf.mxu0
    %3193 = vmatprep.mubr.f32.mxu0 0.0
    %3194 = vmatmul.mubr.f32.gmra.mxu0 %v3096
    %v3195 = vpop.f32.mrf.mxu0
    %v3196 = vadd.f32 0.0, %v3195
    %v3197 = vpop.f32.mrf.mxu0
    %3198 = vmatprep.mubr.f32.mxu0 0.0
    %3199 = vmatmul.mubr.f32.gmra.mxu0 %v3099
    %v3200 = vpop.f32.mrf.mxu0
    %v3201 = vadd.f32 0.0, %v3200
    %v3202 = vpop.f32.mrf.mxu0
    %3203 = vmatprep.mubr.f32.mxu0 0.0
    %3204 = vmatmul.mubr.f32.gmra.mxu0 %v3102
    %v3205 = vpop.f32.mrf.mxu0
    %v3206 = vadd.f32 0.0, %v3205
    %v3207 = vpop.f32.mrf.mxu0
    %3208 = vdwg.mxu0
    %v3210 = vsel %vm2358, %v2895, 0
    %v3213 = vsel %vm2358, %v2900, 0
    %v3216 = vsel %vm2358, %v2905, 0
    %v3219 = vsel %vm2358, %v2910, 0
    %v3222 = vsel %vm2358, %v2915, 0
    %v3225 = vsel %vm2358, %v2920, 0
    %v3228 = vsel %vm2358, %v2925, 0
    %v3231 = vsel %vm2358, %v2930, 0
    %3233 = vmatprep.subr.mxu0 0.0
    %3234 = vmatpush1.msra.mxu0 0.0
    %3235 = vmatprep.subr.mxu0 0.0
    %3236 = vmatpush1.msra.mxu0 0.0
    %3237 = vmatprep.subr.mxu0 0.0
    %3238 = vmatpush1.msra.mxu0 0.0
    %3239 = vmatprep.subr.mxu0 0.0
    %3240 = vmatpush1.msra.mxu0 0.0
    %3241 = vmatprep.subr.mxu0 0.0
    %3242 = vmatpush1.msra.mxu0 %v2944
    %3243 = vmatprep.subr.mxu0 0.0
    %3244 = vmatpush1.msra.mxu0 %v2943
    %3245 = vmatprep.subr.mxu0 0.0
    %3246 = vmatpush1.msra.mxu0 %v2942
    %3247 = vmatprep.subr.mxu0 0.0
    %3248 = vmatpush1.msra.mxu0 %v2941
    %3249 = vmatprep.subr.mxu0 0.0
    %3250 = vmatpush1.msra.mxu0 %v2940
    %3251 = vmatprep.subr.mxu0 0.0
    %3252 = vmatpush1.msra.mxu0 %v2939
    %3253 = vmatprep.subr.mxu0 0.0
    %3254 = vmatpush1.msra.mxu0 %v2938
    %3255 = vmatprep.subr.mxu0 0.0
    %3256 = vmatpush1.msra.mxu0 %v2937
    %3257 = vmatprep.subr.mxu0 0.0
    %3258 = vmatpush1.msra.mxu0 %v2936
    %3259 = vmatprep.subr.mxu0 0.0
    %3260 = vmatpush1.msra.mxu0 %v2935
    %3261 = vmatprep.subr.mxu0 0.0
    %3262 = vmatpush1.msra.mxu0 %v2934
    %3263 = vmatprep.subr.mxu0 0.0
    %3264 = vmatpush1.msra.mxu0 %v2933
    %3265 = vmatprep.subr.mxu0 0.0
    %3266 = vmatpush2.msra.mxu0 0.0
    %3267 = vmatprep.subr.mxu0 0.0
    %3268 = vmatpush2.msra.mxu0 0.0
    %3269 = vmatprep.subr.mxu0 0.0
    %3270 = vmatpush2.msra.mxu0 0.0
    %3271 = vmatprep.subr.mxu0 0.0
    %3272 = vmatpush2.msra.mxu0 0.0
    %3273 = vmatprep.subr.mxu0 0.0
    %3274 = vmatpush2.msra.mxu0 0.0
    %3275 = vmatprep.subr.mxu0 0.0
    %3276 = vmatpush2.msra.mxu0 0.0
    %3277 = vmatprep.subr.mxu0 0.0
    %3278 = vmatpush2.msra.mxu0 0.0
    %3279 = vmatprep.subr.mxu0 0.0
    %3280 = vmatpush2.msra.mxu0 0.0
    %3281 = vmatprep.subr.mxu0 0.0
    %3282 = vmatpush2.msra.mxu0 0.0
    %3283 = vmatprep.subr.mxu0 0.0
    %3284 = vmatpush2.msra.mxu0 0.0
    %3285 = vmatprep.subr.mxu0 0.0
    %3286 = vmatpush2.msra.mxu0 0.0
    %3287 = vmatprep.subr.mxu0 0.0
    %3288 = vmatpush2.msra.mxu0 0.0
    %3289 = vmatprep.subr.mxu0 0.0
    %3290 = vmatpush2.msra.mxu0 0.0
    %3291 = vmatprep.subr.mxu0 0.0
    %3292 = vmatpush2.msra.mxu0 0.0
    %3293 = vmatprep.subr.mxu0 0.0
    %3294 = vmatpush2.msra.mxu0 0.0
    %3295 = vmatprep.subr.mxu0 0.0
    %3296 = vmatpush2.msra.mxu0 0.0
    %3297 = vmatprep.mubr.f32.mxu0 0.0
    %3298 = vmatmul.mubr.f32.gmra.mxu0 %v3210
    %v3299 = vpop.f32.mrf.mxu0
    %v3300 = vadd.f32 %v3171, %v3299
    %v3301 = vpop.f32.mrf.mxu0
    %3302 = vmatprep.mubr.f32.mxu0 0.0
    %3303 = vmatmul.mubr.f32.gmra.mxu0 %v3213
    %v3304 = vpop.f32.mrf.mxu0
    %v3305 = vadd.f32 %v3176, %v3304
    %v3306 = vpop.f32.mrf.mxu0
    %3307 = vmatprep.mubr.f32.mxu0 0.0
    %3308 = vmatmul.mubr.f32.gmra.mxu0 %v3216
    %v3309 = vpop.f32.mrf.mxu0
    %v3310 = vadd.f32 %v3181, %v3309
    %v3311 = vpop.f32.mrf.mxu0
    %3312 = vmatprep.mubr.f32.mxu0 0.0
    %3313 = vmatmul.mubr.f32.gmra.mxu0 %v3219
    %v3314 = vpop.f32.mrf.mxu0
    %v3315 = vadd.f32 %v3186, %v3314
    %v3316 = vpop.f32.mrf.mxu0
    %3317 = vmatprep.mubr.f32.mxu0 0.0
    %3318 = vmatmul.mubr.f32.gmra.mxu0 %v3222
    %v3319 = vpop.f32.mrf.mxu0
    %v3320 = vadd.f32 %v3191, %v3319
    %v3321 = vpop.f32.mrf.mxu0
    %3322 = vmatprep.mubr.f32.mxu0 0.0
    %3323 = vmatmul.mubr.f32.gmra.mxu0 %v3225
    %v3324 = vpop.f32.mrf.mxu0
    %v3325 = vadd.f32 %v3196, %v3324
    %v3326 = vpop.f32.mrf.mxu0
    %3327 = vmatprep.mubr.f32.mxu0 0.0
    %3328 = vmatmul.mubr.f32.gmra.mxu0 %v3228
    %v3329 = vpop.f32.mrf.mxu0
    %v3330 = vadd.f32 %v3201, %v3329
    %v3331 = vpop.f32.mrf.mxu0
    %3332 = vmatprep.mubr.f32.mxu0 0.0
    %3333 = vmatmul.mubr.f32.gmra.mxu0 %v3231
    %v3334 = vpop.f32.mrf.mxu0
    %v3335 = vadd.f32 %v3206, %v3334
    %v3336 = vpop.f32.mrf.mxu0
    %3337 = vdwg.mxu0
    %s3338 = scalar_lea.vmem %s9, 64
    %v3339 = vld [vmem:[%s3338] sm:$0xf]
    %v3340 = vld [vmem:[%s3338 + $0x4] sm:$0xf]
    %v3341 = vld [vmem:[%s3338 + $0x8] sm:$0xf]
    %v3342 = vld [vmem:[%s3338 + $0xc] sm:$0xf]
    %v3343 = vld [vmem:[%s3338 + $0x10] sm:$0xf]
    %v3344 = vld [vmem:[%s3338 + $0x14] sm:$0xf]
    %v3345 = vld [vmem:[%s3338 + $0x18] sm:$0xf]
    %v3346 = vld [vmem:[%s3338 + $0x1c] sm:$0xf]
    %v3347 = vunpack.c.l.bf16 %v3339
    %v3348 = vunpack.c.l.bf16 %v3340
    %v3349 = vunpack.c.l.bf16 %v3341
    %v3350 = vunpack.c.l.bf16 %v3342
    %v3351 = vunpack.c.l.bf16 %v3343
    %v3352 = vunpack.c.l.bf16 %v3344
    %v3353 = vunpack.c.l.bf16 %v3345
    %v3354 = vunpack.c.l.bf16 %v3346
    %3355 = vmatprep.subr.mxu0 0.0
    %3356 = vmatpush1.msra.mxu0 %v2811
    %3357 = vmatprep.subr.mxu0 0.0
    %3358 = vmatpush1.msra.mxu0 %v2810
    %3359 = vmatprep.subr.mxu0 0.0
    %3360 = vmatpush1.msra.mxu0 %v2809
    %3361 = vmatprep.subr.mxu0 0.0
    %3362 = vmatpush1.msra.mxu0 %v2808
    %3363 = vmatprep.subr.mxu0 0.0
    %3364 = vmatpush1.msra.mxu0 %v2807
    %3365 = vmatprep.subr.mxu0 0.0
    %3366 = vmatpush1.msra.mxu0 %v2806
    %3367 = vmatprep.subr.mxu0 0.0
    %3368 = vmatpush1.msra.mxu0 %v2805
    %3369 = vmatprep.subr.mxu0 0.0
    %3370 = vmatpush1.msra.mxu0 %v2804
    %3371 = vmatprep.subr.mxu0 0.0
    %3372 = vmatpush1.msra.mxu0 %v2803
    %3373 = vmatprep.subr.mxu0 0.0
    %3374 = vmatpush1.msra.mxu0 %v2802
    %3375 = vmatprep.subr.mxu0 0.0
    %3376 = vmatpush1.msra.mxu0 %v2801
    %3377 = vmatprep.subr.mxu0 0.0
    %3378 = vmatpush1.msra.mxu0 %v2800
    %3379 = vmatprep.subr.mxu0 0.0
    %3380 = vmatpush1.msra.mxu0 %v2799
    %3381 = vmatprep.subr.mxu0 0.0
    %3382 = vmatpush1.msra.mxu0 %v2798
    %3383 = vmatprep.subr.mxu0 0.0
    %3384 = vmatpush1.msra.mxu0 %v2797
    %3385 = vmatprep.subr.mxu0 0.0
    %3386 = vmatpush1.msra.mxu0 %v2796
    %3387 = vmatprep.subr.mxu0 0.0
    %3388 = vmatpush2.msra.mxu0 0.0
    %3389 = vmatprep.subr.mxu0 0.0
    %3390 = vmatpush2.msra.mxu0 0.0
    %3391 = vmatprep.subr.mxu0 0.0
    %3392 = vmatpush2.msra.mxu0 0.0
    %3393 = vmatprep.subr.mxu0 0.0
    %3394 = vmatpush2.msra.mxu0 0.0
    %3395 = vmatprep.subr.mxu0 0.0
    %3396 = vmatpush2.msra.mxu0 0.0
    %3397 = vmatprep.subr.mxu0 0.0
    %3398 = vmatpush2.msra.mxu0 0.0
    %3399 = vmatprep.subr.mxu0 0.0
    %3400 = vmatpush2.msra.mxu0 0.0
    %3401 = vmatprep.subr.mxu0 0.0
    %3402 = vmatpush2.msra.mxu0 0.0
    %3403 = vmatprep.subr.mxu0 0.0
    %3404 = vmatpush2.msra.mxu0 0.0
    %3405 = vmatprep.subr.mxu0 0.0
    %3406 = vmatpush2.msra.mxu0 0.0
    %3407 = vmatprep.subr.mxu0 0.0
    %3408 = vmatpush2.msra.mxu0 0.0
    %3409 = vmatprep.subr.mxu0 0.0
    %3410 = vmatpush2.msra.mxu0 0.0
    %3411 = vmatprep.subr.mxu0 0.0
    %3412 = vmatpush2.msra.mxu0 0.0
    %3413 = vmatprep.subr.mxu0 0.0
    %3414 = vmatpush2.msra.mxu0 0.0
    %3415 = vmatprep.subr.mxu0 0.0
    %3416 = vmatpush2.msra.mxu0 0.0
    %3417 = vmatprep.subr.mxu0 0.0
    %3418 = vmatpush2.msra.mxu0 0.0
    %3419 = vmatprep.mubr.f32.mxu0 0.0
    %3420 = vmatmul.mubr.f32.gmra.mxu0 %v3347
    %v3421 = vpop.f32.mrf.mxu0
    %v3422 = vadd.f32 0.0, %v3421
    %v3423 = vpop.f32.mrf.mxu0
    %3424 = vmatprep.mubr.f32.mxu0 0.0
    %3425 = vmatmul.mubr.f32.gmra.mxu0 %v3348
    %v3426 = vpop.f32.mrf.mxu0
    %v3427 = vadd.f32 0.0, %v3426
    %v3428 = vpop.f32.mrf.mxu0
    %3429 = vmatprep.mubr.f32.mxu0 0.0
    %3430 = vmatmul.mubr.f32.gmra.mxu0 %v3349
    %v3431 = vpop.f32.mrf.mxu0
    %v3432 = vadd.f32 0.0, %v3431
    %v3433 = vpop.f32.mrf.mxu0
    %3434 = vmatprep.mubr.f32.mxu0 0.0
    %3435 = vmatmul.mubr.f32.gmra.mxu0 %v3350
    %v3436 = vpop.f32.mrf.mxu0
    %v3437 = vadd.f32 0.0, %v3436
    %v3438 = vpop.f32.mrf.mxu0
    %3439 = vmatprep.mubr.f32.mxu0 0.0
    %3440 = vmatmul.mubr.f32.gmra.mxu0 %v3351
    %v3441 = vpop.f32.mrf.mxu0
    %v3442 = vadd.f32 0.0, %v3441
    %v3443 = vpop.f32.mrf.mxu0
    %3444 = vmatprep.mubr.f32.mxu0 0.0
    %3445 = vmatmul.mubr.f32.gmra.mxu0 %v3352
    %v3446 = vpop.f32.mrf.mxu0
    %v3447 = vadd.f32 0.0, %v3446
    %v3448 = vpop.f32.mrf.mxu0
    %3449 = vmatprep.mubr.f32.mxu0 0.0
    %3450 = vmatmul.mubr.f32.gmra.mxu0 %v3353
    %v3451 = vpop.f32.mrf.mxu0
    %v3452 = vadd.f32 0.0, %v3451
    %v3453 = vpop.f32.mrf.mxu0
    %3454 = vmatprep.mubr.f32.mxu0 0.0
    %3455 = vmatmul.mubr.f32.gmra.mxu0 %v3354
    %v3456 = vpop.f32.mrf.mxu0
    %v3457 = vadd.f32 0.0, %v3456
    %v3458 = vpop.f32.mrf.mxu0
    %3459 = vdwg.mxu0
    %s3460 = scalar_lea.vmem [#allocation7], 192
    %v3461 = vld [vmem:[%s3460] sm:$0xff]
    %v3462 = vld [vmem:[%s3460 + $0x8] sm:$0xff]
    %v3463 = vld [vmem:[%s3460 + $0x10] sm:$0xff]
    %v3464 = vld [vmem:[%s3460 + $0x18] sm:$0xff]
    %v3465 = vld [vmem:[%s3460 + $0x20] sm:$0xff]
    %v3466 = vld [vmem:[%s3460 + $0x28] sm:$0xff]
    %v3467 = vld [vmem:[%s3460 + $0x30] sm:$0xff]
    %v3468 = vld [vmem:[%s3460 + $0x38] sm:$0xff]
    %v3469 = vld [vmem:[%s3460 + $0x40] sm:$0xff]
    %v3470 = vld [vmem:[%s3460 + $0x48] sm:$0xff]
    %v3471 = vld [vmem:[%s3460 + $0x50] sm:$0xff]
    %v3472 = vld [vmem:[%s3460 + $0x58] sm:$0xff]
    %v3474 = vsel %vm2358, %v3422, 0
    %v3477 = vsel %vm2358, %v3427, 0
    %v3480 = vsel %vm2358, %v3432, 0
    %v3483 = vsel %vm2358, %v3437, 0
    %v3486 = vsel %vm2358, %v3442, 0
    %v3489 = vsel %vm2358, %v3447, 0
    %v3492 = vsel %vm2358, %v3452, 0
    %v3495 = vsel %vm2358, %v3457, 0
    %3497 = vmatprep.subr.mxu0 0.0
    %3498 = vmatpush1.msra.mxu0 0.0
    %3499 = vmatprep.subr.mxu0 0.0
    %3500 = vmatpush1.msra.mxu0 0.0
    %3501 = vmatprep.subr.mxu0 0.0
    %3502 = vmatpush1.msra.mxu0 0.0
    %3503 = vmatprep.subr.mxu0 0.0
    %3504 = vmatpush1.msra.mxu0 0.0
    %3505 = vmatprep.subr.mxu0 0.0
    %3506 = vmatpush1.msra.mxu0 %v3472
    %3507 = vmatprep.subr.mxu0 0.0
    %3508 = vmatpush1.msra.mxu0 %v3471
    %3509 = vmatprep.subr.mxu0 0.0
    %3510 = vmatpush1.msra.mxu0 %v3470
    %3511 = vmatprep.subr.mxu0 0.0
    %3512 = vmatpush1.msra.mxu0 %v3469
    %3513 = vmatprep.subr.mxu0 0.0
    %3514 = vmatpush1.msra.mxu0 %v3468
    %3515 = vmatprep.subr.mxu0 0.0
    %3516 = vmatpush1.msra.mxu0 %v3467
    %3517 = vmatprep.subr.mxu0 0.0
    %3518 = vmatpush1.msra.mxu0 %v3466
    %3519 = vmatprep.subr.mxu0 0.0
    %3520 = vmatpush1.msra.mxu0 %v3465
    %3521 = vmatprep.subr.mxu0 0.0
    %3522 = vmatpush1.msra.mxu0 %v3464
    %3523 = vmatprep.subr.mxu0 0.0
    %3524 = vmatpush1.msra.mxu0 %v3463
    %3525 = vmatprep.subr.mxu0 0.0
    %3526 = vmatpush1.msra.mxu0 %v3462
    %3527 = vmatprep.subr.mxu0 0.0
    %3528 = vmatpush1.msra.mxu0 %v3461
    %3529 = vmatprep.subr.mxu0 0.0
    %3530 = vmatpush2.msra.mxu0 0.0
    %3531 = vmatprep.subr.mxu0 0.0
    %3532 = vmatpush2.msra.mxu0 0.0
    %3533 = vmatprep.subr.mxu0 0.0
    %3534 = vmatpush2.msra.mxu0 0.0
    %3535 = vmatprep.subr.mxu0 0.0
    %3536 = vmatpush2.msra.mxu0 0.0
    %3537 = vmatprep.subr.mxu0 0.0
    %3538 = vmatpush2.msra.mxu0 0.0
    %3539 = vmatprep.subr.mxu0 0.0
    %3540 = vmatpush2.msra.mxu0 0.0
    %3541 = vmatprep.subr.mxu0 0.0
    %3542 = vmatpush2.msra.mxu0 0.0
    %3543 = vmatprep.subr.mxu0 0.0
    %3544 = vmatpush2.msra.mxu0 0.0
    %3545 = vmatprep.subr.mxu0 0.0
    %3546 = vmatpush2.msra.mxu0 0.0
    %3547 = vmatprep.subr.mxu0 0.0
    %3548 = vmatpush2.msra.mxu0 0.0
    %3549 = vmatprep.subr.mxu0 0.0
    %3550 = vmatpush2.msra.mxu0 0.0
    %3551 = vmatprep.subr.mxu0 0.0
    %3552 = vmatpush2.msra.mxu0 0.0
    %3553 = vmatprep.subr.mxu0 0.0
    %3554 = vmatpush2.msra.mxu0 0.0
    %3555 = vmatprep.subr.mxu0 0.0
    %3556 = vmatpush2.msra.mxu0 0.0
    %3557 = vmatprep.subr.mxu0 0.0
    %3558 = vmatpush2.msra.mxu0 0.0
    %3559 = vmatprep.subr.mxu0 0.0
    %3560 = vmatpush2.msra.mxu0 0.0
    %3561 = vmatprep.mubr.f32.mxu0 0.0
    %3562 = vmatmul.mubr.f32.gmra.mxu0 %v3474
    %v3563 = vpop.f32.mrf.mxu0
    %v3564 = vadd.f32 0.0, %v3563
    %v3565 = vpop.f32.mrf.mxu0
    %3566 = vmatprep.mubr.f32.mxu0 0.0
    %3567 = vmatmul.mubr.f32.gmra.mxu0 %v3477
    %v3568 = vpop.f32.mrf.mxu0
    %v3569 = vadd.f32 0.0, %v3568
    %v3570 = vpop.f32.mrf.mxu0
    %3571 = vmatprep.mubr.f32.mxu0 0.0
    %3572 = vmatmul.mubr.f32.gmra.mxu0 %v3480
    %v3573 = vpop.f32.mrf.mxu0
    %v3574 = vadd.f32 0.0, %v3573
    %v3575 = vpop.f32.mrf.mxu0
    %3576 = vmatprep.mubr.f32.mxu0 0.0
    %3577 = vmatmul.mubr.f32.gmra.mxu0 %v3483
    %v3578 = vpop.f32.mrf.mxu0
    %v3579 = vadd.f32 0.0, %v3578
    %v3580 = vpop.f32.mrf.mxu0
    %3581 = vmatprep.mubr.f32.mxu0 0.0
    %3582 = vmatmul.mubr.f32.gmra.mxu0 %v3486
    %v3583 = vpop.f32.mrf.mxu0
    %v3584 = vadd.f32 0.0, %v3583
    %v3585 = vpop.f32.mrf.mxu0
    %3586 = vmatprep.mubr.f32.mxu0 0.0
    %3587 = vmatmul.mubr.f32.gmra.mxu0 %v3489
    %v3588 = vpop.f32.mrf.mxu0
    %v3589 = vadd.f32 0.0, %v3588
    %v3590 = vpop.f32.mrf.mxu0
    %3591 = vmatprep.mubr.f32.mxu0 0.0
    %3592 = vmatmul.mubr.f32.gmra.mxu0 %v3492
    %v3593 = vpop.f32.mrf.mxu0
    %v3594 = vadd.f32 0.0, %v3593
    %v3595 = vpop.f32.mrf.mxu0
    %3596 = vmatprep.mubr.f32.mxu0 0.0
    %3597 = vmatmul.mubr.f32.gmra.mxu0 %v3495
    %v3598 = vpop.f32.mrf.mxu0
    %v3599 = vadd.f32 0.0, %v3598
    %v3600 = vpop.f32.mrf.mxu0
    %3601 = vdwg.mxu0
    %v3602 = vadd.f32 %v3300, %v3564
    %v3603 = vadd.f32 %v3305, %v3569
    %v3604 = vadd.f32 %v3310, %v3574
    %v3605 = vadd.f32 %v3315, %v3579
    %v3606 = vadd.f32 %v3320, %v3584
    %v3607 = vadd.f32 %v3325, %v3589
    %v3608 = vadd.f32 %v3330, %v3594
    %v3609 = vadd.f32 %v3335, %v3599
    %s3610 = scalar_lea.vmem %s9, 96
    %v3611 = vld [vmem:[%s3610] sm:$0xf]
    %v3612 = vld [vmem:[%s3610 + $0x4] sm:$0xf]
    %v3613 = vld [vmem:[%s3610 + $0x8] sm:$0xf]
    %v3614 = vld [vmem:[%s3610 + $0xc] sm:$0xf]
    %v3615 = vld [vmem:[%s3610 + $0x10] sm:$0xf]
    %v3616 = vld [vmem:[%s3610 + $0x14] sm:$0xf]
    %v3617 = vld [vmem:[%s3610 + $0x18] sm:$0xf]
    %v3618 = vld [vmem:[%s3610 + $0x1c] sm:$0xf]
    %v3619 = vunpack.c.l.bf16 %v3611
    %v3620 = vunpack.c.l.bf16 %v3612
    %v3621 = vunpack.c.l.bf16 %v3613
    %v3622 = vunpack.c.l.bf16 %v3614
    %v3623 = vunpack.c.l.bf16 %v3615
    %v3624 = vunpack.c.l.bf16 %v3616
    %v3625 = vunpack.c.l.bf16 %v3617
    %v3626 = vunpack.c.l.bf16 %v3618
    %3627 = vmatprep.subr.mxu0 0.0
    %3628 = vmatpush1.msra.mxu0 %v2811
    %3629 = vmatprep.subr.mxu0 0.0
    %3630 = vmatpush1.msra.mxu0 %v2810
    %3631 = vmatprep.subr.mxu0 0.0
    %3632 = vmatpush1.msra.mxu0 %v2809
    %3633 = vmatprep.subr.mxu0 0.0
    %3634 = vmatpush1.msra.mxu0 %v2808
    %3635 = vmatprep.subr.mxu0 0.0
    %3636 = vmatpush1.msra.mxu0 %v2807
    %3637 = vmatprep.subr.mxu0 0.0
    %3638 = vmatpush1.msra.mxu0 %v2806
    %3639 = vmatprep.subr.mxu0 0.0
    %3640 = vmatpush1.msra.mxu0 %v2805
    %3641 = vmatprep.subr.mxu0 0.0
    %3642 = vmatpush1.msra.mxu0 %v2804
    %3643 = vmatprep.subr.mxu0 0.0
    %3644 = vmatpush1.msra.mxu0 %v2803
    %3645 = vmatprep.subr.mxu0 0.0
    %3646 = vmatpush1.msra.mxu0 %v2802
    %3647 = vmatprep.subr.mxu0 0.0
    %3648 = vmatpush1.msra.mxu0 %v2801
    %3649 = vmatprep.subr.mxu0 0.0
    %3650 = vmatpush1.msra.mxu0 %v2800
    %3651 = vmatprep.subr.mxu0 0.0
    %3652 = vmatpush1.msra.mxu0 %v2799
    %3653 = vmatprep.subr.mxu0 0.0
    %3654 = vmatpush1.msra.mxu0 %v2798
    %3655 = vmatprep.subr.mxu0 0.0
    %3656 = vmatpush1.msra.mxu0 %v2797
    %3657 = vmatprep.subr.mxu0 0.0
    %3658 = vmatpush1.msra.mxu0 %v2796
    %3659 = vmatprep.subr.mxu0 0.0
    %3660 = vmatpush2.msra.mxu0 0.0
    %3661 = vmatprep.subr.mxu0 0.0
    %3662 = vmatpush2.msra.mxu0 0.0
    %3663 = vmatprep.subr.mxu0 0.0
    %3664 = vmatpush2.msra.mxu0 0.0
    %3665 = vmatprep.subr.mxu0 0.0
    %3666 = vmatpush2.msra.mxu0 0.0
    %3667 = vmatprep.subr.mxu0 0.0
    %3668 = vmatpush2.msra.mxu0 0.0
    %3669 = vmatprep.subr.mxu0 0.0
    %3670 = vmatpush2.msra.mxu0 0.0
    %3671 = vmatprep.subr.mxu0 0.0
    %3672 = vmatpush2.msra.mxu0 0.0
    %3673 = vmatprep.subr.mxu0 0.0
    %3674 = vmatpush2.msra.mxu0 0.0
    %3675 = vmatprep.subr.mxu0 0.0
    %3676 = vmatpush2.msra.mxu0 0.0
    %3677 = vmatprep.subr.mxu0 0.0
    %3678 = vmatpush2.msra.mxu0 0.0
    %3679 = vmatprep.subr.mxu0 0.0
    %3680 = vmatpush2.msra.mxu0 0.0
    %3681 = vmatprep.subr.mxu0 0.0
    %3682 = vmatpush2.msra.mxu0 0.0
    %3683 = vmatprep.subr.mxu0 0.0
    %3684 = vmatpush2.msra.mxu0 0.0
    %3685 = vmatprep.subr.mxu0 0.0
    %3686 = vmatpush2.msra.mxu0 0.0
    %3687 = vmatprep.subr.mxu0 0.0
    %3688 = vmatpush2.msra.mxu0 0.0
    %3689 = vmatprep.subr.mxu0 0.0
    %3690 = vmatpush2.msra.mxu0 0.0
    %3691 = vmatprep.mubr.f32.mxu0 0.0
    %3692 = vmatmul.mubr.f32.gmra.mxu0 %v3619
    %v3693 = vpop.f32.mrf.mxu0
    %v3694 = vadd.f32 0.0, %v3693
    %v3695 = vpop.f32.mrf.mxu0
    %3696 = vmatprep.mubr.f32.mxu0 0.0
    %3697 = vmatmul.mubr.f32.gmra.mxu0 %v3620
    %v3698 = vpop.f32.mrf.mxu0
    %v3699 = vadd.f32 0.0, %v3698
    %v3700 = vpop.f32.mrf.mxu0
    %3701 = vmatprep.mubr.f32.mxu0 0.0
    %3702 = vmatmul.mubr.f32.gmra.mxu0 %v3621
    %v3703 = vpop.f32.mrf.mxu0
    %v3704 = vadd.f32 0.0, %v3703
    %v3705 = vpop.f32.mrf.mxu0
    %3706 = vmatprep.mubr.f32.mxu0 0.0
    %3707 = vmatmul.mubr.f32.gmra.mxu0 %v3622
    %v3708 = vpop.f32.mrf.mxu0
    %v3709 = vadd.f32 0.0, %v3708
    %v3710 = vpop.f32.mrf.mxu0
    %3711 = vmatprep.mubr.f32.mxu0 0.0
    %3712 = vmatmul.mubr.f32.gmra.mxu0 %v3623
    %v3713 = vpop.f32.mrf.mxu0
    %v3714 = vadd.f32 0.0, %v3713
    %v3715 = vpop.f32.mrf.mxu0
    %3716 = vmatprep.mubr.f32.mxu0 0.0
    %3717 = vmatmul.mubr.f32.gmra.mxu0 %v3624
    %v3718 = vpop.f32.mrf.mxu0
    %v3719 = vadd.f32 0.0, %v3718
    %v3720 = vpop.f32.mrf.mxu0
    %3721 = vmatprep.mubr.f32.mxu0 0.0
    %3722 = vmatmul.mubr.f32.gmra.mxu0 %v3625
    %v3723 = vpop.f32.mrf.mxu0
    %v3724 = vadd.f32 0.0, %v3723
    %v3725 = vpop.f32.mrf.mxu0
    %3726 = vmatprep.mubr.f32.mxu0 0.0
    %3727 = vmatmul.mubr.f32.gmra.mxu0 %v3626
    %v3728 = vpop.f32.mrf.mxu0
    %v3729 = vadd.f32 0.0, %v3728
    %v3730 = vpop.f32.mrf.mxu0
    %3731 = vdwg.mxu0
    %s3732 = scalar_lea.vmem [#allocation7], 288
    %v3733 = vld [vmem:[%s3732] sm:$0xff]
    %v3734 = vld [vmem:[%s3732 + $0x8] sm:$0xff]
    %v3735 = vld [vmem:[%s3732 + $0x10] sm:$0xff]
    %v3736 = vld [vmem:[%s3732 + $0x18] sm:$0xff]
    %v3737 = vld [vmem:[%s3732 + $0x20] sm:$0xff]
    %v3738 = vld [vmem:[%s3732 + $0x28] sm:$0xff]
    %v3739 = vld [vmem:[%s3732 + $0x30] sm:$0xff]
    %v3740 = vld [vmem:[%s3732 + $0x38] sm:$0xff]
    %v3741 = vld [vmem:[%s3732 + $0x40] sm:$0xff]
    %v3742 = vld [vmem:[%s3732 + $0x48] sm:$0xff]
    %v3743 = vld [vmem:[%s3732 + $0x50] sm:$0xff]
    %v3744 = vld [vmem:[%s3732 + $0x58] sm:$0xff]
    %v3746 = vsel %vm2358, %v3694, 0
    %v3749 = vsel %vm2358, %v3699, 0
    %v3752 = vsel %vm2358, %v3704, 0
    %v3755 = vsel %vm2358, %v3709, 0
    %v3758 = vsel %vm2358, %v3714, 0
    %v3761 = vsel %vm2358, %v3719, 0
    %v3764 = vsel %vm2358, %v3724, 0
    %v3767 = vsel %vm2358, %v3729, 0
    %3769 = vmatprep.subr.mxu0 0.0
    %3770 = vmatpush1.msra.mxu0 0.0
    %3771 = vmatprep.subr.mxu0 0.0
    %3772 = vmatpush1.msra.mxu0 0.0
    %3773 = vmatprep.subr.mxu0 0.0
    %3774 = vmatpush1.msra.mxu0 0.0
    %3775 = vmatprep.subr.mxu0 0.0
    %3776 = vmatpush1.msra.mxu0 0.0
    %3777 = vmatprep.subr.mxu0 0.0
    %3778 = vmatpush1.msra.mxu0 %v3744
    %3779 = vmatprep.subr.mxu0 0.0
    %3780 = vmatpush1.msra.mxu0 %v3743
    %3781 = vmatprep.subr.mxu0 0.0
    %3782 = vmatpush1.msra.mxu0 %v3742
    %3783 = vmatprep.subr.mxu0 0.0
    %3784 = vmatpush1.msra.mxu0 %v3741
    %3785 = vmatprep.subr.mxu0 0.0
    %3786 = vmatpush1.msra.mxu0 %v3740
    %3787 = vmatprep.subr.mxu0 0.0
    %3788 = vmatpush1.msra.mxu0 %v3739
    %3789 = vmatprep.subr.mxu0 0.0
    %3790 = vmatpush1.msra.mxu0 %v3738
    %3791 = vmatprep.subr.mxu0 0.0
    %3792 = vmatpush1.msra.mxu0 %v3737
    %3793 = vmatprep.subr.mxu0 0.0
    %3794 = vmatpush1.msra.mxu0 %v3736
    %3795 = vmatprep.subr.mxu0 0.0
    %3796 = vmatpush1.msra.mxu0 %v3735
    %3797 = vmatprep.subr.mxu0 0.0
    %3798 = vmatpush1.msra.mxu0 %v3734
    %3799 = vmatprep.subr.mxu0 0.0
    %3800 = vmatpush1.msra.mxu0 %v3733
    %3801 = vmatprep.subr.mxu0 0.0
    %3802 = vmatpush2.msra.mxu0 0.0
    %3803 = vmatprep.subr.mxu0 0.0
    %3804 = vmatpush2.msra.mxu0 0.0
    %3805 = vmatprep.subr.mxu0 0.0
    %3806 = vmatpush2.msra.mxu0 0.0
    %3807 = vmatprep.subr.mxu0 0.0
    %3808 = vmatpush2.msra.mxu0 0.0
    %3809 = vmatprep.subr.mxu0 0.0
    %3810 = vmatpush2.msra.mxu0 0.0
    %3811 = vmatprep.subr.mxu0 0.0
    %3812 = vmatpush2.msra.mxu0 0.0
    %3813 = vmatprep.subr.mxu0 0.0
    %3814 = vmatpush2.msra.mxu0 0.0
    %3815 = vmatprep.subr.mxu0 0.0
    %3816 = vmatpush2.msra.mxu0 0.0
    %3817 = vmatprep.subr.mxu0 0.0
    %3818 = vmatpush2.msra.mxu0 0.0
    %3819 = vmatprep.subr.mxu0 0.0
    %3820 = vmatpush2.msra.mxu0 0.0
    %3821 = vmatprep.subr.mxu0 0.0
    %3822 = vmatpush2.msra.mxu0 0.0
    %3823 = vmatprep.subr.mxu0 0.0
    %3824 = vmatpush2.msra.mxu0 0.0
    %3825 = vmatprep.subr.mxu0 0.0
    %3826 = vmatpush2.msra.mxu0 0.0
    %3827 = vmatprep.subr.mxu0 0.0
    %3828 = vmatpush2.msra.mxu0 0.0
    %3829 = vmatprep.subr.mxu0 0.0
    %3830 = vmatpush2.msra.mxu0 0.0
    %3831 = vmatprep.subr.mxu0 0.0
    %3832 = vmatpush2.msra.mxu0 0.0
    %3833 = vmatprep.mubr.f32.mxu0 0.0
    %3834 = vmatmul.mubr.f32.gmra.mxu0 %v3746
    %v3835 = vpop.f32.mrf.mxu0
    %v3836 = vadd.f32 0.0, %v3835
    %v3837 = vpop.f32.mrf.mxu0
    %3838 = vmatprep.mubr.f32.mxu0 0.0
    %3839 = vmatmul.mubr.f32.gmra.mxu0 %v3749
    %v3840 = vpop.f32.mrf.mxu0
    %v3841 = vadd.f32 0.0, %v3840
    %v3842 = vpop.f32.mrf.mxu0
    %3843 = vmatprep.mubr.f32.mxu0 0.0
    %3844 = vmatmul.mubr.f32.gmra.mxu0 %v3752
    %v3845 = vpop.f32.mrf.mxu0
    %v3846 = vadd.f32 0.0, %v3845
    %v3847 = vpop.f32.mrf.mxu0
    %3848 = vmatprep.mubr.f32.mxu0 0.0
    %3849 = vmatmul.mubr.f32.gmra.mxu0 %v3755
    %v3850 = vpop.f32.mrf.mxu0
    %v3851 = vadd.f32 0.0, %v3850
    %v3852 = vpop.f32.mrf.mxu0
    %3853 = vmatprep.mubr.f32.mxu0 0.0
    %3854 = vmatmul.mubr.f32.gmra.mxu0 %v3758
    %v3855 = vpop.f32.mrf.mxu0
    %v3856 = vadd.f32 0.0, %v3855
    %v3857 = vpop.f32.mrf.mxu0
    %3858 = vmatprep.mubr.f32.mxu0 0.0
    %3859 = vmatmul.mubr.f32.gmra.mxu0 %v3761
    %v3860 = vpop.f32.mrf.mxu0
    %v3861 = vadd.f32 0.0, %v3860
    %v3862 = vpop.f32.mrf.mxu0
    %3863 = vmatprep.mubr.f32.mxu0 0.0
    %3864 = vmatmul.mubr.f32.gmra.mxu0 %v3764
    %v3865 = vpop.f32.mrf.mxu0
    %v3866 = vadd.f32 0.0, %v3865
    %v3867 = vpop.f32.mrf.mxu0
    %3868 = vmatprep.mubr.f32.mxu0 0.0
    %3869 = vmatmul.mubr.f32.gmra.mxu0 %v3767
    %v3870 = vpop.f32.mrf.mxu0
    %v3871 = vadd.f32 0.0, %v3870
    %v3872 = vpop.f32.mrf.mxu0
    %3873 = vdwg.mxu0
    %v3874 = vadd.f32 %v3602, %v3836
    %v3875 = vadd.f32 %v3603, %v3841
    %v3876 = vadd.f32 %v3604, %v3846
    %v3877 = vadd.f32 %v3605, %v3851
    %v3878 = vadd.f32 %v3606, %v3856
    %v3879 = vadd.f32 %v3607, %v3861
    %v3880 = vadd.f32 %v3608, %v3866
    %v3881 = vadd.f32 %v3609, %v3871
    %v3882 = vld [vmem:[%s11] sm:$0xf]
    %v3883 = vld [vmem:[%s11 + $0x4] sm:$0xf]
    %v3884 = vld [vmem:[%s11 + $0x8] sm:$0xf]
    %v3885 = vld [vmem:[%s11 + $0xc] sm:$0xf]
    %v3886 = vld [vmem:[%s11 + $0x10] sm:$0xf]
    %v3887 = vld [vmem:[%s11 + $0x14] sm:$0xf]
    %v3888 = vld [vmem:[%s11 + $0x18] sm:$0xf]
    %v3889 = vld [vmem:[%s11 + $0x1c] sm:$0xf]
    %v3890 = vld [vmem:[%s11 + $0x20] sm:$0xf]
    %v3891 = vld [vmem:[%s11 + $0x24] sm:$0xf]
    %v3892 = vld [vmem:[%s11 + $0x28] sm:$0xf]
    %v3893 = vld [vmem:[%s11 + $0x2c] sm:$0xf]
    %v3894 = vunpack.c.l.bf16 %v3882
    %v3895 = vunpack.c.l.bf16 %v3883
    %v3896 = vunpack.c.l.bf16 %v3884
    %v3897 = vunpack.c.l.bf16 %v3885
    %v3898 = vunpack.c.l.bf16 %v3886
    %v3899 = vunpack.c.l.bf16 %v3887
    %v3900 = vunpack.c.l.bf16 %v3888
    %v3901 = vunpack.c.l.bf16 %v3889
    %v3902 = vunpack.c.l.bf16 %v3890
    %v3903 = vunpack.c.l.bf16 %v3891
    %v3904 = vunpack.c.l.bf16 %v3892
    %v3905 = vunpack.c.l.bf16 %v3893
    %v3906 = vsel %vm2358, %v3874, 0.0
    %v3907 = vsel %vm2358, %v3875, 0.0
    %v3908 = vadd.f32 %v3906, %v3907
    %v3909 = vsel %vm2358, %v3876, 0.0
    %v3910 = vadd.f32 %v3908, %v3909
    %v3911 = vsel %vm2358, %v3877, 0.0
    %v3912 = vadd.f32 %v3910, %v3911
    %v3913 = vsel %vm2358, %v3878, 0.0
    %v3914 = vadd.f32 %v3912, %v3913
    %v3915 = vsel %vm2358, %v3879, 0.0
    %v3916 = vadd.f32 %v3914, %v3915
    %v3917 = vsel %vm2358, %v3880, 0.0
    %v3918 = vadd.f32 %v3916, %v3917
    %v3919 = vsel %vm2358, %v3881, 0.0
    %v3920 = vadd.f32 %v3918, %v3919
    %v3921 = vrot.slane %v3920, 4
    %v3922 = vadd.f32 %v3920, %v3921
    %v3923 = vrot.slane %v3922, 2
    %v3924 = vadd.f32 %v3922, %v3923
    %v3925 = vrot.slane %v3924, 1
    %v3926 = vadd.f32 %v3924, %v3925
    %v3928 = vsel %vm2358, %v3926, 0
    %3930 = vmatprep.subr.mxu0 0.0
    %3931 = vmatpush1.msra.mxu0 0.0
    %3932 = vmatprep.subr.mxu0 0.0
    %3933 = vmatpush1.msra.mxu0 0.0
    %3934 = vmatprep.subr.mxu0 0.0
    %3935 = vmatpush1.msra.mxu0 0.0
    %3936 = vmatprep.subr.mxu0 0.0
    %3937 = vmatpush1.msra.mxu0 0.0
    %3938 = vmatprep.subr.mxu0 0.0
    %3939 = vmatpush1.msra.mxu0 %v3905
    %3940 = vmatprep.subr.mxu0 0.0
    %3941 = vmatpush1.msra.mxu0 %v3904
    %3942 = vmatprep.subr.mxu0 0.0
    %3943 = vmatpush1.msra.mxu0 %v3903
    %3944 = vmatprep.subr.mxu0 0.0
    %3945 = vmatpush1.msra.mxu0 %v3902
    %3946 = vmatprep.subr.mxu0 0.0
    %3947 = vmatpush1.msra.mxu0 %v3901
    %3948 = vmatprep.subr.mxu0 0.0
    %3949 = vmatpush1.msra.mxu0 %v3900
    %3950 = vmatprep.subr.mxu0 0.0
    %3951 = vmatpush1.msra.mxu0 %v3899
    %3952 = vmatprep.subr.mxu0 0.0
    %3953 = vmatpush1.msra.mxu0 %v3898
    %3954 = vmatprep.subr.mxu0 0.0
    %3955 = vmatpush1.msra.mxu0 %v3897
    %3956 = vmatprep.subr.mxu0 0.0
    %3957 = vmatpush1.msra.mxu0 %v3896
    %3958 = vmatprep.subr.mxu0 0.0
    %3959 = vmatpush1.msra.mxu0 %v3895
    %3960 = vmatprep.subr.mxu0 0.0
    %3961 = vmatpush1.msra.mxu0 %v3894
    %3962 = vmatprep.subr.mxu0 0.0
    %3963 = vmatpush2.msra.mxu0 0.0
    %3964 = vmatprep.subr.mxu0 0.0
    %3965 = vmatpush2.msra.mxu0 0.0
    %3966 = vmatprep.subr.mxu0 0.0
    %3967 = vmatpush2.msra.mxu0 0.0
    %3968 = vmatprep.subr.mxu0 0.0
    %3969 = vmatpush2.msra.mxu0 0.0
    %3970 = vmatprep.subr.mxu0 0.0
    %3971 = vmatpush2.msra.mxu0 0.0
    %3972 = vmatprep.subr.mxu0 0.0
    %3973 = vmatpush2.msra.mxu0 0.0
    %3974 = vmatprep.subr.mxu0 0.0
    %3975 = vmatpush2.msra.mxu0 0.0
    %3976 = vmatprep.subr.mxu0 0.0
    %3977 = vmatpush2.msra.mxu0 0.0
    %3978 = vmatprep.subr.mxu0 0.0
    %3979 = vmatpush2.msra.mxu0 0.0
    %3980 = vmatprep.subr.mxu0 0.0
    %3981 = vmatpush2.msra.mxu0 0.0
    %3982 = vmatprep.subr.mxu0 0.0
    %3983 = vmatpush2.msra.mxu0 0.0
    %3984 = vmatprep.subr.mxu0 0.0
    %3985 = vmatpush2.msra.mxu0 0.0
    %3986 = vmatprep.subr.mxu0 0.0
    %3987 = vmatpush2.msra.mxu0 0.0
    %3988 = vmatprep.subr.mxu0 0.0
    %3989 = vmatpush2.msra.mxu0 0.0
    %3990 = vmatprep.subr.mxu0 0.0
    %3991 = vmatpush2.msra.mxu0 0.0
    %3992 = vmatprep.subr.mxu0 0.0
    %3993 = vmatpush2.msra.mxu0 0.0
    %3994 = vmatprep.mubr.f32.mxu0 0.0
    %3995 = vmatmul.mubr.f32.gmra.mxu0 %v3928
    %v3996 = vpop.f32.mrf.mxu0
    %v3997 = vadd.f32 0.0, %v3996
    %v3998 = vpop.f32.mrf.mxu0
    %3999 = vdwg.mxu0
    %v4000 = vmul.f32 %v3874, %v3874
    %v4001 = vmul.f32 %v3875, %v3875
    %v4002 = vmul.f32 %v3876, %v3876
    %v4003 = vmul.f32 %v3877, %v3877
    %v4004 = vmul.f32 %v3878, %v3878
    %v4005 = vmul.f32 %v3879, %v3879
    %v4006 = vmul.f32 %v3880, %v3880
    %v4007 = vmul.f32 %v3881, %v3881
    %v4008 = vsel %vm2358, %v4000, 0.0
    %v4009 = vsel %vm2358, %v4001, 0.0
    %v4010 = vadd.f32 %v4008, %v4009
    %v4011 = vsel %vm2358, %v4002, 0.0
    %v4012 = vadd.f32 %v4010, %v4011
    %v4013 = vsel %vm2358, %v4003, 0.0
    %v4014 = vadd.f32 %v4012, %v4013
    %v4015 = vsel %vm2358, %v4004, 0.0
    %v4016 = vadd.f32 %v4014, %v4015
    %v4017 = vsel %vm2358, %v4005, 0.0
    %v4018 = vadd.f32 %v4016, %v4017
    %v4019 = vsel %vm2358, %v4006, 0.0
    %v4020 = vadd.f32 %v4018, %v4019
    %v4021 = vsel %vm2358, %v4007, 0.0
    %v4022 = vadd.f32 %v4020, %v4021
    %v4023 = vrot.slane %v4022, 4
    %v4024 = vadd.f32 %v4022, %v4023
    %v4025 = vrot.slane %v4024, 2
    %v4026 = vadd.f32 %v4024, %v4025
    %v4027 = vrot.slane %v4026, 1
    %v4028 = vadd.f32 %v4026, %v4027
    %v4030 = vsel %vm2358, %v4028, 0
    %4032 = vmatprep.subr.mxu0 0.0
    %4033 = vmatpush1.msra.mxu0 0.0
    %4034 = vmatprep.subr.mxu0 0.0
    %4035 = vmatpush1.msra.mxu0 0.0
    %4036 = vmatprep.subr.mxu0 0.0
    %4037 = vmatpush1.msra.mxu0 0.0
    %4038 = vmatprep.subr.mxu0 0.0
    %4039 = vmatpush1.msra.mxu0 0.0
    %4040 = vmatprep.subr.mxu0 0.0
    %4041 = vmatpush1.msra.mxu0 %v3905
    %4042 = vmatprep.subr.mxu0 0.0
    %4043 = vmatpush1.msra.mxu0 %v3904
    %4044 = vmatprep.subr.mxu0 0.0
    %4045 = vmatpush1.msra.mxu0 %v3903
    %4046 = vmatprep.subr.mxu0 0.0
    %4047 = vmatpush1.msra.mxu0 %v3902
    %4048 = vmatprep.subr.mxu0 0.0
    %4049 = vmatpush1.msra.mxu0 %v3901
    %4050 = vmatprep.subr.mxu0 0.0
    %4051 = vmatpush1.msra.mxu0 %v3900
    %4052 = vmatprep.subr.mxu0 0.0
    %4053 = vmatpush1.msra.mxu0 %v3899
    %4054 = vmatprep.subr.mxu0 0.0
    %4055 = vmatpush1.msra.mxu0 %v3898
    %4056 = vmatprep.subr.mxu0 0.0
    %4057 = vmatpush1.msra.mxu0 %v3897
    %4058 = vmatprep.subr.mxu0 0.0
    %4059 = vmatpush1.msra.mxu0 %v3896
    %4060 = vmatprep.subr.mxu0 0.0
    %4061 = vmatpush1.msra.mxu0 %v3895
    %4062 = vmatprep.subr.mxu0 0.0
    %4063 = vmatpush1.msra.mxu0 %v3894
    %4064 = vmatprep.subr.mxu0 0.0
    %4065 = vmatpush2.msra.mxu0 0.0
    %4066 = vmatprep.subr.mxu0 0.0
    %4067 = vmatpush2.msra.mxu0 0.0
    %4068 = vmatprep.subr.mxu0 0.0
    %4069 = vmatpush2.msra.mxu0 0.0
    %4070 = vmatprep.subr.mxu0 0.0
    %4071 = vmatpush2.msra.mxu0 0.0
    %4072 = vmatprep.subr.mxu0 0.0
    %4073 = vmatpush2.msra.mxu0 0.0
    %4074 = vmatprep.subr.mxu0 0.0
    %4075 = vmatpush2.msra.mxu0 0.0
    %4076 = vmatprep.subr.mxu0 0.0
    %4077 = vmatpush2.msra.mxu0 0.0
    %4078 = vmatprep.subr.mxu0 0.0
    %4079 = vmatpush2.msra.mxu0 0.0
    %4080 = vmatprep.subr.mxu0 0.0
    %4081 = vmatpush2.msra.mxu0 0.0
    %4082 = vmatprep.subr.mxu0 0.0
    %4083 = vmatpush2.msra.mxu0 0.0
    %4084 = vmatprep.subr.mxu0 0.0
    %4085 = vmatpush2.msra.mxu0 0.0
    %4086 = vmatprep.subr.mxu0 0.0
    %4087 = vmatpush2.msra.mxu0 0.0
    %4088 = vmatprep.subr.mxu0 0.0
    %4089 = vmatpush2.msra.mxu0 0.0
    %4090 = vmatprep.subr.mxu0 0.0
    %4091 = vmatpush2.msra.mxu0 0.0
    %4092 = vmatprep.subr.mxu0 0.0
    %4093 = vmatpush2.msra.mxu0 0.0
    %4094 = vmatprep.subr.mxu0 0.0
    %4095 = vmatpush2.msra.mxu0 0.0
    %4096 = vmatprep.mubr.f32.mxu0 0.0
    %4097 = vmatmul.mubr.f32.gmra.mxu0 %v4030
    %v4098 = vpop.f32.mrf.mxu0
    %v4099 = vadd.f32 0.0, %v4098
    %v4100 = vpop.f32.mrf.mxu0
    %4101 = vdwg.mxu0
    %v4102 = vmul.f32 %v3997, 0.0026041667
    %v4103 = vmul.f32 %v4099, 0.0026041667
    %v4104 = vmul.f32 %v4102, %v4102
    %v4105 = vsub.f32 %v4103, %v4104
    %v4106 = vmax.f32 %v4105, 0.0
    %v4107 = vld [vmem:[%s13] sm:$0x1]
    %v4108 = vadd.f32 %v4106, 1e-05
    %v4109 = vrsqrt.pop %v4108
    %v4110 = vmul.f32 %v4107, %v4109
    %v4111 = vld [vmem:[%s14] sm:$0x1]
    %v4112 = vmul.f32 %v4102, %v4110
    %v4113 = vsub.f32 %v4111, %v4112
    %v4114 = vld [vmem:[%s12] sm:$0xf]
    %v4115 = vld [vmem:[%s12 + $0x4] sm:$0xf]
    %v4116 = vunpack.c.l.bf16 %v4114
    %v4117 = vunpack.c.l.bf16 %v4115
    %vm4118 = vcmask 130048
    %v4120 = vsel %vm4118, %v4110, 0
    %4122 = vmatprep.subr.mxu0 0.0
    %4123 = vmatpush1.msra.mxu0 0.0
    %4124 = vmatprep.subr.mxu0 0.0
    %4125 = vmatpush1.msra.mxu0 0.0
    %4126 = vmatprep.subr.mxu0 0.0
    %4127 = vmatpush1.msra.mxu0 0.0
    %4128 = vmatprep.subr.mxu0 0.0
    %4129 = vmatpush1.msra.mxu0 0.0
    %4130 = vmatprep.subr.mxu0 0.0
    %4131 = vmatpush1.msra.mxu0 0.0
    %4132 = vmatprep.subr.mxu0 0.0
    %4133 = vmatpush1.msra.mxu0 0.0
    %4134 = vmatprep.subr.mxu0 0.0
    %4135 = vmatpush1.msra.mxu0 0.0
    %4136 = vmatprep.subr.mxu0 0.0
    %4137 = vmatpush1.msra.mxu0 0.0
    %4138 = vmatprep.subr.mxu0 0.0
    %4139 = vmatpush1.msra.mxu0 0.0
    %4140 = vmatprep.subr.mxu0 0.0
    %4141 = vmatpush1.msra.mxu0 0.0
    %4142 = vmatprep.subr.mxu0 0.0
    %4143 = vmatpush1.msra.mxu0 0.0
    %4144 = vmatprep.subr.mxu0 0.0
    %4145 = vmatpush1.msra.mxu0 0.0
    %4146 = vmatprep.subr.mxu0 0.0
    %4147 = vmatpush1.msra.mxu0 0.0
    %4148 = vmatprep.subr.mxu0 0.0
    %4149 = vmatpush1.msra.mxu0 0.0
    %4150 = vmatprep.subr.mxu0 0.0
    %4151 = vmatpush1.msra.mxu0 %v4117
    %4152 = vmatprep.subr.mxu0 0.0
    %4153 = vmatpush1.msra.mxu0 %v4116
    %4154 = vmatprep.subr.mxu0 0.0
    %4155 = vmatpush2.msra.mxu0 0.0
    %4156 = vmatprep.subr.mxu0 0.0
    %4157 = vmatpush2.msra.mxu0 0.0
    %4158 = vmatprep.subr.mxu0 0.0
    %4159 = vmatpush2.msra.mxu0 0.0
    %4160 = vmatprep.subr.mxu0 0.0
    %4161 = vmatpush2.msra.mxu0 0.0
    %4162 = vmatprep.subr.mxu0 0.0
    %4163 = vmatpush2.msra.mxu0 0.0
    %4164 = vmatprep.subr.mxu0 0.0
    %4165 = vmatpush2.msra.mxu0 0.0
    %4166 = vmatprep.subr.mxu0 0.0
    %4167 = vmatpush2.msra.mxu0 0.0
    %4168 = vmatprep.subr.mxu0 0.0
    %4169 = vmatpush2.msra.mxu0 0.0
    %4170 = vmatprep.subr.mxu0 0.0
    %4171 = vmatpush2.msra.mxu0 0.0
    %4172 = vmatprep.subr.mxu0 0.0
    %4173 = vmatpush2.msra.mxu0 0.0
    %4174 = vmatprep.subr.mxu0 0.0
    %4175 = vmatpush2.msra.mxu0 0.0
    %4176 = vmatprep.subr.mxu0 0.0
    %4177 = vmatpush2.msra.mxu0 0.0
    %4178 = vmatprep.subr.mxu0 0.0
    %4179 = vmatpush2.msra.mxu0 0.0
    %4180 = vmatprep.subr.mxu0 0.0
    %4181 = vmatpush2.msra.mxu0 0.0
    %4182 = vmatprep.subr.mxu0 0.0
    %4183 = vmatpush2.msra.mxu0 0.0
    %4184 = vmatprep.subr.mxu0 0.0
    %4185 = vmatpush2.msra.mxu0 0.0
    %4186 = vmatprep.mubr.f32.mxu0 0.0
    %4187 = vmatmul.mubr.f32.gmra.mxu0 %v4120
    %v4188 = vpop.f32.mrf.mxu0
    %v4189 = vadd.f32 0.0, %v4188
    %v4190 = vpop.f32.mrf.mxu0
    %4191 = vdwg.mxu0
    %v4193 = vsel %vm4118, %v4113, 0
    %4195 = vmatprep.subr.mxu0 0.0
    %4196 = vmatpush1.msra.mxu0 0.0
    %4197 = vmatprep.subr.mxu0 0.0
    %4198 = vmatpush1.msra.mxu0 0.0
    %4199 = vmatprep.subr.mxu0 0.0
    %4200 = vmatpush1.msra.mxu0 0.0
    %4201 = vmatprep.subr.mxu0 0.0
    %4202 = vmatpush1.msra.mxu0 0.0
    %4203 = vmatprep.subr.mxu0 0.0
    %4204 = vmatpush1.msra.mxu0 0.0
    %4205 = vmatprep.subr.mxu0 0.0
    %4206 = vmatpush1.msra.mxu0 0.0
    %4207 = vmatprep.subr.mxu0 0.0
    %4208 = vmatpush1.msra.mxu0 0.0
    %4209 = vmatprep.subr.mxu0 0.0
    %4210 = vmatpush1.msra.mxu0 0.0
    %4211 = vmatprep.subr.mxu0 0.0
    %4212 = vmatpush1.msra.mxu0 0.0
    %4213 = vmatprep.subr.mxu0 0.0
    %4214 = vmatpush1.msra.mxu0 0.0
    %4215 = vmatprep.subr.mxu0 0.0
    %4216 = vmatpush1.msra.mxu0 0.0
    %4217 = vmatprep.subr.mxu0 0.0
    %4218 = vmatpush1.msra.mxu0 0.0
    %4219 = vmatprep.subr.mxu0 0.0
    %4220 = vmatpush1.msra.mxu0 0.0
    %4221 = vmatprep.subr.mxu0 0.0
    %4222 = vmatpush1.msra.mxu0 0.0
    %4223 = vmatprep.subr.mxu0 0.0
    %4224 = vmatpush1.msra.mxu0 %v4117
    %4225 = vmatprep.subr.mxu0 0.0
    %4226 = vmatpush1.msra.mxu0 %v4116
    %4227 = vmatprep.subr.mxu0 0.0
    %4228 = vmatpush2.msra.mxu0 0.0
    %4229 = vmatprep.subr.mxu0 0.0
    %4230 = vmatpush2.msra.mxu0 0.0
    %4231 = vmatprep.subr.mxu0 0.0
    %4232 = vmatpush2.msra.mxu0 0.0
    %4233 = vmatprep.subr.mxu0 0.0
    %4234 = vmatpush2.msra.mxu0 0.0
    %4235 = vmatprep.subr.mxu0 0.0
    %4236 = vmatpush2.msra.mxu0 0.0
    %4237 = vmatprep.subr.mxu0 0.0
    %4238 = vmatpush2.msra.mxu0 0.0
    %4239 = vmatprep.subr.mxu0 0.0
    %4240 = vmatpush2.msra.mxu0 0.0
    %4241 = vmatprep.subr.mxu0 0.0
    %4242 = vmatpush2.msra.mxu0 0.0
    %4243 = vmatprep.subr.mxu0 0.0
    %4244 = vmatpush2.msra.mxu0 0.0
    %4245 = vmatprep.subr.mxu0 0.0
    %4246 = vmatpush2.msra.mxu0 0.0
    %4247 = vmatprep.subr.mxu0 0.0
    %4248 = vmatpush2.msra.mxu0 0.0
    %4249 = vmatprep.subr.mxu0 0.0
    %4250 = vmatpush2.msra.mxu0 0.0
    %4251 = vmatprep.subr.mxu0 0.0
    %4252 = vmatpush2.msra.mxu0 0.0
    %4253 = vmatprep.subr.mxu0 0.0
    %4254 = vmatpush2.msra.mxu0 0.0
    %4255 = vmatprep.subr.mxu0 0.0
    %4256 = vmatpush2.msra.mxu0 0.0
    %4257 = vmatprep.subr.mxu0 0.0
    %4258 = vmatpush2.msra.mxu0 0.0
    %4259 = vmatprep.mubr.f32.mxu0 0.0
    %4260 = vmatmul.mubr.f32.gmra.mxu0 %v4193
    %v4261 = vpop.f32.mrf.mxu0
    %v4262 = vadd.f32 0.0, %v4261
    %v4263 = vpop.f32.mrf.mxu0
    %4264 = vdwg.mxu0
    %v4265 = vlaneseq
    %v4266 = vshrl.u32 %v4265, 7
    %v4267 = vsub.s32 0, %v4266
    %v4268 = vrot.slane %v4189, %v4267
    %v4269 = vmul.f32 %v3874, %v4268
    %v4270 = vmul.f32 %v3875, %v4268
    %v4271 = vmul.f32 %v3876, %v4268
    %v4272 = vmul.f32 %v3877, %v4268
    %v4273 = vmul.f32 %v3878, %v4268
    %v4274 = vmul.f32 %v3879, %v4268
    %v4275 = vmul.f32 %v3880, %v4268
    %v4276 = vmul.f32 %v3881, %v4268
    %v4277 = vlaneseq
    %v4278 = vshrl.u32 %v4277, 7
    %v4279 = vsub.s32 0, %v4278
    %v4280 = vrot.slane %v4262, %v4279
    %v4281 = vadd.f32 %v4269, %v4280
    %v4282 = vadd.f32 %v4270, %v4280
    %v4283 = vadd.f32 %v4271, %v4280
    %v4284 = vadd.f32 %v4272, %v4280
    %v4285 = vadd.f32 %v4273, %v4280
    %v4286 = vadd.f32 %v4274, %v4280
    %v4287 = vadd.f32 %v4275, %v4280
    %v4288 = vadd.f32 %v4276, %v4280
    %v4289 = vmax.f32 %v4281, 0.0
    %v4290 = vmax.f32 %v4282, 0.0
    %v4291 = vmax.f32 %v4283, 0.0
    %v4292 = vmax.f32 %v4284, 0.0
    %v4293 = vmax.f32 %v4285, 0.0
    %v4294 = vmax.f32 %v4286, 0.0
    %v4295 = vmax.f32 %v4287, 0.0
    %v4296 = vmax.f32 %v4288, 0.0
    %v4297 = vld [vmem:[#allocation8] sm:$0xf]
    %v4298 = vld [vmem:[#allocation8 + $0x4] sm:$0xf]
    %v4299 = vld [vmem:[#allocation8 + $0x8] sm:$0xf]
    %v4300 = vld [vmem:[#allocation8 + $0xc] sm:$0xf]
    %v4301 = vunpack.c.l.bf16 %v4297
    %v4302 = vunpack.c.l.bf16 %v4298
    %v4303 = vunpack.c.l.bf16 %v4299
    %v4304 = vunpack.c.l.bf16 %v4300
    %vm4305 = vcmask 523264
    %v4307 = vsel %vm4305, %v4301, 0
    %v4310 = vsel %vm4305, %v4302, 0
    %v4313 = vsel %vm4305, %v4303, 0
    %v4316 = vsel %vm4305, %v4304, 0
    %4318 = vmatprep.subr.mxu0 0.0
    %4319 = vmatpush1.msra.mxu0 0.0
    %4320 = vmatprep.subr.mxu0 0.0
    %4321 = vmatpush1.msra.mxu0 0.0
    %4322 = vmatprep.subr.mxu0 0.0
    %4323 = vmatpush1.msra.mxu0 0.0
    %4324 = vmatprep.subr.mxu0 0.0
    %4325 = vmatpush1.msra.mxu0 0.0
    %4326 = vmatprep.subr.mxu0 0.0
    %4327 = vmatpush1.msra.mxu0 0.0
    %4328 = vmatprep.subr.mxu0 0.0
    %4329 = vmatpush1.msra.mxu0 0.0
    %4330 = vmatprep.subr.mxu0 0.0
    %4331 = vmatpush1.msra.mxu0 0.0
    %4332 = vmatprep.subr.mxu0 0.0
    %4333 = vmatpush1.msra.mxu0 0.0
    %4334 = vmatprep.subr.mxu0 0.0
    %4335 = vmatpush1.msra.mxu0 %v4296
    %4336 = vmatprep.subr.mxu0 0.0
    %4337 = vmatpush1.msra.mxu0 %v4295
    %4338 = vmatprep.subr.mxu0 0.0
    %4339 = vmatpush1.msra.mxu0 %v4294
    %4340 = vmatprep.subr.mxu0 0.0
    %4341 = vmatpush1.msra.mxu0 %v4293
    %4342 = vmatprep.subr.mxu0 0.0
    %4343 = vmatpush1.msra.mxu0 %v4292
    %4344 = vmatprep.subr.mxu0 0.0
    %4345 = vmatpush1.msra.mxu0 %v4291
    %4346 = vmatprep.subr.mxu0 0.0
    %4347 = vmatpush1.msra.mxu0 %v4290
    %4348 = vmatprep.subr.mxu0 0.0
    %4349 = vmatpush1.msra.mxu0 %v4289
    %4350 = vmatprep.subr.mxu0 0.0
    %4351 = vmatpush2.msra.mxu0 0.0
    %4352 = vmatprep.subr.mxu0 0.0
    %4353 = vmatpush2.msra.mxu0 0.0
    %4354 = vmatprep.subr.mxu0 0.0
    %4355 = vmatpush2.msra.mxu0 0.0
    %4356 = vmatprep.subr.mxu0 0.0
    %4357 = vmatpush2.msra.mxu0 0.0
    %4358 = vmatprep.subr.mxu0 0.0
    %4359 = vmatpush2.msra.mxu0 0.0
    %4360 = vmatprep.subr.mxu0 0.0
    %4361 = vmatpush2.msra.mxu0 0.0
    %4362 = vmatprep.subr.mxu0 0.0
    %4363 = vmatpush2.msra.mxu0 0.0
    %4364 = vmatprep.subr.mxu0 0.0
    %4365 = vmatpush2.msra.mxu0 0.0
    %4366 = vmatprep.subr.mxu0 0.0
    %4367 = vmatpush2.msra.mxu0 0.0
    %4368 = vmatprep.subr.mxu0 0.0
    %4369 = vmatpush2.msra.mxu0 0.0
    %4370 = vmatprep.subr.mxu0 0.0
    %4371 = vmatpush2.msra.mxu0 0.0
    %4372 = vmatprep.subr.mxu0 0.0
    %4373 = vmatpush2.msra.mxu0 0.0
    %4374 = vmatprep.subr.mxu0 0.0
    %4375 = vmatpush2.msra.mxu0 0.0
    %4376 = vmatprep.subr.mxu0 0.0
    %4377 = vmatpush2.msra.mxu0 0.0
    %4378 = vmatprep.subr.mxu0 0.0
    %4379 = vmatpush2.msra.mxu0 0.0
    %4380 = vmatprep.subr.mxu0 0.0
    %4381 = vmatpush2.msra.mxu0 0.0
    %4382 = vmatprep.mubr.f32.mxu0 0.0
    %4383 = vmatmul.mubr.f32.gmra.mxu0 %v4307
    %v4384 = vpop.f32.mrf.mxu0
    %v4385 = vadd.f32 0.0, %v4384
    %v4386 = vpop.f32.mrf.mxu0
    %4387 = vmatprep.mubr.f32.mxu0 0.0
    %4388 = vmatmul.mubr.f32.gmra.mxu0 %v4310
    %v4389 = vpop.f32.mrf.mxu0
    %v4390 = vadd.f32 0.0, %v4389
    %v4391 = vpop.f32.mrf.mxu0
    %4392 = vmatprep.mubr.f32.mxu0 0.0
    %4393 = vmatmul.mubr.f32.gmra.mxu0 %v4313
    %v4394 = vpop.f32.mrf.mxu0
    %v4395 = vadd.f32 0.0, %v4394
    %v4396 = vpop.f32.mrf.mxu0
    %4397 = vmatprep.mubr.f32.mxu0 0.0
    %4398 = vmatmul.mubr.f32.gmra.mxu0 %v4316
    %v4399 = vpop.f32.mrf.mxu0
    %v4400 = vadd.f32 0.0, %v4399
    %v4401 = vpop.f32.mrf.mxu0
    %4402 = vdwg.mxu0
    %v4403 = vld [vmem:[#allocation10] sm:$0xff]
    %v4404 = vld [vmem:[#allocation10 + $0x8] sm:$0xff]
    %v4405 = vld [vmem:[#allocation10 + $0x10] sm:$0xff]
    %v4406 = vld [vmem:[#allocation10 + $0x18] sm:$0xff]
    %v4407 = vld [vmem:[#allocation10 + $0x20] sm:$0xff]
    %v4408 = vld [vmem:[#allocation10 + $0x28] sm:$0xff]
    %v4409 = vld [vmem:[#allocation10 + $0x30] sm:$0xff]
    %v4410 = vld [vmem:[#allocation10 + $0x38] sm:$0xff]
    %v4411 = vld [vmem:[#allocation10 + $0x40] sm:$0xff]
    %v4412 = vld [vmem:[#allocation10 + $0x48] sm:$0xff]
    %v4413 = vld [vmem:[#allocation10 + $0x50] sm:$0xff]
    %v4414 = vld [vmem:[#allocation10 + $0x58] sm:$0xff]
    %s4415 = scalar_lea.vmem [#allocation8], 16
    %v4416 = vld [vmem:[%s4415] sm:$0xf]
    %v4417 = vld [vmem:[%s4415 + $0x4] sm:$0xf]
    %v4418 = vld [vmem:[%s4415 + $0x8] sm:$0xf]
    %v4419 = vld [vmem:[%s4415 + $0xc] sm:$0xf]
    %v4420 = vunpack.c.l.bf16 %v4416
    %v4421 = vunpack.c.l.bf16 %v4417
    %v4422 = vunpack.c.l.bf16 %v4418
    %v4423 = vunpack.c.l.bf16 %v4419
    %v4425 = vsel %vm4305, %v4420, 0
    %v4428 = vsel %vm4305, %v4421, 0
    %v4431 = vsel %vm4305, %v4422, 0
    %v4434 = vsel %vm4305, %v4423, 0
    %4436 = vmatprep.subr.mxu0 0.0
    %4437 = vmatpush1.msra.mxu0 0.0
    %4438 = vmatprep.subr.mxu0 0.0
    %4439 = vmatpush1.msra.mxu0 0.0
    %4440 = vmatprep.subr.mxu0 0.0
    %4441 = vmatpush1.msra.mxu0 0.0
    %4442 = vmatprep.subr.mxu0 0.0
    %4443 = vmatpush1.msra.mxu0 0.0
    %4444 = vmatprep.subr.mxu0 0.0
    %4445 = vmatpush1.msra.mxu0 0.0
    %4446 = vmatprep.subr.mxu0 0.0
    %4447 = vmatpush1.msra.mxu0 0.0
    %4448 = vmatprep.subr.mxu0 0.0
    %4449 = vmatpush1.msra.mxu0 0.0
    %4450 = vmatprep.subr.mxu0 0.0
    %4451 = vmatpush1.msra.mxu0 0.0
    %4452 = vmatprep.subr.mxu0 0.0
    %4453 = vmatpush1.msra.mxu0 %v4296
    %4454 = vmatprep.subr.mxu0 0.0
    %4455 = vmatpush1.msra.mxu0 %v4295
    %4456 = vmatprep.subr.mxu0 0.0
    %4457 = vmatpush1.msra.mxu0 %v4294
    %4458 = vmatprep.subr.mxu0 0.0
    %4459 = vmatpush1.msra.mxu0 %v4293
    %4460 = vmatprep.subr.mxu0 0.0
    %4461 = vmatpush1.msra.mxu0 %v4292
    %4462 = vmatprep.subr.mxu0 0.0
    %4463 = vmatpush1.msra.mxu0 %v4291
    %4464 = vmatprep.subr.mxu0 0.0
    %4465 = vmatpush1.msra.mxu0 %v4290
    %4466 = vmatprep.subr.mxu0 0.0
    %4467 = vmatpush1.msra.mxu0 %v4289
    %4468 = vmatprep.subr.mxu0 0.0
    %4469 = vmatpush2.msra.mxu0 0.0
    %4470 = vmatprep.subr.mxu0 0.0
    %4471 = vmatpush2.msra.mxu0 0.0
    %4472 = vmatprep.subr.mxu0 0.0
    %4473 = vmatpush2.msra.mxu0 0.0
    %4474 = vmatprep.subr.mxu0 0.0
    %4475 = vmatpush2.msra.mxu0 0.0
    %4476 = vmatprep.subr.mxu0 0.0
    %4477 = vmatpush2.msra.mxu0 0.0
    %4478 = vmatprep.subr.mxu0 0.0
    %4479 = vmatpush2.msra.mxu0 0.0
    %4480 = vmatprep.subr.mxu0 0.0
    %4481 = vmatpush2.msra.mxu0 0.0
    %4482 = vmatprep.subr.mxu0 0.0
    %4483 = vmatpush2.msra.mxu0 0.0
    %4484 = vmatprep.subr.mxu0 0.0
    %4485 = vmatpush2.msra.mxu0 0.0
    %4486 = vmatprep.subr.mxu0 0.0
    %4487 = vmatpush2.msra.mxu0 0.0
    %4488 = vmatprep.subr.mxu0 0.0
    %4489 = vmatpush2.msra.mxu0 0.0
    %4490 = vmatprep.subr.mxu0 0.0
    %4491 = vmatpush2.msra.mxu0 0.0
    %4492 = vmatprep.subr.mxu0 0.0
    %4493 = vmatpush2.msra.mxu0 0.0
    %4494 = vmatprep.subr.mxu0 0.0
    %4495 = vmatpush2.msra.mxu0 0.0
    %4496 = vmatprep.subr.mxu0 0.0
    %4497 = vmatpush2.msra.mxu0 0.0
    %4498 = vmatprep.subr.mxu0 0.0
    %4499 = vmatpush2.msra.mxu0 0.0
    %4500 = vmatprep.mubr.f32.mxu0 0.0
    %4501 = vmatmul.mubr.f32.gmra.mxu0 %v4425
    %v4502 = vpop.f32.mrf.mxu0
    %v4503 = vadd.f32 0.0, %v4502
    %v4504 = vpop.f32.mrf.mxu0
    %4505 = vmatprep.mubr.f32.mxu0 0.0
    %4506 = vmatmul.mubr.f32.gmra.mxu0 %v4428
    %v4507 = vpop.f32.mrf.mxu0
    %v4508 = vadd.f32 0.0, %v4507
    %v4509 = vpop.f32.mrf.mxu0
    %4510 = vmatprep.mubr.f32.mxu0 0.0
    %4511 = vmatmul.mubr.f32.gmra.mxu0 %v4431
    %v4512 = vpop.f32.mrf.mxu0
    %v4513 = vadd.f32 0.0, %v4512
    %v4514 = vpop.f32.mrf.mxu0
    %4515 = vmatprep.mubr.f32.mxu0 0.0
    %4516 = vmatmul.mubr.f32.gmra.mxu0 %v4434
    %v4517 = vpop.f32.mrf.mxu0
    %v4518 = vadd.f32 0.0, %v4517
    %v4519 = vpop.f32.mrf.mxu0
    %4520 = vdwg.mxu0
    %s4521 = scalar_lea.vmem [#allocation10], 96
    %v4522 = vld [vmem:[%s4521] sm:$0xff]
    %v4523 = vld [vmem:[%s4521 + $0x8] sm:$0xff]
    %v4524 = vld [vmem:[%s4521 + $0x10] sm:$0xff]
    %v4525 = vld [vmem:[%s4521 + $0x18] sm:$0xff]
    %v4526 = vld [vmem:[%s4521 + $0x20] sm:$0xff]
    %v4527 = vld [vmem:[%s4521 + $0x28] sm:$0xff]
    %v4528 = vld [vmem:[%s4521 + $0x30] sm:$0xff]
    %v4529 = vld [vmem:[%s4521 + $0x38] sm:$0xff]
    %v4530 = vld [vmem:[%s4521 + $0x40] sm:$0xff]
    %v4531 = vld [vmem:[%s4521 + $0x48] sm:$0xff]
    %v4532 = vld [vmem:[%s4521 + $0x50] sm:$0xff]
    %v4533 = vld [vmem:[%s4521 + $0x58] sm:$0xff]
    %v4535 = vsel %vm2358, %v4503, 0
    %v4538 = vsel %vm2358, %v4508, 0
    %v4541 = vsel %vm2358, %v4513, 0
    %v4544 = vsel %vm2358, %v4518, 0
    %4546 = vmatprep.subr.mxu0 0.0
    %4547 = vmatpush1.msra.mxu0 0.0
    %4548 = vmatprep.subr.mxu0 0.0
    %4549 = vmatpush1.msra.mxu0 0.0
    %4550 = vmatprep.subr.mxu0 0.0
    %4551 = vmatpush1.msra.mxu0 0.0
    %4552 = vmatprep.subr.mxu0 0.0
    %4553 = vmatpush1.msra.mxu0 0.0
    %4554 = vmatprep.subr.mxu0 0.0
    %4555 = vmatpush1.msra.mxu0 %v4533
    %4556 = vmatprep.subr.mxu0 0.0
    %4557 = vmatpush1.msra.mxu0 %v4532
    %4558 = vmatprep.subr.mxu0 0.0
    %4559 = vmatpush1.msra.mxu0 %v4531
    %4560 = vmatprep.subr.mxu0 0.0
    %4561 = vmatpush1.msra.mxu0 %v4530
    %4562 = vmatprep.subr.mxu0 0.0
    %4563 = vmatpush1.msra.mxu0 %v4529
    %4564 = vmatprep.subr.mxu0 0.0
    %4565 = vmatpush1.msra.mxu0 %v4528
    %4566 = vmatprep.subr.mxu0 0.0
    %4567 = vmatpush1.msra.mxu0 %v4527
    %4568 = vmatprep.subr.mxu0 0.0
    %4569 = vmatpush1.msra.mxu0 %v4526
    %4570 = vmatprep.subr.mxu0 0.0
    %4571 = vmatpush1.msra.mxu0 %v4525
    %4572 = vmatprep.subr.mxu0 0.0
    %4573 = vmatpush1.msra.mxu0 %v4524
    %4574 = vmatprep.subr.mxu0 0.0
    %4575 = vmatpush1.msra.mxu0 %v4523
    %4576 = vmatprep.subr.mxu0 0.0
    %4577 = vmatpush1.msra.mxu0 %v4522
    %4578 = vmatprep.subr.mxu0 0.0
    %4579 = vmatpush2.msra.mxu0 0.0
    %4580 = vmatprep.subr.mxu0 0.0
    %4581 = vmatpush2.msra.mxu0 0.0
    %4582 = vmatprep.subr.mxu0 0.0
    %4583 = vmatpush2.msra.mxu0 0.0
    %4584 = vmatprep.subr.mxu0 0.0
    %4585 = vmatpush2.msra.mxu0 0.0
    %4586 = vmatprep.subr.mxu0 0.0
    %4587 = vmatpush2.msra.mxu0 0.0
    %4588 = vmatprep.subr.mxu0 0.0
    %4589 = vmatpush2.msra.mxu0 0.0
    %4590 = vmatprep.subr.mxu0 0.0
    %4591 = vmatpush2.msra.mxu0 0.0
    %4592 = vmatprep.subr.mxu0 0.0
    %4593 = vmatpush2.msra.mxu0 0.0
    %4594 = vmatprep.subr.mxu0 0.0
    %4595 = vmatpush2.msra.mxu0 0.0
    %4596 = vmatprep.subr.mxu0 0.0
    %4597 = vmatpush2.msra.mxu0 0.0
    %4598 = vmatprep.subr.mxu0 0.0
    %4599 = vmatpush2.msra.mxu0 0.0
    %4600 = vmatprep.subr.mxu0 0.0
    %4601 = vmatpush2.msra.mxu0 0.0
    %4602 = vmatprep.subr.mxu0 0.0
    %4603 = vmatpush2.msra.mxu0 0.0
    %4604 = vmatprep.subr.mxu0 0.0
    %4605 = vmatpush2.msra.mxu0 0.0
    %4606 = vmatprep.subr.mxu0 0.0
    %4607 = vmatpush2.msra.mxu0 0.0
    %4608 = vmatprep.subr.mxu0 0.0
    %4609 = vmatpush2.msra.mxu0 0.0
    %4610 = vmatprep.mubr.f32.mxu0 0.0
    %4611 = vmatmul.mubr.f32.gmra.mxu0 %v4535
    %v4612 = vpop.f32.mrf.mxu0
    %v4613 = vadd.f32 0.0, %v4612
    %v4614 = vpop.f32.mrf.mxu0
    %4615 = vmatprep.mubr.f32.mxu0 0.0
    %4616 = vmatmul.mubr.f32.gmra.mxu0 %v4538
    %v4617 = vpop.f32.mrf.mxu0
    %v4618 = vadd.f32 0.0, %v4617
    %v4619 = vpop.f32.mrf.mxu0
    %4620 = vmatprep.mubr.f32.mxu0 0.0
    %4621 = vmatmul.mubr.f32.gmra.mxu0 %v4541
    %v4622 = vpop.f32.mrf.mxu0
    %v4623 = vadd.f32 0.0, %v4622
    %v4624 = vpop.f32.mrf.mxu0
    %4625 = vmatprep.mubr.f32.mxu0 0.0
    %4626 = vmatmul.mubr.f32.gmra.mxu0 %v4544
    %v4627 = vpop.f32.mrf.mxu0
    %v4628 = vadd.f32 0.0, %v4627
    %v4629 = vpop.f32.mrf.mxu0
    %4630 = vdwg.mxu0
    %v4632 = vsel %vm2358, %v4385, 0
    %v4635 = vsel %vm2358, %v4390, 0
    %v4638 = vsel %vm2358, %v4395, 0
    %v4641 = vsel %vm2358, %v4400, 0
    %4643 = vmatprep.subr.mxu0 0.0
    %4644 = vmatpush1.msra.mxu0 0.0
    %4645 = vmatprep.subr.mxu0 0.0
    %4646 = vmatpush1.msra.mxu0 0.0
    %4647 = vmatprep.subr.mxu0 0.0
    %4648 = vmatpush1.msra.mxu0 0.0
    %4649 = vmatprep.subr.mxu0 0.0
    %4650 = vmatpush1.msra.mxu0 0.0
    %4651 = vmatprep.subr.mxu0 0.0
    %4652 = vmatpush1.msra.mxu0 %v4414
    %4653 = vmatprep.subr.mxu0 0.0
    %4654 = vmatpush1.msra.mxu0 %v4413
    %4655 = vmatprep.subr.mxu0 0.0
    %4656 = vmatpush1.msra.mxu0 %v4412
    %4657 = vmatprep.subr.mxu0 0.0
    %4658 = vmatpush1.msra.mxu0 %v4411
    %4659 = vmatprep.subr.mxu0 0.0
    %4660 = vmatpush1.msra.mxu0 %v4410
    %4661 = vmatprep.subr.mxu0 0.0
    %4662 = vmatpush1.msra.mxu0 %v4409
    %4663 = vmatprep.subr.mxu0 0.0
    %4664 = vmatpush1.msra.mxu0 %v4408
    %4665 = vmatprep.subr.mxu0 0.0
    %4666 = vmatpush1.msra.mxu0 %v4407
    %4667 = vmatprep.subr.mxu0 0.0
    %4668 = vmatpush1.msra.mxu0 %v4406
    %4669 = vmatprep.subr.mxu0 0.0
    %4670 = vmatpush1.msra.mxu0 %v4405
    %4671 = vmatprep.subr.mxu0 0.0
    %4672 = vmatpush1.msra.mxu0 %v4404
    %4673 = vmatprep.subr.mxu0 0.0
    %4674 = vmatpush1.msra.mxu0 %v4403
    %4675 = vmatprep.subr.mxu0 0.0
    %4676 = vmatpush2.msra.mxu0 0.0
    %4677 = vmatprep.subr.mxu0 0.0
    %4678 = vmatpush2.msra.mxu0 0.0
    %4679 = vmatprep.subr.mxu0 0.0
    %4680 = vmatpush2.msra.mxu0 0.0
    %4681 = vmatprep.subr.mxu0 0.0
    %4682 = vmatpush2.msra.mxu0 0.0
    %4683 = vmatprep.subr.mxu0 0.0
    %4684 = vmatpush2.msra.mxu0 0.0
    %4685 = vmatprep.subr.mxu0 0.0
    %4686 = vmatpush2.msra.mxu0 0.0
    %4687 = vmatprep.subr.mxu0 0.0
    %4688 = vmatpush2.msra.mxu0 0.0
    %4689 = vmatprep.subr.mxu0 0.0
    %4690 = vmatpush2.msra.mxu0 0.0
    %4691 = vmatprep.subr.mxu0 0.0
    %4692 = vmatpush2.msra.mxu0 0.0
    %4693 = vmatprep.subr.mxu0 0.0
    %4694 = vmatpush2.msra.mxu0 0.0
    %4695 = vmatprep.subr.mxu0 0.0
    %4696 = vmatpush2.msra.mxu0 0.0
    %4697 = vmatprep.subr.mxu0 0.0
    %4698 = vmatpush2.msra.mxu0 0.0
    %4699 = vmatprep.subr.mxu0 0.0
    %4700 = vmatpush2.msra.mxu0 0.0
    %4701 = vmatprep.subr.mxu0 0.0
    %4702 = vmatpush2.msra.mxu0 0.0
    %4703 = vmatprep.subr.mxu0 0.0
    %4704 = vmatpush2.msra.mxu0 0.0
    %4705 = vmatprep.subr.mxu0 0.0
    %4706 = vmatpush2.msra.mxu0 0.0
    %4707 = vmatprep.mubr.f32.mxu0 0.0
    %4708 = vmatmul.mubr.f32.gmra.mxu0 %v4632
    %v4709 = vpop.f32.mrf.mxu0
    %v4710 = vadd.f32 %v4613, %v4709
    %v4711 = vpop.f32.mrf.mxu0
    %4712 = vmatprep.mubr.f32.mxu0 0.0
    %4713 = vmatmul.mubr.f32.gmra.mxu0 %v4635
    %v4714 = vpop.f32.mrf.mxu0
    %v4715 = vadd.f32 %v4618, %v4714
    %v4716 = vpop.f32.mrf.mxu0
    %4717 = vmatprep.mubr.f32.mxu0 0.0
    %4718 = vmatmul.mubr.f32.gmra.mxu0 %v4638
    %v4719 = vpop.f32.mrf.mxu0
    %v4720 = vadd.f32 %v4623, %v4719
    %v4721 = vpop.f32.mrf.mxu0
    %4722 = vmatprep.mubr.f32.mxu0 0.0
    %4723 = vmatmul.mubr.f32.gmra.mxu0 %v4641
    %v4724 = vpop.f32.mrf.mxu0
    %v4725 = vadd.f32 %v4628, %v4724
    %v4726 = vpop.f32.mrf.mxu0
    %4727 = vdwg.mxu0
    %s4728 = scalar_lea.vmem [#allocation8], 32
    %v4729 = vld [vmem:[%s4728] sm:$0xf]
    %v4730 = vld [vmem:[%s4728 + $0x4] sm:$0xf]
    %v4731 = vld [vmem:[%s4728 + $0x8] sm:$0xf]
    %v4732 = vld [vmem:[%s4728 + $0xc] sm:$0xf]
    %v4733 = vunpack.c.l.bf16 %v4729
    %v4734 = vunpack.c.l.bf16 %v4730
    %v4735 = vunpack.c.l.bf16 %v4731
    %v4736 = vunpack.c.l.bf16 %v4732
    %v4738 = vsel %vm4305, %v4733, 0
    %v4741 = vsel %vm4305, %v4734, 0
    %v4744 = vsel %vm4305, %v4735, 0
    %v4747 = vsel %vm4305, %v4736, 0
    %4749 = vmatprep.subr.mxu0 0.0
    %4750 = vmatpush1.msra.mxu0 0.0
    %4751 = vmatprep.subr.mxu0 0.0
    %4752 = vmatpush1.msra.mxu0 0.0
    %4753 = vmatprep.subr.mxu0 0.0
    %4754 = vmatpush1.msra.mxu0 0.0
    %4755 = vmatprep.subr.mxu0 0.0
    %4756 = vmatpush1.msra.mxu0 0.0
    %4757 = vmatprep.subr.mxu0 0.0
    %4758 = vmatpush1.msra.mxu0 0.0
    %4759 = vmatprep.subr.mxu0 0.0
    %4760 = vmatpush1.msra.mxu0 0.0
    %4761 = vmatprep.subr.mxu0 0.0
    %4762 = vmatpush1.msra.mxu0 0.0
    %4763 = vmatprep.subr.mxu0 0.0
    %4764 = vmatpush1.msra.mxu0 0.0
    %4765 = vmatprep.subr.mxu0 0.0
    %4766 = vmatpush1.msra.mxu0 %v4296
    %4767 = vmatprep.subr.mxu0 0.0
    %4768 = vmatpush1.msra.mxu0 %v4295
    %4769 = vmatprep.subr.mxu0 0.0
    %4770 = vmatpush1.msra.mxu0 %v4294
    %4771 = vmatprep.subr.mxu0 0.0
    %4772 = vmatpush1.msra.mxu0 %v4293
    %4773 = vmatprep.subr.mxu0 0.0
    %4774 = vmatpush1.msra.mxu0 %v4292
    %4775 = vmatprep.subr.mxu0 0.0
    %4776 = vmatpush1.msra.mxu0 %v4291
    %4777 = vmatprep.subr.mxu0 0.0
    %4778 = vmatpush1.msra.mxu0 %v4290
    %4779 = vmatprep.subr.mxu0 0.0
    %4780 = vmatpush1.msra.mxu0 %v4289
    %4781 = vmatprep.subr.mxu0 0.0
    %4782 = vmatpush2.msra.mxu0 0.0
    %4783 = vmatprep.subr.mxu0 0.0
    %4784 = vmatpush2.msra.mxu0 0.0
    %4785 = vmatprep.subr.mxu0 0.0
    %4786 = vmatpush2.msra.mxu0 0.0
    %4787 = vmatprep.subr.mxu0 0.0
    %4788 = vmatpush2.msra.mxu0 0.0
    %4789 = vmatprep.subr.mxu0 0.0
    %4790 = vmatpush2.msra.mxu0 0.0
    %4791 = vmatprep.subr.mxu0 0.0
    %4792 = vmatpush2.msra.mxu0 0.0
    %4793 = vmatprep.subr.mxu0 0.0
    %4794 = vmatpush2.msra.mxu0 0.0
    %4795 = vmatprep.subr.mxu0 0.0
    %4796 = vmatpush2.msra.mxu0 0.0
    %4797 = vmatprep.subr.mxu0 0.0
    %4798 = vmatpush2.msra.mxu0 0.0
    %4799 = vmatprep.subr.mxu0 0.0
    %4800 = vmatpush2.msra.mxu0 0.0
    %4801 = vmatprep.subr.mxu0 0.0
    %4802 = vmatpush2.msra.mxu0 0.0
    %4803 = vmatprep.subr.mxu0 0.0
    %4804 = vmatpush2.msra.mxu0 0.0
    %4805 = vmatprep.subr.mxu0 0.0
    %4806 = vmatpush2.msra.mxu0 0.0
    %4807 = vmatprep.subr.mxu0 0.0
    %4808 = vmatpush2.msra.mxu0 0.0
    %4809 = vmatprep.subr.mxu0 0.0
    %4810 = vmatpush2.msra.mxu0 0.0
    %4811 = vmatprep.subr.mxu0 0.0
    %4812 = vmatpush2.msra.mxu0 0.0
    %4813 = vmatprep.mubr.f32.mxu0 0.0
    %4814 = vmatmul.mubr.f32.gmra.mxu0 %v4738
    %v4815 = vpop.f32.mrf.mxu0
    %v4816 = vadd.f32 0.0, %v4815
    %v4817 = vpop.f32.mrf.mxu0
    %4818 = vmatprep.mubr.f32.mxu0 0.0
    %4819 = vmatmul.mubr.f32.gmra.mxu0 %v4741
    %v4820 = vpop.f32.mrf.mxu0
    %v4821 = vadd.f32 0.0, %v4820
    %v4822 = vpop.f32.mrf.mxu0
    %4823 = vmatprep.mubr.f32.mxu0 0.0
    %4824 = vmatmul.mubr.f32.gmra.mxu0 %v4744
    %v4825 = vpop.f32.mrf.mxu0
    %v4826 = vadd.f32 0.0, %v4825
    %v4827 = vpop.f32.mrf.mxu0
    %4828 = vmatprep.mubr.f32.mxu0 0.0
    %4829 = vmatmul.mubr.f32.gmra.mxu0 %v4747
    %v4830 = vpop.f32.mrf.mxu0
    %v4831 = vadd.f32 0.0, %v4830
    %v4832 = vpop.f32.mrf.mxu0
    %4833 = vdwg.mxu0
    %s4834 = scalar_lea.vmem [#allocation10], 192
    %v4835 = vld [vmem:[%s4834] sm:$0xff]
    %v4836 = vld [vmem:[%s4834 + $0x8] sm:$0xff]
    %v4837 = vld [vmem:[%s4834 + $0x10] sm:$0xff]
    %v4838 = vld [vmem:[%s4834 + $0x18] sm:$0xff]
    %v4839 = vld [vmem:[%s4834 + $0x20] sm:$0xff]
    %v4840 = vld [vmem:[%s4834 + $0x28] sm:$0xff]
    %v4841 = vld [vmem:[%s4834 + $0x30] sm:$0xff]
    %v4842 = vld [vmem:[%s4834 + $0x38] sm:$0xff]
    %v4843 = vld [vmem:[%s4834 + $0x40] sm:$0xff]
    %v4844 = vld [vmem:[%s4834 + $0x48] sm:$0xff]
    %v4845 = vld [vmem:[%s4834 + $0x50] sm:$0xff]
    %v4846 = vld [vmem:[%s4834 + $0x58] sm:$0xff]
    %v4848 = vsel %vm2358, %v4816, 0
    %v4851 = vsel %vm2358, %v4821, 0
    %v4854 = vsel %vm2358, %v4826, 0
    %v4857 = vsel %vm2358, %v4831, 0
    %4859 = vmatprep.subr.mxu0 0.0
    %4860 = vmatpush1.msra.mxu0 0.0
    %4861 = vmatprep.subr.mxu0 0.0
    %4862 = vmatpush1.msra.mxu0 0.0
    %4863 = vmatprep.subr.mxu0 0.0
    %4864 = vmatpush1.msra.mxu0 0.0
    %4865 = vmatprep.subr.mxu0 0.0
    %4866 = vmatpush1.msra.mxu0 0.0
    %4867 = vmatprep.subr.mxu0 0.0
    %4868 = vmatpush1.msra.mxu0 %v4846
    %4869 = vmatprep.subr.mxu0 0.0
    %4870 = vmatpush1.msra.mxu0 %v4845
    %4871 = vmatprep.subr.mxu0 0.0
    %4872 = vmatpush1.msra.mxu0 %v4844
    %4873 = vmatprep.subr.mxu0 0.0
    %4874 = vmatpush1.msra.mxu0 %v4843
    %4875 = vmatprep.subr.mxu0 0.0
    %4876 = vmatpush1.msra.mxu0 %v4842
    %4877 = vmatprep.subr.mxu0 0.0
    %4878 = vmatpush1.msra.mxu0 %v4841
    %4879 = vmatprep.subr.mxu0 0.0
    %4880 = vmatpush1.msra.mxu0 %v4840
    %4881 = vmatprep.subr.mxu0 0.0
    %4882 = vmatpush1.msra.mxu0 %v4839
    %4883 = vmatprep.subr.mxu0 0.0
    %4884 = vmatpush1.msra.mxu0 %v4838
    %4885 = vmatprep.subr.mxu0 0.0
    %4886 = vmatpush1.msra.mxu0 %v4837
    %4887 = vmatprep.subr.mxu0 0.0
    %4888 = vmatpush1.msra.mxu0 %v4836
    %4889 = vmatprep.subr.mxu0 0.0
    %4890 = vmatpush1.msra.mxu0 %v4835
    %4891 = vmatprep.subr.mxu0 0.0
    %4892 = vmatpush2.msra.mxu0 0.0
    %4893 = vmatprep.subr.mxu0 0.0
    %4894 = vmatpush2.msra.mxu0 0.0
    %4895 = vmatprep.subr.mxu0 0.0
    %4896 = vmatpush2.msra.mxu0 0.0
    %4897 = vmatprep.subr.mxu0 0.0
    %4898 = vmatpush2.msra.mxu0 0.0
    %4899 = vmatprep.subr.mxu0 0.0
    %4900 = vmatpush2.msra.mxu0 0.0
    %4901 = vmatprep.subr.mxu0 0.0
    %4902 = vmatpush2.msra.mxu0 0.0
    %4903 = vmatprep.subr.mxu0 0.0
    %4904 = vmatpush2.msra.mxu0 0.0
    %4905 = vmatprep.subr.mxu0 0.0
    %4906 = vmatpush2.msra.mxu0 0.0
    %4907 = vmatprep.subr.mxu0 0.0
    %4908 = vmatpush2.msra.mxu0 0.0
    %4909 = vmatprep.subr.mxu0 0.0
    %4910 = vmatpush2.msra.mxu0 0.0
    %4911 = vmatprep.subr.mxu0 0.0
    %4912 = vmatpush2.msra.mxu0 0.0
    %4913 = vmatprep.subr.mxu0 0.0
    %4914 = vmatpush2.msra.mxu0 0.0
    %4915 = vmatprep.subr.mxu0 0.0
    %4916 = vmatpush2.msra.mxu0 0.0
    %4917 = vmatprep.subr.mxu0 0.0
    %4918 = vmatpush2.msra.mxu0 0.0
    %4919 = vmatprep.subr.mxu0 0.0
    %4920 = vmatpush2.msra.mxu0 0.0
    %4921 = vmatprep.subr.mxu0 0.0
    %4922 = vmatpush2.msra.mxu0 0.0
    %4923 = vmatprep.mubr.f32.mxu0 0.0
    %4924 = vmatmul.mubr.f32.gmra.mxu0 %v4848
    %v4925 = vpop.f32.mrf.mxu0
    %v4926 = vadd.f32 0.0, %v4925
    %v4927 = vpop.f32.mrf.mxu0
    %4928 = vmatprep.mubr.f32.mxu0 0.0
    %4929 = vmatmul.mubr.f32.gmra.mxu0 %v4851
    %v4930 = vpop.f32.mrf.mxu0
    %v4931 = vadd.f32 0.0, %v4930
    %v4932 = vpop.f32.mrf.mxu0
    %4933 = vmatprep.mubr.f32.mxu0 0.0
    %4934 = vmatmul.mubr.f32.gmra.mxu0 %v4854
    %v4935 = vpop.f32.mrf.mxu0
    %v4936 = vadd.f32 0.0, %v4935
    %v4937 = vpop.f32.mrf.mxu0
    %4938 = vmatprep.mubr.f32.mxu0 0.0
    %4939 = vmatmul.mubr.f32.gmra.mxu0 %v4857
    %v4940 = vpop.f32.mrf.mxu0
    %v4941 = vadd.f32 0.0, %v4940
    %v4942 = vpop.f32.mrf.mxu0
    %4943 = vdwg.mxu0
    %v4944 = vadd.f32 %v4710, %v4926
    %v4945 = vadd.f32 %v4715, %v4931
    %v4946 = vadd.f32 %v4720, %v4936
    %v4947 = vadd.f32 %v4725, %v4941
    %s4948 = scalar_lea.vmem [#allocation8], 48
    %v4949 = vld [vmem:[%s4948] sm:$0xf]
    %v4950 = vld [vmem:[%s4948 + $0x4] sm:$0xf]
    %v4951 = vld [vmem:[%s4948 + $0x8] sm:$0xf]
    %v4952 = vld [vmem:[%s4948 + $0xc] sm:$0xf]
    %v4953 = vunpack.c.l.bf16 %v4949
    %v4954 = vunpack.c.l.bf16 %v4950
    %v4955 = vunpack.c.l.bf16 %v4951
    %v4956 = vunpack.c.l.bf16 %v4952
    %v4958 = vsel %vm4305, %v4953, 0
    %v4961 = vsel %vm4305, %v4954, 0
    %v4964 = vsel %vm4305, %v4955, 0
    %v4967 = vsel %vm4305, %v4956, 0
    %4969 = vmatprep.subr.mxu0 0.0
    %4970 = vmatpush1.msra.mxu0 0.0
    %4971 = vmatprep.subr.mxu0 0.0
    %4972 = vmatpush1.msra.mxu0 0.0
    %4973 = vmatprep.subr.mxu0 0.0
    %4974 = vmatpush1.msra.mxu0 0.0
    %4975 = vmatprep.subr.mxu0 0.0
    %4976 = vmatpush1.msra.mxu0 0.0
    %4977 = vmatprep.subr.mxu0 0.0
    %4978 = vmatpush1.msra.mxu0 0.0
    %4979 = vmatprep.subr.mxu0 0.0
    %4980 = vmatpush1.msra.mxu0 0.0
    %4981 = vmatprep.subr.mxu0 0.0
    %4982 = vmatpush1.msra.mxu0 0.0
    %4983 = vmatprep.subr.mxu0 0.0
    %4984 = vmatpush1.msra.mxu0 0.0
    %4985 = vmatprep.subr.mxu0 0.0
    %4986 = vmatpush1.msra.mxu0 %v4296
    %4987 = vmatprep.subr.mxu0 0.0
    %4988 = vmatpush1.msra.mxu0 %v4295
    %4989 = vmatprep.subr.mxu0 0.0
    %4990 = vmatpush1.msra.mxu0 %v4294
    %4991 = vmatprep.subr.mxu0 0.0
    %4992 = vmatpush1.msra.mxu0 %v4293
    %4993 = vmatprep.subr.mxu0 0.0
    %4994 = vmatpush1.msra.mxu0 %v4292
    %4995 = vmatprep.subr.mxu0 0.0
    %4996 = vmatpush1.msra.mxu0 %v4291
    %4997 = vmatprep.subr.mxu0 0.0
    %4998 = vmatpush1.msra.mxu0 %v4290
    %4999 = vmatprep.subr.mxu0 0.0
    %5000 = vmatpush1.msra.mxu0 %v4289
    %5001 = vmatprep.subr.mxu0 0.0
    %5002 = vmatpush2.msra.mxu0 0.0
    %5003 = vmatprep.subr.mxu0 0.0
    %5004 = vmatpush2.msra.mxu0 0.0
    %5005 = vmatprep.subr.mxu0 0.0
    %5006 = vmatpush2.msra.mxu0 0.0
    %5007 = vmatprep.subr.mxu0 0.0
    %5008 = vmatpush2.msra.mxu0 0.0
    %5009 = vmatprep.subr.mxu0 0.0
    %5010 = vmatpush2.msra.mxu0 0.0
    %5011 = vmatprep.subr.mxu0 0.0
    %5012 = vmatpush2.msra.mxu0 0.0
    %5013 = vmatprep.subr.mxu0 0.0
    %5014 = vmatpush2.msra.mxu0 0.0
    %5015 = vmatprep.subr.mxu0 0.0
    %5016 = vmatpush2.msra.mxu0 0.0
    %5017 = vmatprep.subr.mxu0 0.0
    %5018 = vmatpush2.msra.mxu0 0.0
    %5019 = vmatprep.subr.mxu0 0.0
    %5020 = vmatpush2.msra.mxu0 0.0
    %5021 = vmatprep.subr.mxu0 0.0
    %5022 = vmatpush2.msra.mxu0 0.0
    %5023 = vmatprep.subr.mxu0 0.0
    %5024 = vmatpush2.msra.mxu0 0.0
    %5025 = vmatprep.subr.mxu0 0.0
    %5026 = vmatpush2.msra.mxu0 0.0
    %5027 = vmatprep.subr.mxu0 0.0
    %5028 = vmatpush2.msra.mxu0 0.0
    %5029 = vmatprep.subr.mxu0 0.0
    %5030 = vmatpush2.msra.mxu0 0.0
    %5031 = vmatprep.subr.mxu0 0.0
    %5032 = vmatpush2.msra.mxu0 0.0
    %5033 = vmatprep.mubr.f32.mxu0 0.0
    %5034 = vmatmul.mubr.f32.gmra.mxu0 %v4958
    %v5035 = vpop.f32.mrf.mxu0
    %v5036 = vadd.f32 0.0, %v5035
    %v5037 = vpop.f32.mrf.mxu0
    %5038 = vmatprep.mubr.f32.mxu0 0.0
    %5039 = vmatmul.mubr.f32.gmra.mxu0 %v4961
    %v5040 = vpop.f32.mrf.mxu0
    %v5041 = vadd.f32 0.0, %v5040
    %v5042 = vpop.f32.mrf.mxu0
    %5043 = vmatprep.mubr.f32.mxu0 0.0
    %5044 = vmatmul.mubr.f32.gmra.mxu0 %v4964
    %v5045 = vpop.f32.mrf.mxu0
    %v5046 = vadd.f32 0.0, %v5045
    %v5047 = vpop.f32.mrf.mxu0
    %5048 = vmatprep.mubr.f32.mxu0 0.0
    %5049 = vmatmul.mubr.f32.gmra.mxu0 %v4967
    %v5050 = vpop.f32.mrf.mxu0
    %v5051 = vadd.f32 0.0, %v5050
    %v5052 = vpop.f32.mrf.mxu0
    %5053 = vdwg.mxu0
    %s5054 = scalar_lea.vmem [#allocation10], 288
    %v5055 = vld [vmem:[%s5054] sm:$0xff]
    %v5056 = vld [vmem:[%s5054 + $0x8] sm:$0xff]
    %v5057 = vld [vmem:[%s5054 + $0x10] sm:$0xff]
    %v5058 = vld [vmem:[%s5054 + $0x18] sm:$0xff]
    %v5059 = vld [vmem:[%s5054 + $0x20] sm:$0xff]
    %v5060 = vld [vmem:[%s5054 + $0x28] sm:$0xff]
    %v5061 = vld [vmem:[%s5054 + $0x30] sm:$0xff]
    %v5062 = vld [vmem:[%s5054 + $0x38] sm:$0xff]
    %v5063 = vld [vmem:[%s5054 + $0x40] sm:$0xff]
    %v5064 = vld [vmem:[%s5054 + $0x48] sm:$0xff]
    %v5065 = vld [vmem:[%s5054 + $0x50] sm:$0xff]
    %v5066 = vld [vmem:[%s5054 + $0x58] sm:$0xff]
    %v5068 = vsel %vm2358, %v5036, 0
    %v5071 = vsel %vm2358, %v5041, 0
    %v5074 = vsel %vm2358, %v5046, 0
    %v5077 = vsel %vm2358, %v5051, 0
    %5079 = vmatprep.subr.mxu0 0.0
    %5080 = vmatpush1.msra.mxu0 0.0
    %5081 = vmatprep.subr.mxu0 0.0
    %5082 = vmatpush1.msra.mxu0 0.0
    %5083 = vmatprep.subr.mxu0 0.0
    %5084 = vmatpush1.msra.mxu0 0.0
    %5085 = vmatprep.subr.mxu0 0.0
    %5086 = vmatpush1.msra.mxu0 0.0
    %5087 = vmatprep.subr.mxu0 0.0
    %5088 = vmatpush1.msra.mxu0 %v5066
    %5089 = vmatprep.subr.mxu0 0.0
    %5090 = vmatpush1.msra.mxu0 %v5065
    %5091 = vmatprep.subr.mxu0 0.0
    %5092 = vmatpush1.msra.mxu0 %v5064
    %5093 = vmatprep.subr.mxu0 0.0
    %5094 = vmatpush1.msra.mxu0 %v5063
    %5095 = vmatprep.subr.mxu0 0.0
    %5096 = vmatpush1.msra.mxu0 %v5062
    %5097 = vmatprep.subr.mxu0 0.0
    %5098 = vmatpush1.msra.mxu0 %v5061
    %5099 = vmatprep.subr.mxu0 0.0
    %5100 = vmatpush1.msra.mxu0 %v5060
    %5101 = vmatprep.subr.mxu0 0.0
    %5102 = vmatpush1.msra.mxu0 %v5059
    %5103 = vmatprep.subr.mxu0 0.0
    %5104 = vmatpush1.msra.mxu0 %v5058
    %5105 = vmatprep.subr.mxu0 0.0
    %5106 = vmatpush1.msra.mxu0 %v5057
    %5107 = vmatprep.subr.mxu0 0.0
    %5108 = vmatpush1.msra.mxu0 %v5056
    %5109 = vmatprep.subr.mxu0 0.0
    %5110 = vmatpush1.msra.mxu0 %v5055
    %5111 = vmatprep.subr.mxu0 0.0
    %5112 = vmatpush2.msra.mxu0 0.0
    %5113 = vmatprep.subr.mxu0 0.0
    %5114 = vmatpush2.msra.mxu0 0.0
    %5115 = vmatprep.subr.mxu0 0.0
    %5116 = vmatpush2.msra.mxu0 0.0
    %5117 = vmatprep.subr.mxu0 0.0
    %5118 = vmatpush2.msra.mxu0 0.0
    %5119 = vmatprep.subr.mxu0 0.0
    %5120 = vmatpush2.msra.mxu0 0.0
    %5121 = vmatprep.subr.mxu0 0.0
    %5122 = vmatpush2.msra.mxu0 0.0
    %5123 = vmatprep.subr.mxu0 0.0
    %5124 = vmatpush2.msra.mxu0 0.0
    %5125 = vmatprep.subr.mxu0 0.0
    %5126 = vmatpush2.msra.mxu0 0.0
    %5127 = vmatprep.subr.mxu0 0.0
    %5128 = vmatpush2.msra.mxu0 0.0
    %5129 = vmatprep.subr.mxu0 0.0
    %5130 = vmatpush2.msra.mxu0 0.0
    %5131 = vmatprep.subr.mxu0 0.0
    %5132 = vmatpush2.msra.mxu0 0.0
    %5133 = vmatprep.subr.mxu0 0.0
    %5134 = vmatpush2.msra.mxu0 0.0
    %5135 = vmatprep.subr.mxu0 0.0
    %5136 = vmatpush2.msra.mxu0 0.0
    %5137 = vmatprep.subr.mxu0 0.0
    %5138 = vmatpush2.msra.mxu0 0.0
    %5139 = vmatprep.subr.mxu0 0.0
    %5140 = vmatpush2.msra.mxu0 0.0
    %5141 = vmatprep.subr.mxu0 0.0
    %5142 = vmatpush2.msra.mxu0 0.0
    %5143 = vmatprep.mubr.f32.mxu0 0.0
    %5144 = vmatmul.mubr.f32.gmra.mxu0 %v5068
    %v5145 = vpop.f32.mrf.mxu0
    %v5146 = vadd.f32 0.0, %v5145
    %v5147 = vpop.f32.mrf.mxu0
    %5148 = vmatprep.mubr.f32.mxu0 0.0
    %5149 = vmatmul.mubr.f32.gmra.mxu0 %v5071
    %v5150 = vpop.f32.mrf.mxu0
    %v5151 = vadd.f32 0.0, %v5150
    %v5152 = vpop.f32.mrf.mxu0
    %5153 = vmatprep.mubr.f32.mxu0 0.0
    %5154 = vmatmul.mubr.f32.gmra.mxu0 %v5074
    %v5155 = vpop.f32.mrf.mxu0
    %v5156 = vadd.f32 0.0, %v5155
    %v5157 = vpop.f32.mrf.mxu0
    %5158 = vmatprep.mubr.f32.mxu0 0.0
    %5159 = vmatmul.mubr.f32.gmra.mxu0 %v5077
    %v5160 = vpop.f32.mrf.mxu0
    %v5161 = vadd.f32 0.0, %v5160
    %v5162 = vpop.f32.mrf.mxu0
    %5163 = vdwg.mxu0
    %v5164 = vadd.f32 %v4944, %v5146
    %v5165 = vadd.f32 %v4945, %v5151
    %v5166 = vadd.f32 %v4946, %v5156
    %v5167 = vadd.f32 %v4947, %v5161
    %v5168 = vld [vmem:[%s17] sm:$0xf]
    %v5169 = vld [vmem:[%s17 + $0x4] sm:$0xf]
    %v5170 = vld [vmem:[%s17 + $0x8] sm:$0xf]
    %v5171 = vld [vmem:[%s17 + $0xc] sm:$0xf]
    %v5172 = vld [vmem:[%s17 + $0x10] sm:$0xf]
    %v5173 = vld [vmem:[%s17 + $0x14] sm:$0xf]
    %v5174 = vld [vmem:[%s17 + $0x18] sm:$0xf]
    %v5175 = vld [vmem:[%s17 + $0x1c] sm:$0xf]
    %v5176 = vld [vmem:[%s17 + $0x20] sm:$0xf]
    %v5177 = vld [vmem:[%s17 + $0x24] sm:$0xf]
    %v5178 = vld [vmem:[%s17 + $0x28] sm:$0xf]
    %v5179 = vld [vmem:[%s17 + $0x2c] sm:$0xf]
    %v5180 = vunpack.c.l.bf16 %v5168
    %v5181 = vunpack.c.l.bf16 %v5169
    %v5182 = vunpack.c.l.bf16 %v5170
    %v5183 = vunpack.c.l.bf16 %v5171
    %v5184 = vunpack.c.l.bf16 %v5172
    %v5185 = vunpack.c.l.bf16 %v5173
    %v5186 = vunpack.c.l.bf16 %v5174
    %v5187 = vunpack.c.l.bf16 %v5175
    %v5188 = vunpack.c.l.bf16 %v5176
    %v5189 = vunpack.c.l.bf16 %v5177
    %v5190 = vunpack.c.l.bf16 %v5178
    %v5191 = vunpack.c.l.bf16 %v5179
    %v5192 = vsel %vm2358, %v5164, 0.0
    %v5193 = vsel %vm2358, %v5165, 0.0
    %v5194 = vadd.f32 %v5192, %v5193
    %v5195 = vsel %vm2358, %v5166, 0.0
    %v5196 = vadd.f32 %v5194, %v5195
    %v5197 = vsel %vm2358, %v5167, 0.0
    %v5198 = vadd.f32 %v5196, %v5197
    %v5199 = vrot.slane %v5198, 4
    %v5200 = vadd.f32 %v5198, %v5199
    %v5201 = vrot.slane %v5200, 2
    %v5202 = vadd.f32 %v5200, %v5201
    %v5203 = vrot.slane %v5202, 1
    %v5204 = vadd.f32 %v5202, %v5203
    %v5206 = vsel %vm2358, %v5204, 0
    %5208 = vmatprep.subr.mxu0 0.0
    %5209 = vmatpush1.msra.mxu0 0.0
    %5210 = vmatprep.subr.mxu0 0.0
    %5211 = vmatpush1.msra.mxu0 0.0
    %5212 = vmatprep.subr.mxu0 0.0
    %5213 = vmatpush1.msra.mxu0 0.0
    %5214 = vmatprep.subr.mxu0 0.0
    %5215 = vmatpush1.msra.mxu0 0.0
    %5216 = vmatprep.subr.mxu0 0.0
    %5217 = vmatpush1.msra.mxu0 %v5191
    %5218 = vmatprep.subr.mxu0 0.0
    %5219 = vmatpush1.msra.mxu0 %v5190
    %5220 = vmatprep.subr.mxu0 0.0
    %5221 = vmatpush1.msra.mxu0 %v5189
    %5222 = vmatprep.subr.mxu0 0.0
    %5223 = vmatpush1.msra.mxu0 %v5188
    %5224 = vmatprep.subr.mxu0 0.0
    %5225 = vmatpush1.msra.mxu0 %v5187
    %5226 = vmatprep.subr.mxu0 0.0
    %5227 = vmatpush1.msra.mxu0 %v5186
    %5228 = vmatprep.subr.mxu0 0.0
    %5229 = vmatpush1.msra.mxu0 %v5185
    %5230 = vmatprep.subr.mxu0 0.0
    %5231 = vmatpush1.msra.mxu0 %v5184
    %5232 = vmatprep.subr.mxu0 0.0
    %5233 = vmatpush1.msra.mxu0 %v5183
    %5234 = vmatprep.subr.mxu0 0.0
    %5235 = vmatpush1.msra.mxu0 %v5182
    %5236 = vmatprep.subr.mxu0 0.0
    %5237 = vmatpush1.msra.mxu0 %v5181
    %5238 = vmatprep.subr.mxu0 0.0
    %5239 = vmatpush1.msra.mxu0 %v5180
    %5240 = vmatprep.subr.mxu0 0.0
    %5241 = vmatpush2.msra.mxu0 0.0
    %5242 = vmatprep.subr.mxu0 0.0
    %5243 = vmatpush2.msra.mxu0 0.0
    %5244 = vmatprep.subr.mxu0 0.0
    %5245 = vmatpush2.msra.mxu0 0.0
    %5246 = vmatprep.subr.mxu0 0.0
    %5247 = vmatpush2.msra.mxu0 0.0
    %5248 = vmatprep.subr.mxu0 0.0
    %5249 = vmatpush2.msra.mxu0 0.0
    %5250 = vmatprep.subr.mxu0 0.0
    %5251 = vmatpush2.msra.mxu0 0.0
    %5252 = vmatprep.subr.mxu0 0.0
    %5253 = vmatpush2.msra.mxu0 0.0
    %5254 = vmatprep.subr.mxu0 0.0
    %5255 = vmatpush2.msra.mxu0 0.0
    %5256 = vmatprep.subr.mxu0 0.0
    %5257 = vmatpush2.msra.mxu0 0.0
    %5258 = vmatprep.subr.mxu0 0.0
    %5259 = vmatpush2.msra.mxu0 0.0
    %5260 = vmatprep.subr.mxu0 0.0
    %5261 = vmatpush2.msra.mxu0 0.0
    %5262 = vmatprep.subr.mxu0 0.0
    %5263 = vmatpush2.msra.mxu0 0.0
    %5264 = vmatprep.subr.mxu0 0.0
    %5265 = vmatpush2.msra.mxu0 0.0
    %5266 = vmatprep.subr.mxu0 0.0
    %5267 = vmatpush2.msra.mxu0 0.0
    %5268 = vmatprep.subr.mxu0 0.0
    %5269 = vmatpush2.msra.mxu0 0.0
    %5270 = vmatprep.subr.mxu0 0.0
    %5271 = vmatpush2.msra.mxu0 0.0
    %5272 = vmatprep.mubr.f32.mxu0 0.0
    %5273 = vmatmul.mubr.f32.gmra.mxu0 %v5206
    %v5274 = vpop.f32.mrf.mxu0
    %v5275 = vadd.f32 0.0, %v5274
    %v5276 = vpop.f32.mrf.mxu0
    %5277 = vdwg.mxu0
    %v5278 = vmul.f32 %v5164, %v5164
    %v5279 = vmul.f32 %v5165, %v5165
    %v5280 = vmul.f32 %v5166, %v5166
    %v5281 = vmul.f32 %v5167, %v5167
    %v5282 = vsel %vm2358, %v5278, 0.0
    %v5283 = vsel %vm2358, %v5279, 0.0
    %v5284 = vadd.f32 %v5282, %v5283
    %v5285 = vsel %vm2358, %v5280, 0.0
    %v5286 = vadd.f32 %v5284, %v5285
    %v5287 = vsel %vm2358, %v5281, 0.0
    %v5288 = vadd.f32 %v5286, %v5287
    %v5289 = vrot.slane %v5288, 4
    %v5290 = vadd.f32 %v5288, %v5289
    %v5291 = vrot.slane %v5290, 2
    %v5292 = vadd.f32 %v5290, %v5291
    %v5293 = vrot.slane %v5292, 1
    %v5294 = vadd.f32 %v5292, %v5293
    %v5296 = vsel %vm2358, %v5294, 0
    %5298 = vmatprep.subr.mxu0 0.0
    %5299 = vmatpush1.msra.mxu0 0.0
    %5300 = vmatprep.subr.mxu0 0.0
    %5301 = vmatpush1.msra.mxu0 0.0
    %5302 = vmatprep.subr.mxu0 0.0
    %5303 = vmatpush1.msra.mxu0 0.0
    %5304 = vmatprep.subr.mxu0 0.0
    %5305 = vmatpush1.msra.mxu0 0.0
    %5306 = vmatprep.subr.mxu0 0.0
    %5307 = vmatpush1.msra.mxu0 %v5191
    %5308 = vmatprep.subr.mxu0 0.0
    %5309 = vmatpush1.msra.mxu0 %v5190
    %5310 = vmatprep.subr.mxu0 0.0
    %5311 = vmatpush1.msra.mxu0 %v5189
    %5312 = vmatprep.subr.mxu0 0.0
    %5313 = vmatpush1.msra.mxu0 %v5188
    %5314 = vmatprep.subr.mxu0 0.0
    %5315 = vmatpush1.msra.mxu0 %v5187
    %5316 = vmatprep.subr.mxu0 0.0
    %5317 = vmatpush1.msra.mxu0 %v5186
    %5318 = vmatprep.subr.mxu0 0.0
    %5319 = vmatpush1.msra.mxu0 %v5185
    %5320 = vmatprep.subr.mxu0 0.0
    %5321 = vmatpush1.msra.mxu0 %v5184
    %5322 = vmatprep.subr.mxu0 0.0
    %5323 = vmatpush1.msra.mxu0 %v5183
    %5324 = vmatprep.subr.mxu0 0.0
    %5325 = vmatpush1.msra.mxu0 %v5182
    %5326 = vmatprep.subr.mxu0 0.0
    %5327 = vmatpush1.msra.mxu0 %v5181
    %5328 = vmatprep.subr.mxu0 0.0
    %5329 = vmatpush1.msra.mxu0 %v5180
    %5330 = vmatprep.subr.mxu0 0.0
    %5331 = vmatpush2.msra.mxu0 0.0
    %5332 = vmatprep.subr.mxu0 0.0
    %5333 = vmatpush2.msra.mxu0 0.0
    %5334 = vmatprep.subr.mxu0 0.0
    %5335 = vmatpush2.msra.mxu0 0.0
    %5336 = vmatprep.subr.mxu0 0.0
    %5337 = vmatpush2.msra.mxu0 0.0
    %5338 = vmatprep.subr.mxu0 0.0
    %5339 = vmatpush2.msra.mxu0 0.0
    %5340 = vmatprep.subr.mxu0 0.0
    %5341 = vmatpush2.msra.mxu0 0.0
    %5342 = vmatprep.subr.mxu0 0.0
    %5343 = vmatpush2.msra.mxu0 0.0
    %5344 = vmatprep.subr.mxu0 0.0
    %5345 = vmatpush2.msra.mxu0 0.0
    %5346 = vmatprep.subr.mxu0 0.0
    %5347 = vmatpush2.msra.mxu0 0.0
    %5348 = vmatprep.subr.mxu0 0.0
    %5349 = vmatpush2.msra.mxu0 0.0
    %5350 = vmatprep.subr.mxu0 0.0
    %5351 = vmatpush2.msra.mxu0 0.0
    %5352 = vmatprep.subr.mxu0 0.0
    %5353 = vmatpush2.msra.mxu0 0.0
    %5354 = vmatprep.subr.mxu0 0.0
    %5355 = vmatpush2.msra.mxu0 0.0
    %5356 = vmatprep.subr.mxu0 0.0
    %5357 = vmatpush2.msra.mxu0 0.0
    %5358 = vmatprep.subr.mxu0 0.0
    %5359 = vmatpush2.msra.mxu0 0.0
    %5360 = vmatprep.subr.mxu0 0.0
    %5361 = vmatpush2.msra.mxu0 0.0
    %5362 = vmatprep.mubr.f32.mxu0 0.0
    %5363 = vmatmul.mubr.f32.gmra.mxu0 %v5296
    %v5364 = vpop.f32.mrf.mxu0
    %v5365 = vadd.f32 0.0, %v5364
    %v5366 = vpop.f32.mrf.mxu0
    %5367 = vdwg.mxu0
    %v5368 = vmul.f32 %v5275, 0.010416667
    %v5369 = vmul.f32 %v5365, 0.010416667
    %v5370 = vmul.f32 %v5368, %v5368
    %v5371 = vsub.f32 %v5369, %v5370
    %v5372 = vmax.f32 %v5371, 0.0
    %v5373 = vld [vmem:[%s19] sm:$0x1]
    %v5374 = vadd.f32 %v5372, 1e-05
    %v5375 = vrsqrt.pop %v5374
    %v5376 = vmul.f32 %v5373, %v5375
    %v5377 = vld [vmem:[%s20] sm:$0x1]
    %v5378 = vmul.f32 %v5368, %v5376
    %v5379 = vsub.f32 %v5377, %v5378
    %v5380 = vld [vmem:[#allocation11] sm:$0xf]
    %v5381 = vld [vmem:[#allocation11 + $0x4] sm:$0xf]
    %v5382 = vld [vmem:[#allocation11 + $0x8] sm:$0xf]
    %v5383 = vld [vmem:[#allocation11 + $0xc] sm:$0xf]
    %v5384 = vunpack.c.l.bf16 %v5380
    %v5385 = vunpack.c.l.bf16 %v5381
    %v5386 = vunpack.c.l.bf16 %v5382
    %v5387 = vunpack.c.l.bf16 %v5383
    %v5389 = vsel %vm417, %v5376, 0
    %5391 = vmatprep.subr.mxu0 0.0
    %5392 = vmatpush1.msra.mxu0 0.0
    %5393 = vmatprep.subr.mxu0 0.0
    %5394 = vmatpush1.msra.mxu0 0.0
    %5395 = vmatprep.subr.mxu0 0.0
    %5396 = vmatpush1.msra.mxu0 0.0
    %5397 = vmatprep.subr.mxu0 0.0
    %5398 = vmatpush1.msra.mxu0 0.0
    %5399 = vmatprep.subr.mxu0 0.0
    %5400 = vmatpush1.msra.mxu0 0.0
    %5401 = vmatprep.subr.mxu0 0.0
    %5402 = vmatpush1.msra.mxu0 0.0
    %5403 = vmatprep.subr.mxu0 0.0
    %5404 = vmatpush1.msra.mxu0 0.0
    %5405 = vmatprep.subr.mxu0 0.0
    %5406 = vmatpush1.msra.mxu0 0.0
    %5407 = vmatprep.subr.mxu0 0.0
    %5408 = vmatpush1.msra.mxu0 0.0
    %5409 = vmatprep.subr.mxu0 0.0
    %5410 = vmatpush1.msra.mxu0 0.0
    %5411 = vmatprep.subr.mxu0 0.0
    %5412 = vmatpush1.msra.mxu0 0.0
    %5413 = vmatprep.subr.mxu0 0.0
    %5414 = vmatpush1.msra.mxu0 0.0
    %5415 = vmatprep.subr.mxu0 0.0
    %5416 = vmatpush1.msra.mxu0 %v5387
    %5417 = vmatprep.subr.mxu0 0.0
    %5418 = vmatpush1.msra.mxu0 %v5386
    %5419 = vmatprep.subr.mxu0 0.0
    %5420 = vmatpush1.msra.mxu0 %v5385
    %5421 = vmatprep.subr.mxu0 0.0
    %5422 = vmatpush1.msra.mxu0 %v5384
    %5423 = vmatprep.subr.mxu0 0.0
    %5424 = vmatpush2.msra.mxu0 0.0
    %5425 = vmatprep.subr.mxu0 0.0
    %5426 = vmatpush2.msra.mxu0 0.0
    %5427 = vmatprep.subr.mxu0 0.0
    %5428 = vmatpush2.msra.mxu0 0.0
    %5429 = vmatprep.subr.mxu0 0.0
    %5430 = vmatpush2.msra.mxu0 0.0
    %5431 = vmatprep.subr.mxu0 0.0
    %5432 = vmatpush2.msra.mxu0 0.0
    %5433 = vmatprep.subr.mxu0 0.0
    %5434 = vmatpush2.msra.mxu0 0.0
    %5435 = vmatprep.subr.mxu0 0.0
    %5436 = vmatpush2.msra.mxu0 0.0
    %5437 = vmatprep.subr.mxu0 0.0
    %5438 = vmatpush2.msra.mxu0 0.0
    %5439 = vmatprep.subr.mxu0 0.0
    %5440 = vmatpush2.msra.mxu0 0.0
    %5441 = vmatprep.subr.mxu0 0.0
    %5442 = vmatpush2.msra.mxu0 0.0
    %5443 = vmatprep.subr.mxu0 0.0
    %5444 = vmatpush2.msra.mxu0 0.0
    %5445 = vmatprep.subr.mxu0 0.0
    %5446 = vmatpush2.msra.mxu0 0.0
    %5447 = vmatprep.subr.mxu0 0.0
    %5448 = vmatpush2.msra.mxu0 0.0
    %5449 = vmatprep.subr.mxu0 0.0
    %5450 = vmatpush2.msra.mxu0 0.0
    %5451 = vmatprep.subr.mxu0 0.0
    %5452 = vmatpush2.msra.mxu0 0.0
    %5453 = vmatprep.subr.mxu0 0.0
    %5454 = vmatpush2.msra.mxu0 0.0
    %5455 = vmatprep.mubr.f32.mxu0 0.0
    %5456 = vmatmul.mubr.f32.gmra.mxu0 %v5389
    %v5457 = vpop.f32.mrf.mxu0
    %v5458 = vadd.f32 0.0, %v5457
    %v5459 = vpop.f32.mrf.mxu0
    %5460 = vdwg.mxu0
    %v5462 = vsel %vm417, %v5379, 0
    %5464 = vmatprep.subr.mxu0 0.0
    %5465 = vmatpush1.msra.mxu0 0.0
    %5466 = vmatprep.subr.mxu0 0.0
    %5467 = vmatpush1.msra.mxu0 0.0
    %5468 = vmatprep.subr.mxu0 0.0
    %5469 = vmatpush1.msra.mxu0 0.0
    %5470 = vmatprep.subr.mxu0 0.0
    %5471 = vmatpush1.msra.mxu0 0.0
    %5472 = vmatprep.subr.mxu0 0.0
    %5473 = vmatpush1.msra.mxu0 0.0
    %5474 = vmatprep.subr.mxu0 0.0
    %5475 = vmatpush1.msra.mxu0 0.0
    %5476 = vmatprep.subr.mxu0 0.0
    %5477 = vmatpush1.msra.mxu0 0.0
    %5478 = vmatprep.subr.mxu0 0.0
    %5479 = vmatpush1.msra.mxu0 0.0
    %5480 = vmatprep.subr.mxu0 0.0
    %5481 = vmatpush1.msra.mxu0 0.0
    %5482 = vmatprep.subr.mxu0 0.0
    %5483 = vmatpush1.msra.mxu0 0.0
    %5484 = vmatprep.subr.mxu0 0.0
    %5485 = vmatpush1.msra.mxu0 0.0
    %5486 = vmatprep.subr.mxu0 0.0
    %5487 = vmatpush1.msra.mxu0 0.0
    %5488 = vmatprep.subr.mxu0 0.0
    %5489 = vmatpush1.msra.mxu0 %v5387
    %5490 = vmatprep.subr.mxu0 0.0
    %5491 = vmatpush1.msra.mxu0 %v5386
    %5492 = vmatprep.subr.mxu0 0.0
    %5493 = vmatpush1.msra.mxu0 %v5385
    %5494 = vmatprep.subr.mxu0 0.0
    %5495 = vmatpush1.msra.mxu0 %v5384
    %5496 = vmatprep.subr.mxu0 0.0
    %5497 = vmatpush2.msra.mxu0 0.0
    %5498 = vmatprep.subr.mxu0 0.0
    %5499 = vmatpush2.msra.mxu0 0.0
    %5500 = vmatprep.subr.mxu0 0.0
    %5501 = vmatpush2.msra.mxu0 0.0
    %5502 = vmatprep.subr.mxu0 0.0
    %5503 = vmatpush2.msra.mxu0 0.0
    %5504 = vmatprep.subr.mxu0 0.0
    %5505 = vmatpush2.msra.mxu0 0.0
    %5506 = vmatprep.subr.mxu0 0.0
    %5507 = vmatpush2.msra.mxu0 0.0
    %5508 = vmatprep.subr.mxu0 0.0
    %5509 = vmatpush2.msra.mxu0 0.0
    %5510 = vmatprep.subr.mxu0 0.0
    %5511 = vmatpush2.msra.mxu0 0.0
    %5512 = vmatprep.subr.mxu0 0.0
    %5513 = vmatpush2.msra.mxu0 0.0
    %5514 = vmatprep.subr.mxu0 0.0
    %5515 = vmatpush2.msra.mxu0 0.0
    %5516 = vmatprep.subr.mxu0 0.0
    %5517 = vmatpush2.msra.mxu0 0.0
    %5518 = vmatprep.subr.mxu0 0.0
    %5519 = vmatpush2.msra.mxu0 0.0
    %5520 = vmatprep.subr.mxu0 0.0
    %5521 = vmatpush2.msra.mxu0 0.0
    %5522 = vmatprep.subr.mxu0 0.0
    %5523 = vmatpush2.msra.mxu0 0.0
    %5524 = vmatprep.subr.mxu0 0.0
    %5525 = vmatpush2.msra.mxu0 0.0
    %5526 = vmatprep.subr.mxu0 0.0
    %5527 = vmatpush2.msra.mxu0 0.0
    %5528 = vmatprep.mubr.f32.mxu0 0.0
    %5529 = vmatmul.mubr.f32.gmra.mxu0 %v5462
    %v5530 = vpop.f32.mrf.mxu0
    %v5531 = vadd.f32 0.0, %v5530
    %v5532 = vpop.f32.mrf.mxu0
    %5533 = vdwg.mxu0
    %v5534 = vlaneseq
    %v5535 = vshrl.u32 %v5534, 7
    %v5536 = vsub.s32 0, %v5535
    %v5537 = vrot.slane %v5458, %v5536
    %v5538 = vmul.f32 %v5164, %v5537
    %v5539 = vmul.f32 %v5165, %v5537
    %v5540 = vmul.f32 %v5166, %v5537
    %v5541 = vmul.f32 %v5167, %v5537
    %v5542 = vlaneseq
    %v5543 = vshrl.u32 %v5542, 7
    %v5544 = vsub.s32 0, %v5543
    %v5545 = vrot.slane %v5531, %v5544
    %v5546 = vadd.f32 %v5538, %v5545
    %v5547 = vadd.f32 %v5539, %v5545
    %v5548 = vadd.f32 %v5540, %v5545
    %v5549 = vadd.f32 %v5541, %v5545
    %v5550 = vmax.f32 %v5546, 0.0
    %v5551 = vmax.f32 %v5547, 0.0
    %v5552 = vmax.f32 %v5548, 0.0
    %v5553 = vmax.f32 %v5549, 0.0
    %v5554 = vld [vmem:[%s21] sm:$0xff]
    %v5555 = vld [vmem:[%s21 + $0x8] sm:$0xff]
    %v5556 = vld [vmem:[%s21 + $0x10] sm:$0xff]
    %v5557 = vld [vmem:[%s21 + $0x18] sm:$0xff]
    %v5558 = vld [vmem:[%s21 + $0x20] sm:$0xff]
    %v5559 = vld [vmem:[%s21 + $0x28] sm:$0xff]
    %v5560 = vld [vmem:[%s21 + $0x30] sm:$0xff]
    %v5561 = vld [vmem:[%s21 + $0x38] sm:$0xff]
    %v5562 = vld [vmem:[%s21 + $0x40] sm:$0xff]
    %v5563 = vld [vmem:[%s21 + $0x48] sm:$0xff]
    %v5564 = vld [vmem:[%s21 + $0x50] sm:$0xff]
    %v5565 = vld [vmem:[%s21 + $0x58] sm:$0xff]
    %v5567 = vsel %vm2358, %v5550, 0
    %v5570 = vsel %vm2358, %v5551, 0
    %v5573 = vsel %vm2358, %v5552, 0
    %v5576 = vsel %vm2358, %v5553, 0
    %5578 = vmatprep.subr.mxu0 0.0
    %5579 = vmatpush1.msra.mxu0 0.0
    %5580 = vmatprep.subr.mxu0 0.0
    %5581 = vmatpush1.msra.mxu0 0.0
    %5582 = vmatprep.subr.mxu0 0.0
    %5583 = vmatpush1.msra.mxu0 0.0
    %5584 = vmatprep.subr.mxu0 0.0
    %5585 = vmatpush1.msra.mxu0 0.0
    %5586 = vmatprep.subr.mxu0 0.0
    %5587 = vmatpush1.msra.mxu0 %v5565
    %5588 = vmatprep.subr.mxu0 0.0
    %5589 = vmatpush1.msra.mxu0 %v5564
    %5590 = vmatprep.subr.mxu0 0.0
    %5591 = vmatpush1.msra.mxu0 %v5563
    %5592 = vmatprep.subr.mxu0 0.0
    %5593 = vmatpush1.msra.mxu0 %v5562
    %5594 = vmatprep.subr.mxu0 0.0
    %5595 = vmatpush1.msra.mxu0 %v5561
    %5596 = vmatprep.subr.mxu0 0.0
    %5597 = vmatpush1.msra.mxu0 %v5560
    %5598 = vmatprep.subr.mxu0 0.0
    %5599 = vmatpush1.msra.mxu0 %v5559
    %5600 = vmatprep.subr.mxu0 0.0
    %5601 = vmatpush1.msra.mxu0 %v5558
    %5602 = vmatprep.subr.mxu0 0.0
    %5603 = vmatpush1.msra.mxu0 %v5557
    %5604 = vmatprep.subr.mxu0 0.0
    %5605 = vmatpush1.msra.mxu0 %v5556
    %5606 = vmatprep.subr.mxu0 0.0
    %5607 = vmatpush1.msra.mxu0 %v5555
    %5608 = vmatprep.subr.mxu0 0.0
    %5609 = vmatpush1.msra.mxu0 %v5554
    %5610 = vmatprep.subr.mxu0 0.0
    %5611 = vmatpush2.msra.mxu0 0.0
    %5612 = vmatprep.subr.mxu0 0.0
    %5613 = vmatpush2.msra.mxu0 0.0
    %5614 = vmatprep.subr.mxu0 0.0
    %5615 = vmatpush2.msra.mxu0 0.0
    %5616 = vmatprep.subr.mxu0 0.0
    %5617 = vmatpush2.msra.mxu0 0.0
    %5618 = vmatprep.subr.mxu0 0.0
    %5619 = vmatpush2.msra.mxu0 0.0
    %5620 = vmatprep.subr.mxu0 0.0
    %5621 = vmatpush2.msra.mxu0 0.0
    %5622 = vmatprep.subr.mxu0 0.0
    %5623 = vmatpush2.msra.mxu0 0.0
    %5624 = vmatprep.subr.mxu0 0.0
    %5625 = vmatpush2.msra.mxu0 0.0
    %5626 = vmatprep.subr.mxu0 0.0
    %5627 = vmatpush2.msra.mxu0 0.0
    %5628 = vmatprep.subr.mxu0 0.0
    %5629 = vmatpush2.msra.mxu0 0.0
    %5630 = vmatprep.subr.mxu0 0.0
    %5631 = vmatpush2.msra.mxu0 0.0
    %5632 = vmatprep.subr.mxu0 0.0
    %5633 = vmatpush2.msra.mxu0 0.0
    %5634 = vmatprep.subr.mxu0 0.0
    %5635 = vmatpush2.msra.mxu0 0.0
    %5636 = vmatprep.subr.mxu0 0.0
    %5637 = vmatpush2.msra.mxu0 0.0
    %5638 = vmatprep.subr.mxu0 0.0
    %5639 = vmatpush2.msra.mxu0 0.0
    %5640 = vmatprep.subr.mxu0 0.0
    %5641 = vmatpush2.msra.mxu0 0.0
    %5642 = vmatprep.mubr.f32.mxu0 0.0
    %5643 = vmatmul.mubr.f32.gmra.mxu0 %v5567
    %v5644 = vpop.f32.mrf.mxu0
    %v5645 = vadd.f32 0.0, %v5644
    %v5646 = vpop.f32.mrf.mxu0
    %5647 = vmatprep.mubr.f32.mxu0 0.0
    %5648 = vmatmul.mubr.f32.gmra.mxu0 %v5570
    %v5649 = vpop.f32.mrf.mxu0
    %v5650 = vadd.f32 0.0, %v5649
    %v5651 = vpop.f32.mrf.mxu0
    %5652 = vmatprep.mubr.f32.mxu0 0.0
    %5653 = vmatmul.mubr.f32.gmra.mxu0 %v5573
    %v5654 = vpop.f32.mrf.mxu0
    %v5655 = vadd.f32 0.0, %v5654
    %v5656 = vpop.f32.mrf.mxu0
    %5657 = vmatprep.mubr.f32.mxu0 0.0
    %5658 = vmatmul.mubr.f32.gmra.mxu0 %v5576
    %v5659 = vpop.f32.mrf.mxu0
    %v5660 = vadd.f32 0.0, %v5659
    %v5661 = vpop.f32.mrf.mxu0
    %5662 = vdwg.mxu0
    %v5663 = vld [vmem:[#allocation13] sm:$0xf]
    %v5664 = vld [vmem:[#allocation13 + $0x4] sm:$0xf]
    %v5665 = vld [vmem:[#allocation13 + $0x8] sm:$0xf]
    %v5666 = vld [vmem:[#allocation13 + $0xc] sm:$0xf]
    %v5667 = vunpack.c.l.bf16 %v5663
    %v5668 = vunpack.c.l.bf16 %v5664
    %v5669 = vunpack.c.l.bf16 %v5665
    %v5670 = vunpack.c.l.bf16 %v5666
    %v5671 = vmul.f32 %v5645, %v5667
    %v5672 = vmul.f32 %v5650, %v5668
    %v5673 = vmul.f32 %v5655, %v5669
    %v5674 = vmul.f32 %v5660, %v5670
    %v5675 = vld [vmem:[#allocation14] sm:$0x1]
    %v5676 = vunpack.c.l.bf16 %v5675
    %v5678 = vsel %vm417, %v5676, 0
    %5680 = vmatprep.subr.mxu0 0.0
    %5681 = vmatpush1.msra.mxu0 0.0
    %5682 = vmatprep.subr.mxu0 0.0
    %5683 = vmatpush1.msra.mxu0 0.0
    %5684 = vmatprep.subr.mxu0 0.0
    %5685 = vmatpush1.msra.mxu0 0.0
    %5686 = vmatprep.subr.mxu0 0.0
    %5687 = vmatpush1.msra.mxu0 0.0
    %5688 = vmatprep.subr.mxu0 0.0
    %5689 = vmatpush1.msra.mxu0 0.0
    %5690 = vmatprep.subr.mxu0 0.0
    %5691 = vmatpush1.msra.mxu0 0.0
    %5692 = vmatprep.subr.mxu0 0.0
    %5693 = vmatpush1.msra.mxu0 0.0
    %5694 = vmatprep.subr.mxu0 0.0
    %5695 = vmatpush1.msra.mxu0 0.0
    %5696 = vmatprep.subr.mxu0 0.0
    %5697 = vmatpush1.msra.mxu0 0.0
    %5698 = vmatprep.subr.mxu0 0.0
    %5699 = vmatpush1.msra.mxu0 0.0
    %5700 = vmatprep.subr.mxu0 0.0
    %5701 = vmatpush1.msra.mxu0 0.0
    %5702 = vmatprep.subr.mxu0 0.0
    %5703 = vmatpush1.msra.mxu0 0.0
    %5704 = vmatprep.subr.mxu0 0.0
    %5705 = vmatpush1.msra.mxu0 %v5674
    %5706 = vmatprep.subr.mxu0 0.0
    %5707 = vmatpush1.msra.mxu0 %v5673
    %5708 = vmatprep.subr.mxu0 0.0
    %5709 = vmatpush1.msra.mxu0 %v5672
    %5710 = vmatprep.subr.mxu0 0.0
    %5711 = vmatpush1.msra.mxu0 %v5671
    %5712 = vmatprep.subr.mxu0 0.0
    %5713 = vmatpush2.msra.mxu0 0.0
    %5714 = vmatprep.subr.mxu0 0.0
    %5715 = vmatpush2.msra.mxu0 0.0
    %5716 = vmatprep.subr.mxu0 0.0
    %5717 = vmatpush2.msra.mxu0 0.0
    %5718 = vmatprep.subr.mxu0 0.0
    %5719 = vmatpush2.msra.mxu0 0.0
    %5720 = vmatprep.subr.mxu0 0.0
    %5721 = vmatpush2.msra.mxu0 0.0
    %5722 = vmatprep.subr.mxu0 0.0
    %5723 = vmatpush2.msra.mxu0 0.0
    %5724 = vmatprep.subr.mxu0 0.0
    %5725 = vmatpush2.msra.mxu0 0.0
    %5726 = vmatprep.subr.mxu0 0.0
    %5727 = vmatpush2.msra.mxu0 0.0
    %5728 = vmatprep.subr.mxu0 0.0
    %5729 = vmatpush2.msra.mxu0 0.0
    %5730 = vmatprep.subr.mxu0 0.0
    %5731 = vmatpush2.msra.mxu0 0.0
    %5732 = vmatprep.subr.mxu0 0.0
    %5733 = vmatpush2.msra.mxu0 0.0
    %5734 = vmatprep.subr.mxu0 0.0
    %5735 = vmatpush2.msra.mxu0 0.0
    %5736 = vmatprep.subr.mxu0 0.0
    %5737 = vmatpush2.msra.mxu0 0.0
    %5738 = vmatprep.subr.mxu0 0.0
    %5739 = vmatpush2.msra.mxu0 0.0
    %5740 = vmatprep.subr.mxu0 0.0
    %5741 = vmatpush2.msra.mxu0 0.0
    %5742 = vmatprep.subr.mxu0 0.0
    %5743 = vmatpush2.msra.mxu0 0.0
    %5744 = vmatprep.mubr.f32.mxu0 0.0
    %5745 = vmatmul.mubr.f32.gmra.mxu0 %v5678
    %v5746 = vpop.f32.mrf.mxu0
    %v5747 = vadd.f32 0.0, %v5746
    %v5748 = vpop.f32.mrf.mxu0
    %5749 = vdwg.mxu0
    %v5750 = vld [vmem:[%s23] sm:$0xf]
    %v5751 = vld [vmem:[%s23 + $0x4] sm:$0xf]
    %v5752 = vld [vmem:[%s23 + $0x8] sm:$0xf]
    %v5753 = vld [vmem:[%s23 + $0xc] sm:$0xf]
    %v5754 = vld [vmem:[%s23 + $0x10] sm:$0xf]
    %v5755 = vld [vmem:[%s23 + $0x14] sm:$0xf]
    %v5756 = vld [vmem:[%s23 + $0x18] sm:$0xf]
    %v5757 = vld [vmem:[%s23 + $0x1c] sm:$0xf]
    %v5758 = vld [vmem:[%s23 + $0x20] sm:$0xf]
    %v5759 = vld [vmem:[%s23 + $0x24] sm:$0xf]
    %v5760 = vld [vmem:[%s23 + $0x28] sm:$0xf]
    %v5761 = vld [vmem:[%s23 + $0x2c] sm:$0xf]
    %v5762 = vld [vmem:[%s23 + $0x30] sm:$0xf]
    %v5763 = vld [vmem:[%s23 + $0x34] sm:$0xf]
    %v5764 = vld [vmem:[%s23 + $0x38] sm:$0xf]
    %v5765 = vld [vmem:[%s23 + $0x3c] sm:$0xf]
    %v5766 = vunpack.c.l.bf16 %v5750
    %v5767 = vunpack.c.l.bf16 %v5751
    %v5768 = vunpack.c.l.bf16 %v5752
    %v5769 = vunpack.c.l.bf16 %v5753
    %v5770 = vunpack.c.l.bf16 %v5754
    %v5771 = vunpack.c.l.bf16 %v5755
    %v5772 = vunpack.c.l.bf16 %v5756
    %v5773 = vunpack.c.l.bf16 %v5757
    %v5774 = vunpack.c.l.bf16 %v5758
    %v5775 = vunpack.c.l.bf16 %v5759
    %v5776 = vunpack.c.l.bf16 %v5760
    %v5777 = vunpack.c.l.bf16 %v5761
    %v5778 = vunpack.c.l.bf16 %v5762
    %v5779 = vunpack.c.l.bf16 %v5763
    %v5780 = vunpack.c.l.bf16 %v5764
    %v5781 = vunpack.c.l.bf16 %v5765
    %v5782 = vld [vmem:[%s25] sm:$0x1]
    %v5784 = vlaneseq
    %v5785 = vshrl.u32 %v5784, 7
    %v5786 = vsub.s32 0, %v5785
    %v5787 = vrot.slane %v5782, %v5786
    %5789 = vmatprep.subr.mxu0 0.0
    %5790 = vmatpush1.msra.mxu0 %v5781
    %5791 = vmatprep.subr.mxu0 0.0
    %5792 = vmatpush1.msra.mxu0 %v5780
    %5793 = vmatprep.subr.mxu0 0.0
    %5794 = vmatpush1.msra.mxu0 %v5779
    %5795 = vmatprep.subr.mxu0 0.0
    %5796 = vmatpush1.msra.mxu0 %v5778
    %5797 = vmatprep.subr.mxu0 0.0
    %5798 = vmatpush1.msra.mxu0 %v5777
    %5799 = vmatprep.subr.mxu0 0.0
    %5800 = vmatpush1.msra.mxu0 %v5776
    %5801 = vmatprep.subr.mxu0 0.0
    %5802 = vmatpush1.msra.mxu0 %v5775
    %5803 = vmatprep.subr.mxu0 0.0
    %5804 = vmatpush1.msra.mxu0 %v5774
    %5805 = vmatprep.subr.mxu0 0.0
    %5806 = vmatpush1.msra.mxu0 %v5773
    %5807 = vmatprep.subr.mxu0 0.0
    %5808 = vmatpush1.msra.mxu0 %v5772
    %5809 = vmatprep.subr.mxu0 0.0
    %5810 = vmatpush1.msra.mxu0 %v5771
    %5811 = vmatprep.subr.mxu0 0.0
    %5812 = vmatpush1.msra.mxu0 %v5770
    %5813 = vmatprep.subr.mxu0 0.0
    %5814 = vmatpush1.msra.mxu0 %v5769
    %5815 = vmatprep.subr.mxu0 0.0
    %5816 = vmatpush1.msra.mxu0 %v5768
    %5817 = vmatprep.subr.mxu0 0.0
    %5818 = vmatpush1.msra.mxu0 %v5767
    %5819 = vmatprep.subr.mxu0 0.0
    %5820 = vmatpush1.msra.mxu0 %v5766
    %5821 = vmatprep.subr.mxu0 0.0
    %5822 = vmatpush2.msra.mxu0 0.0
    %5823 = vmatprep.subr.mxu0 0.0
    %5824 = vmatpush2.msra.mxu0 0.0
    %5825 = vmatprep.subr.mxu0 0.0
    %5826 = vmatpush2.msra.mxu0 0.0
    %5827 = vmatprep.subr.mxu0 0.0
    %5828 = vmatpush2.msra.mxu0 0.0
    %5829 = vmatprep.subr.mxu0 0.0
    %5830 = vmatpush2.msra.mxu0 0.0
    %5831 = vmatprep.subr.mxu0 0.0
    %5832 = vmatpush2.msra.mxu0 0.0
    %5833 = vmatprep.subr.mxu0 0.0
    %5834 = vmatpush2.msra.mxu0 0.0
    %5835 = vmatprep.subr.mxu0 0.0
    %5836 = vmatpush2.msra.mxu0 0.0
    %5837 = vmatprep.subr.mxu0 0.0
    %5838 = vmatpush2.msra.mxu0 0.0
    %5839 = vmatprep.subr.mxu0 0.0
    %5840 = vmatpush2.msra.mxu0 0.0
    %5841 = vmatprep.subr.mxu0 0.0
    %5842 = vmatpush2.msra.mxu0 0.0
    %5843 = vmatprep.subr.mxu0 0.0
    %5844 = vmatpush2.msra.mxu0 0.0
    %5845 = vmatprep.subr.mxu0 0.0
    %5846 = vmatpush2.msra.mxu0 0.0
    %5847 = vmatprep.subr.mxu0 0.0
    %5848 = vmatpush2.msra.mxu0 0.0
    %5849 = vmatprep.subr.mxu0 0.0
    %5850 = vmatpush2.msra.mxu0 0.0
    %5851 = vmatprep.subr.mxu0 0.0
    %5852 = vmatpush2.msra.mxu0 0.0
    %5853 = vmatprep.mubr.f32.mxu0 0.0
    %5854 = vmatmul.mubr.f32.gmra.mxu0 %v5747
    %v5855 = vpop.f32.mrf.mxu0
    %v5856 = vadd.f32 %v5787, %v5855
    %v5857 = vpop.f32.mrf.mxu0
    %5858 = vdwg.mxu0
    %vm5859 = vcmask 58368
    %5860 = vst.msk [vmem:[#allocation16] sm:$0x3] %vm5859, %v5856
    // Predicated region
    $region138: #{forward_pallas.1} parent=1 // pred_check
      _
    $region139: #{forward_pallas.1} parent=1 // pred_check_branch
      %5862 = sbr.rel (0) target = $region141
    $region140: #{forward_pallas.1} parent=1 // pred_region
      %s5864 = ssub.s32 32, 32
      %5865 = vsyncadd [#allocation4], %s5864
      %s5867 = sshll.u32 [#allocation16], 4
      %s5868 = int_to_ptr.vmem [resolvable:$true] %s5867
      %5870 = dma.vmem_to_hbm [thread:$0]  %s5868, 32, %s26, [#allocation4]
    $region141: #{forward_pallas.1} parent=1 // pred_fallthru
      _
    // Predicated region
    $region142: #{forward_pallas.1} parent=1 // pred_check
      _
    $region143: #{forward_pallas.1} parent=1 // pred_check_branch
      %5872 = sbr.rel (0) target = $region145
    $region144: #{forward_pallas.1} parent=1 // pred_region
      %5873 = dma.done [#allocation4], 32
    $region145: #{forward_pallas.1} parent=1 // pred_fallthru
      _
    %5874 = vsyncpa [#allocation3], 1
    %5875 = vsyncpa [#allocation6], 1
    %5876 = vsyncpa [#allocation9], 1
    %5877 = vsyncpa [#allocation12], 1
    %5878 = vsyncpa [#allocation15], 1
    %5879 = vsyncpa [#allocation4], 1

</llo_original>
